<compile_context>
chip_gen: v5e
topology: v5e:2x2
jax: 0.10.0
libtpu: 0.0.40
codegen_flags: <defaults>
</compile_context>

<pallas_src>
import jax
import jax.numpy as jnp
from jax.experimental import pallas as pl
from jax.experimental.pallas import tpu as pltpu

LANE = 128
SUBLANE = 8


def _round_up(n, m):
    return ((n + m - 1) // m) * m


def _pad2(a, rows, cols):
    """Zero-pad a 2-D array up to (rows, cols)."""
    return jnp.pad(a, ((0, rows - a.shape[0]), (0, cols - a.shape[1])))


def encoder_kernel(x_ref, w1_ref, b1_ref, w2_ref, b2_ref,
                   w3m_ref, b3m_ref, w3v_ref, b3v_ref, eps_ref,
                   z_ref, mean_ref, logvar_ref):
    # fc1 + ReLU   (bf16 operands, f32 MXU accumulation, f32 elementwise)
    h1 = jnp.dot(x_ref[...], w1_ref[...], preferred_element_type=jnp.float32)
    h1 = jnp.maximum(h1 + b1_ref[...], 0.0)

    # fc2 (no activation, matches the PyTorch forward)
    h2 = jnp.dot(h1.astype(w2_ref.dtype), w2_ref[...],
                 preferred_element_type=jnp.float32) + b2_ref[...]

    # fc3, split into lane-aligned mean / log_var halves (no unaligned slice)
    h2c = h2.astype(w3m_ref.dtype)
    mean = jnp.dot(h2c, w3m_ref[...],
                   preferred_element_type=jnp.float32) + b3m_ref[...]
    log_var = jnp.dot(h2c, w3v_ref[...],
                      preferred_element_type=jnp.float32) + b3v_ref[...]

    # reparameterization sample: z = mean + exp(log_var / 2) * eps
    z = mean + jnp.exp(log_var * 0.5) * eps_ref[...]

    z_ref[...] = z.astype(z_ref.dtype)
    mean_ref[...] = mean.astype(mean_ref.dtype)
    logvar_ref[...] = log_var.astype(logvar_ref.dtype)


def encoder_forward(x, params, eps, *, tile_b=256, compute_dtype=jnp.bfloat16):
    """Fused encoder. x: (B, input_dim) f32, eps: (B, output_dim) f32.

    Returns (z, mean, log_var), each (B, output_dim) f32.
    """
    w1, b1, w2, b2, w3, b3 = params
    B, d_in = x.shape
    h1_dim = w1.shape[1]
    h2_dim = w2.shape[1]
    assert w3.shape[1] % 2 == 0, "fc3 output dim must be 2 * output_dim"
    out_dim = w3.shape[1] // 2
    assert eps.shape == (B, out_dim)

    b1 = b1.reshape(1, -1)
    b2 = b2.reshape(1, -1)
    b3 = b3.reshape(1, -1)

    # Lane-pad every feature dim to a multiple of 128 (zero fill -> no math change).
    d_in_p = _round_up(d_in, LANE)
    h1_p = _round_up(h1_dim, LANE)
    h2_p = _round_up(h2_dim, LANE)
    out_p = _round_up(out_dim, LANE)

    # Batch tiling (sublane-aligned); cap tile at `tile_b` for v7x VMEM headroom.
    tile_b = min(tile_b, _round_up(B, SUBLANE))
    b_p = _round_up(B, tile_b)

    # Batch-side arrays: pad and cast matmul operand (x) to compute dtype.
    xp = _pad2(x, b_p, d_in_p).astype(compute_dtype)
    epsp = _pad2(eps, b_p, out_p)  # f32

    # Weights: bf16 matmul operands; biases stay f32 (added post-accumulation).
    w1p = _pad2(w1, d_in_p, h1_p).astype(compute_dtype)
    b1p = _pad2(b1, 1, h1_p)
    w2p = _pad2(w2, h1_p, h2_p).astype(compute_dtype)
    b2p = _pad2(b2, 1, h2_p)
    # Split fc3 into mean / log_var halves, then pad each to a full lane width.
    w3m = _pad2(w3[:, :out_dim], h2_p, out_p).astype(compute_dtype)
    w3v = _pad2(w3[:, out_dim:], h2_p, out_p).astype(compute_dtype)
    b3m = _pad2(b3[:, :out_dim], 1, out_p)
    b3v = _pad2(b3[:, out_dim:], 1, out_p)

    grid = (pl.cdiv(b_p, tile_b),)

    def row_spec(feat):
        return pl.BlockSpec((tile_b, feat), lambda i: (i, 0))

    def full_spec(shape):
        # Constant block index across the batch grid -> stays resident in VMEM.
        return pl.BlockSpec(shape, lambda i: (0, 0))

    out_sds = jax.ShapeDtypeStruct((b_p, out_p), jnp.float32)

    def _nbytes(a):
        return int(a.size) * int(a.dtype.itemsize)

    weight_bytes = sum(_nbytes(a) for a in (w1p, b1p, w2p, b2p, w3m, b3m, w3v, b3v))
    cost = pl.CostEstimate(
        flops=2 * b_p * (d_in_p * h1_p + h1_p * h2_p + 2 * h2_p * out_p),
        transcendentals=b_p * out_p,
        bytes_accessed=_nbytes(xp) + _nbytes(epsp) + weight_bytes
        + 3 * b_p * out_p * 4,
    )

    z, mean, log_var = pl.pallas_call(
        encoder_kernel,
        out_shape=(out_sds, out_sds, out_sds),
        grid=grid,
        in_specs=[
            row_spec(d_in_p),                 # x tile
            full_spec((d_in_p, h1_p)),        # w1 (resident)
            full_spec((1, h1_p)),             # b1
            full_spec((h1_p, h2_p)),          # w2
            full_spec((1, h2_p)),             # b2
            full_spec((h2_p, out_p)),         # w3 (mean half)
            full_spec((1, out_p)),            # b3 (mean half)
            full_spec((h2_p, out_p)),         # w3 (log_var half)
            full_spec((1, out_p)),            # b3 (log_var half)
            row_spec(out_p),                  # eps tile
        ],
        out_specs=(row_spec(out_p), row_spec(out_p), row_spec(out_p)),
        compiler_params=pltpu.CompilerParams(
            dimension_semantics=("parallel",),
            vmem_limit_bytes=32 * 1024 * 1024,
        ),
        cost_estimate=cost,
    )(xp, w1p, b1p, w2p, b2p, w3m, b3m, w3v, b3v, epsp)

    return (z[:B, :out_dim], mean[:B, :out_dim], log_var[:B, :out_dim])


def init_params(key, input_dim, layer_1, layer_2, output_dim):
    """Deterministic init mimicking nn.Linear's U(-1/sqrt(fan_in), 1/sqrt(fan_in))."""
    def linear(k, fan_in, fan_out):
        kw, kb = jax.random.split(k)
        bound = 1.0 / jnp.sqrt(fan_in)
        w = jax.random.uniform(kw, (fan_in, fan_out), jnp.float32, -bound, bound)
        b = jax.random.uniform(kb, (1, fan_out), jnp.float32, -bound, bound)
        return w, b

    k1, k2, k3 = jax.random.split(key, 3)
    w1, b1 = linear(k1, input_dim, layer_1)
    w2, b2 = linear(k2, layer_1, layer_2)
    w3, b3 = linear(k3, layer_2, output_dim * 2)
    return (w1, b1, w2, b2, w3, b3)


def reference_forward(x, params, eps, compute_dtype=jnp.float32):
    """Pure-JAX reference of the PyTorch forward (same precision policy as kernel)."""
    w1, b1, w2, b2, w3, b3 = params
    cd = compute_dtype
    f32 = jnp.float32
    h1 = jnp.maximum(
        jnp.dot(x.astype(cd), w1.astype(cd), preferred_element_type=f32) + b1, 0.0)
    h2 = jnp.dot(h1.astype(cd), w2.astype(cd), preferred_element_type=f32) + b2
    h3 = jnp.dot(h2.astype(cd), w3.astype(cd), preferred_element_type=f32) + b3
    out_dim = eps.shape[-1]
    mean, log_var = h3[:, :out_dim], h3[:, out_dim:]
    z = mean + jnp.exp(log_var / 2.0) * eps
    return z, mean, log_var


if __name__ == "__main__":
    # The module's own default sizes (784 -> 500 -> 100 -> 2*2); small batch.
    batch, input_dim, layer_1, layer_2, output_dim = 512, 784, 500, 100, 2

    key = jax.random.PRNGKey(0)
    kx, kp, keps = jax.random.split(key, 3)

    x = jax.random.normal(kx, (batch, input_dim), jnp.float32)
    params = init_params(kp, input_dim, layer_1, layer_2, output_dim)
    # torch.rand_like -> Uniform[0, 1)
    eps = jax.random.uniform(keps, (batch, output_dim), jnp.float32)

    z, mean, log_var = encoder_forward(x, params, eps, tile_b=256)
    jax.block_until_ready((z, mean, log_var))

    # Check against a reference with the same bf16-matmul / f32-accumulate policy.
    z_ref, mean_ref, lv_ref = reference_forward(x, params, eps, jnp.bfloat16)
    assert z.shape == (batch, output_dim)
    assert jnp.allclose(mean, mean_ref, atol=1e-3, rtol=1e-3)
    assert jnp.allclose(log_var, lv_ref, atol=1e-3, rtol=1e-3)
    assert jnp.allclose(z, z_ref, atol=1e-3, rtol=1e-3)

    # Loose sanity check against the full-f32 (PyTorch-equivalent) math.
    z32, mean32, lv32 = reference_forward(x, params, eps, jnp.float32)
    assert jnp.allclose(mean, mean32, atol=5e-2)
    assert jnp.allclose(log_var, lv32, atol=5e-2)
    assert jnp.allclose(z, z32, atol=5e-2)

    print("KERNEL_OK")
</pallas_src>

<mosaic_0001>
module attributes {stable_mosaic.version = 11 : i64} {
  func.func @encoder_kernel(%arg0: i32, %arg1: memref<256x896xbf16, #tpu.memory_space<vmem>>, %arg2: memref<896x512xbf16, #tpu.memory_space<vmem>>, %arg3: memref<1x512xf32, #tpu.memory_space<vmem>>, %arg4: memref<512x128xbf16, #tpu.memory_space<vmem>>, %arg5: memref<1x128xf32, #tpu.memory_space<vmem>>, %arg6: memref<128x128xbf16, #tpu.memory_space<vmem>>, %arg7: memref<1x128xf32, #tpu.memory_space<vmem>>, %arg8: memref<128x128xbf16, #tpu.memory_space<vmem>>, %arg9: memref<1x128xf32, #tpu.memory_space<vmem>>, %arg10: memref<256x128xf32, #tpu.memory_space<vmem>>, %arg11: memref<256x128xf32, #tpu.memory_space<vmem>>, %arg12: memref<256x128xf32, #tpu.memory_space<vmem>>, %arg13: memref<256x128xf32, #tpu.memory_space<vmem>>) attributes {dimension_semantics = [#tpu.dimension_semantics<parallel>], iteration_bounds = array<i64: 2>, scalar_prefetch = 0 : i64, scratch_operands = 0 : i64, tpu.core_type = #tpu.core_type<tc>, window_params = [{transform_indices = @transform_0, window_bounds = array<i64: 256, 896>}, {pipeline_mode = #tpu.pipeline_mode<synchronous>, transform_indices = @transform_1, window_bounds = array<i64: 896, 512>}, {pipeline_mode = #tpu.pipeline_mode<synchronous>, transform_indices = @transform_2, window_bounds = array<i64: 1, 512>}, {pipeline_mode = #tpu.pipeline_mode<synchronous>, transform_indices = @transform_3, window_bounds = array<i64: 512, 128>}, {pipeline_mode = #tpu.pipeline_mode<synchronous>, transform_indices = @transform_4, window_bounds = array<i64: 1, 128>}, {pipeline_mode = #tpu.pipeline_mode<synchronous>, transform_indices = @transform_5, window_bounds = array<i64: 128, 128>}, {pipeline_mode = #tpu.pipeline_mode<synchronous>, transform_indices = @transform_6, window_bounds = array<i64: 1, 128>}, {pipeline_mode = #tpu.pipeline_mode<synchronous>, transform_indices = @transform_7, window_bounds = array<i64: 128, 128>}, {pipeline_mode = #tpu.pipeline_mode<synchronous>, transform_indices = @transform_8, window_bounds = array<i64: 1, 128>}, {transform_indices = @transform_9, window_bounds = array<i64: 256, 128>}, {transform_indices = @transform_10, window_bounds = array<i64: 256, 128>}, {transform_indices = @transform_11, window_bounds = array<i64: 256, 128>}, {transform_indices = @transform_12, window_bounds = array<i64: 256, 128>}]} {
    %c0 = arith.constant 0 : index
    %c0_0 = arith.constant 0 : index
    %0 = vector.load %arg1[%c0, %c0_0] : memref<256x896xbf16, #tpu.memory_space<vmem>>, vector<256x896xbf16>
    %c0_1 = arith.constant 0 : index
    %c0_2 = arith.constant 0 : index
    %1 = vector.load %arg2[%c0_1, %c0_2] : memref<896x512xbf16, #tpu.memory_space<vmem>>, vector<896x512xbf16>
    %cst = arith.constant dense<0.000000e+00> : vector<256x512xf32>
    %2 = tpu.matmul %0, %1, %cst {dimension_numbers = #tpu.dot_dimension_numbers<[1], [0], [0], [1], [0, 0, 1, 1], [], []>} : vector<256x896xbf16>, vector<896x512xbf16>, vector<256x512xf32> -> vector<256x512xf32>
    %c0_3 = arith.constant 0 : index
    %c0_4 = arith.constant 0 : index
    %3 = vector.load %arg3[%c0_3, %c0_4] : memref<1x512xf32, #tpu.memory_space<vmem>>, vector<1x512xf32>
    %4 = vector.broadcast %3 : vector<1x512xf32> to vector<256x512xf32>
    %5 = arith.addf %2, %4 : vector<256x512xf32>
    %cst_5 = arith.constant 0.000000e+00 : f32
    %6 = vector.broadcast %cst_5 : f32 to vector<256x512xf32>
    %7 = arith.maximumf %5, %6 : vector<256x512xf32>
    %8 = arith.truncf %7 : vector<256x512xf32> to vector<256x512xbf16>
    %c0_6 = arith.constant 0 : index
    %c0_7 = arith.constant 0 : index
    %9 = vector.load %arg4[%c0_6, %c0_7] : memref<512x128xbf16, #tpu.memory_space<vmem>>, vector<512x128xbf16>
    %cst_8 = arith.constant dense<0.000000e+00> : vector<256x128xf32>
    %10 = tpu.matmul %8, %9, %cst_8 {dimension_numbers = #tpu.dot_dimension_numbers<[1], [0], [0], [1], [0, 0, 1, 1], [], []>} : vector<256x512xbf16>, vector<512x128xbf16>, vector<256x128xf32> -> vector<256x128xf32>
    %c0_9 = arith.constant 0 : index
    %c0_10 = arith.constant 0 : index
    %11 = vector.load %arg5[%c0_9, %c0_10] : memref<1x128xf32, #tpu.memory_space<vmem>>, vector<1x128xf32>
    %12 = vector.broadcast %11 : vector<1x128xf32> to vector<256x128xf32>
    %13 = arith.addf %10, %12 : vector<256x128xf32>
    %14 = arith.truncf %13 : vector<256x128xf32> to vector<256x128xbf16>
    %c0_11 = arith.constant 0 : index
    %c0_12 = arith.constant 0 : index
    %15 = vector.load %arg6[%c0_11, %c0_12] : memref<128x128xbf16, #tpu.memory_space<vmem>>, vector<128x128xbf16>
    %cst_13 = arith.constant dense<0.000000e+00> : vector<256x128xf32>
    %16 = tpu.matmul %14, %15, %cst_13 {dimension_numbers = #tpu.dot_dimension_numbers<[1], [0], [0], [1], [0, 0, 1, 1], [], []>} : vector<256x128xbf16>, vector<128x128xbf16>, vector<256x128xf32> -> vector<256x128xf32>
    %c0_14 = arith.constant 0 : index
    %c0_15 = arith.constant 0 : index
    %17 = vector.load %arg7[%c0_14, %c0_15] : memref<1x128xf32, #tpu.memory_space<vmem>>, vector<1x128xf32>
    %18 = vector.broadcast %17 : vector<1x128xf32> to vector<256x128xf32>
    %19 = arith.addf %16, %18 : vector<256x128xf32>
    %c0_16 = arith.constant 0 : index
    %c0_17 = arith.constant 0 : index
    %20 = vector.load %arg8[%c0_16, %c0_17] : memref<128x128xbf16, #tpu.memory_space<vmem>>, vector<128x128xbf16>
    %cst_18 = arith.constant dense<0.000000e+00> : vector<256x128xf32>
    %21 = tpu.matmul %14, %20, %cst_18 {dimension_numbers = #tpu.dot_dimension_numbers<[1], [0], [0], [1], [0, 0, 1, 1], [], []>} : vector<256x128xbf16>, vector<128x128xbf16>, vector<256x128xf32> -> vector<256x128xf32>
    %c0_19 = arith.constant 0 : index
    %c0_20 = arith.constant 0 : index
    %22 = vector.load %arg9[%c0_19, %c0_20] : memref<1x128xf32, #tpu.memory_space<vmem>>, vector<1x128xf32>
    %23 = vector.broadcast %22 : vector<1x128xf32> to vector<256x128xf32>
    %24 = arith.addf %21, %23 : vector<256x128xf32>
    %cst_21 = arith.constant 5.000000e-01 : f32
    %25 = vector.broadcast %cst_21 : f32 to vector<256x128xf32>
    %26 = arith.mulf %24, %25 : vector<256x128xf32>
    %27 = math.exp %26 : vector<256x128xf32>
    %c0_22 = arith.constant 0 : index
    %c0_23 = arith.constant 0 : index
    %28 = vector.load %arg10[%c0_22, %c0_23] : memref<256x128xf32, #tpu.memory_space<vmem>>, vector<256x128xf32>
    %29 = arith.mulf %27, %28 : vector<256x128xf32>
    %30 = arith.addf %19, %29 : vector<256x128xf32>
    %c0_24 = arith.constant 0 : index
    %c0_25 = arith.constant 0 : index
    %31 = vector.load %arg11[%c0_24, %c0_25] : memref<256x128xf32, #tpu.memory_space<vmem>>, vector<256x128xf32>
    tpu.vector_store %arg11[%c0_24, %c0_25], %30 {strides = array<i32>} : memref<256x128xf32, #tpu.memory_space<vmem>>, vector<256x128xf32>,
    %c0_26 = arith.constant 0 : index
    %c0_27 = arith.constant 0 : index
    %32 = vector.load %arg12[%c0_26, %c0_27] : memref<256x128xf32, #tpu.memory_space<vmem>>, vector<256x128xf32>
    tpu.vector_store %arg12[%c0_26, %c0_27], %19 {strides = array<i32>} : memref<256x128xf32, #tpu.memory_space<vmem>>, vector<256x128xf32>,
    %c0_28 = arith.constant 0 : index
    %c0_29 = arith.constant 0 : index
    %33 = vector.load %arg13[%c0_28, %c0_29] : memref<256x128xf32, #tpu.memory_space<vmem>>, vector<256x128xf32>
    tpu.vector_store %arg13[%c0_28, %c0_29], %24 {strides = array<i32>} : memref<256x128xf32, #tpu.memory_space<vmem>>, vector<256x128xf32>,
    return
  }
  func.func @transform_0(%arg0: i32) -> (i32, i32) {
    %c0_i32 = arith.constant 0 : i32
    %c0_i32_0 = arith.constant 0 : i32
    return %arg0, %c0_i32 : i32, i32
  }
  func.func @transform_1(%arg0: i32) -> (i32, i32) {
    %c0_i32 = arith.constant 0 : i32
    %c0_i32_0 = arith.constant 0 : i32
    %c0_i32_1 = arith.constant 0 : i32
    return %c0_i32, %c0_i32_0 : i32, i32
  }
  func.func @transform_2(%arg0: i32) -> (i32, i32) {
    %c0_i32 = arith.constant 0 : i32
    %c0_i32_0 = arith.constant 0 : i32
    %c0_i32_1 = arith.constant 0 : i32
    return %c0_i32, %c0_i32_0 : i32, i32
  }
  func.func @transform_3(%arg0: i32) -> (i32, i32) {
    %c0_i32 = arith.constant 0 : i32
    %c0_i32_0 = arith.constant 0 : i32
    %c0_i32_1 = arith.constant 0 : i32
    return %c0_i32, %c0_i32_0 : i32, i32
  }
  func.func @transform_4(%arg0: i32) -> (i32, i32) {
    %c0_i32 = arith.constant 0 : i32
    %c0_i32_0 = arith.constant 0 : i32
    %c0_i32_1 = arith.constant 0 : i32
    return %c0_i32, %c0_i32_0 : i32, i32
  }
  func.func @transform_5(%arg0: i32) -> (i32, i32) {
    %c0_i32 = arith.constant 0 : i32
    %c0_i32_0 = arith.constant 0 : i32
    %c0_i32_1 = arith.constant 0 : i32
    return %c0_i32, %c0_i32_0 : i32, i32
  }
  func.func @transform_6(%arg0: i32) -> (i32, i32) {
    %c0_i32 = arith.constant 0 : i32
    %c0_i32_0 = arith.constant 0 : i32
    %c0_i32_1 = arith.constant 0 : i32
    return %c0_i32, %c0_i32_0 : i32, i32
  }
  func.func @transform_7(%arg0: i32) -> (i32, i32) {
    %c0_i32 = arith.constant 0 : i32
    %c0_i32_0 = arith.constant 0 : i32
    %c0_i32_1 = arith.constant 0 : i32
    return %c0_i32, %c0_i32_0 : i32, i32
  }
  func.func @transform_8(%arg0: i32) -> (i32, i32) {
    %c0_i32 = arith.constant 0 : i32
    %c0_i32_0 = arith.constant 0 : i32
    %c0_i32_1 = arith.constant 0 : i32
    return %c0_i32, %c0_i32_0 : i32, i32
  }
  func.func @transform_9(%arg0: i32) -> (i32, i32) {
    %c0_i32 = arith.constant 0 : i32
    %c0_i32_0 = arith.constant 0 : i32
    return %arg0, %c0_i32 : i32, i32
  }
  func.func @transform_10(%arg0: i32) -> (i32, i32) {
    %c0_i32 = arith.constant 0 : i32
    %c0_i32_0 = arith.constant 0 : i32
    return %arg0, %c0_i32 : i32, i32
  }
  func.func @transform_11(%arg0: i32) -> (i32, i32) {
    %c0_i32 = arith.constant 0 : i32
    %c0_i32_0 = arith.constant 0 : i32
    return %arg0, %c0_i32 : i32, i32
  }
  func.func @transform_12(%arg0: i32) -> (i32, i32) {
    %c0_i32 = arith.constant 0 : i32
    %c0_i32_0 = arith.constant 0 : i32
    return %arg0, %c0_i32 : i32, i32
  }
}

</mosaic_0001>

<llo_original>
// kernel: tpu_custom_call.1
$region0: #{tpu_custom_call.1}
  #allocation0 [shape = 'u32[]', space=smem, size = 0x4, offset = 0x4, fixed_abs, tag = 'smem constant byte address 0x4 - core index']
  #allocation1 [shape = 'u32[72,128]{1,0:T(1,128)}', space=vmem, size = 0x9000, scoped, tag = 'internal scratch']
  %s0 = inlined_call_operand.hbm [shape: bf16[512,896], index: 0, kind: input, shape index: {}]
  %s1 = inlined_call_operand.hbm [shape: bf16[896,512], index: 1, kind: input, shape index: {}]
  %s2 = inlined_call_operand.hbm [shape: f32[1,512], index: 2, kind: input, shape index: {}]
  %s3 = inlined_call_operand.hbm [shape: bf16[512,128], index: 3, kind: input, shape index: {}]
  %s4 = inlined_call_operand.vmem [shape: f32[1,128], index: 4, kind: input, shape index: {}]
  %s5 = inlined_call_operand.hbm [shape: bf16[128,128], index: 5, kind: input, shape index: {}]
  %s6 = inlined_call_operand.vmem [shape: f32[1,128], index: 6, kind: input, shape index: {}]
  %s7 = inlined_call_operand.hbm [shape: bf16[128,128], index: 7, kind: input, shape index: {}]
  %s8 = inlined_call_operand.vmem [shape: f32[1,128], index: 8, kind: input, shape index: {}]
  %s9 = inlined_call_operand.hbm [shape: f32[512,128], index: 9, kind: input, shape index: {}]
  %s10 = inlined_call_operand.hbm [shape: f32[512,128], index: 10, kind: output, shape index: {0}]
  %s11 = inlined_call_operand.hbm [shape: f32[512,128], index: 11, kind: output, shape index: {1}]
  %s12 = inlined_call_operand.hbm [shape: f32[512,128], index: 12, kind: output, shape index: {2}]
  %13 = xla_tuple %s10, %s11, %s12
  %s14 = sld [smem:[#allocation0]]
  $region117: #{tpu_custom_call.1} parent=0
    _
  %s16 = ssub.s32 1, %s14
  %s17 = scalar_select 0, %s16, %s14
  $region1: #{tpu_custom_call.1} parent=0
    #allocation2 [shape = 'u8[917504]{0}', space=vmem, size = 0xe0000, scoped, tag = 'input window, operand 0']
    #allocation3 [shape = 's32[2]{0}', space=sflag, size = 0x8, scoped, tag = 'scoped memory for tpu_custom_call.1']
    #allocation4 [shape = 's32[2]{0}', space=sflag, size = 0x8, scoped, tag = 'scoped memory for tpu_custom_call.1']
    #allocation5 [shape = 'u8[917504]{0}', space=vmem, size = 0xe0000, scoped, tag = 'input window, operand 1, single buffered']
    #allocation6 [shape = 's32[1]{0}', space=sflag, size = 0x4, scoped, tag = 'scoped memory for tpu_custom_call.1']
    #allocation7 [shape = 'u8[2048]{0}', space=vmem, size = 0x800, scoped, tag = 'input window, operand 2, single buffered']
    #allocation8 [shape = 'u8[131072]{0}', space=vmem, size = 0x20000, scoped, tag = 'input window, operand 3, single buffered']
    #allocation9 [shape = 's32[1]{0}', space=sflag, size = 0x4, scoped, tag = 'scoped memory for tpu_custom_call.1']
    #allocation10 [shape = 'u8[32768]{0}', space=vmem, size = 0x8000, scoped, tag = 'input window, operand 5, single buffered']
    #allocation11 [shape = 'u8[32768]{0}', space=vmem, size = 0x8000, scoped, tag = 'input window, operand 7, single buffered']
    #allocation12 [shape = 's32[1]{0}', space=sflag, size = 0x4, scoped, tag = 'scoped memory for tpu_custom_call.1']
    #allocation13 [shape = 'u8[262144]{0}', space=vmem, size = 0x40000, scoped, tag = 'input window, operand 9']
    #allocation14 [shape = 'u8[262144]{0}', space=vmem, size = 0x40000, scoped, tag = 'output window, operand 0']
    #allocation15 [shape = 'u8[262144]{0}', space=vmem, size = 0x40000, scoped, tag = 'output window, operand 1']
    #allocation16 [shape = 's32[2]{0}', space=sflag, size = 0x8, scoped, tag = 'scoped memory for tpu_custom_call.1']
    #allocation17 [shape = 'u8[262144]{0}', space=vmem, size = 0x40000, scoped, tag = 'output window, operand 2']
    %18 = vsyncpa [#allocation3], 0
    %s19 = scalar_lea.sflag [#allocation3], 1
    %20 = vsyncpa %s19, 0
    %21 = vsyncpa [#allocation6], 0
    %22 = vsyncpa [#allocation9], 0
    %23 = vsyncpa [#allocation12], 0
    %24 = vsyncpa [#allocation4], 0
    %s25 = scalar_lea.sflag [#allocation4], 1
    %26 = vsyncpa %s25, 0
    %27 = vsyncpa [#allocation16], 0
    %s28 = scalar_lea.sflag [#allocation16], 1
    %29 = vsyncpa %s28, 0
    loop: start=0, step=1, limit=4
    $region2: #{tpu_custom_call.1} parent=1 // loop_pre_header
      _
    $region3: #{tpu_custom_call.1} parent=1 // loop_header
      %s31 = sphi 0, %s35
      %p32 = scmp.ge.s32.totalorder %s31, 4
      %s41 = sphi 0, %s43
      %s44 = sphi 0, %s41
      %s45 = sphi 0, %s44
      %s61 = sphi 0, %s45
      %s65 = sphi 0, %s65
      %s67 = sphi 0, %s65
      %s68 = sphi 0, %s67
      %s82 = sphi 0, %s68
      %s86 = sphi 0, %s86
      %s88 = sphi 0, %s86
      %s89 = sphi 0, %s88
      %s103 = sphi 0, %s89
      %s107 = sphi 0, %s107
      %s109 = sphi 0, %s107
      %s110 = sphi 0, %s109
      %s124 = sphi 0, %s110
      %s128 = sphi 0, %s128
      %s130 = sphi 0, %s128
      %s131 = sphi 0, %s130
      %s145 = sphi 0, %s131
      %s149 = sphi 0, %s149
      %s151 = sphi 0, %s149
      %s152 = sphi 0, %s151
      %s166 = sphi 0, %s152
      %s170 = sphi 0, %s170
      %s172 = sphi 0, %s170
      %s173 = sphi 0, %s172
      %s187 = sphi 0, %s173
      %s191 = sphi 0, %s191
      %s193 = sphi 0, %s191
      %s194 = sphi 0, %s193
      %s208 = sphi 0, %s194
      %s212 = sphi 0, %s212
      %s214 = sphi 0, %s212
      %s215 = sphi 0, %s214
      %s229 = sphi 0, %s215
      %s235 = sphi 0, %s237
      %s238 = sphi 0, %s235
      %s239 = sphi 0, %s238
      %s255 = sphi 0, %s239
      %s261 = sphi 0, %s263
      %s264 = sphi 0, %s261
      %s265 = sphi 0, %s264
      %s281 = sphi 0, %s265
      %s287 = sphi 0, %s289
      %s290 = sphi 0, %s287
      %s291 = sphi 0, %s290
      %s307 = sphi 0, %s291
      %s313 = sphi 0, %s315
      %s316 = sphi 0, %s313
      %s317 = sphi 0, %s316
      %s333 = sphi 0, %s317
    $region4: #{tpu_custom_call.1} parent=1 // loop_header_branch
      %34 = sbr.rel (%p32) target = $region8
    $region5: #{tpu_custom_call.1} parent=1 // loop_body
      %s36 = ssub.s32 %s31, 1
      %s37 = ssub.s32 %s31, 2
      %s38 = sadd.s32 %s31, 1
      %s39 = ssub.s32 %s31, %s38
      %p40 = scmp.eq.s32.totalorder %s39, 0
      %s42 = sadd.s32 %s41, 1
      %s43 = scalar_select %p40, %s41, %s42
      %p46 = pneg %p40
      %p47 = scmp.eq.s32.totalorder %s31, 1
      %p48 = por %p46, %p47
      %p49 = scmp.ne.s32.totalorder %s41, %s44
      %p50 = scmp.eq.s32.totalorder %s31, 0
      %p51 = por %p49, %p50
      %p52 = scmp.ne.s32.totalorder %s41, %s44
      %p53 = scmp.eq.s32.totalorder %s36, 1
      %p54 = por %p52, %p53
      %p55 = scmp.ne.s32.totalorder %s44, %s45
      %p56 = scmp.eq.s32.totalorder %s36, 0
      %p57 = por %p55, %p56
      %p58 = scmp.ne.s32.totalorder %s44, %s45
      %p59 = scmp.eq.s32.totalorder %s37, 1
      %p60 = por %p58, %p59
      %p62 = scmp.ne.s32.totalorder %s45, %s61
      %p63 = scmp.eq.s32.totalorder %s37, 0
      %p64 = por %p62, %p63
      %s66 = sadd.s32 %s65, 1
      %p69 = scmp.eq.s32.totalorder %s31, 1
      %p70 = scmp.ne.s32.totalorder %s65, %s67
      %p71 = scmp.eq.s32.totalorder %s31, 0
      %p72 = por %p70, %p71
      %p73 = scmp.ne.s32.totalorder %s65, %s67
      %p74 = scmp.eq.s32.totalorder %s36, 1
      %p75 = por %p73, %p74
      %p76 = scmp.ne.s32.totalorder %s67, %s68
      %p77 = scmp.eq.s32.totalorder %s36, 0
      %p78 = por %p76, %p77
      %p79 = scmp.ne.s32.totalorder %s67, %s68
      %p80 = scmp.eq.s32.totalorder %s37, 1
      %p81 = por %p79, %p80
      %p83 = scmp.ne.s32.totalorder %s68, %s82
      %p84 = scmp.eq.s32.totalorder %s37, 0
      %p85 = por %p83, %p84
      %s87 = sadd.s32 %s86, 1
      %p90 = scmp.eq.s32.totalorder %s31, 1
      %p91 = scmp.ne.s32.totalorder %s86, %s88
      %p92 = scmp.eq.s32.totalorder %s31, 0
      %p93 = por %p91, %p92
      %p94 = scmp.ne.s32.totalorder %s86, %s88
      %p95 = scmp.eq.s32.totalorder %s36, 1
      %p96 = por %p94, %p95
      %p97 = scmp.ne.s32.totalorder %s88, %s89
      %p98 = scmp.eq.s32.totalorder %s36, 0
      %p99 = por %p97, %p98
      %p100 = scmp.ne.s32.totalorder %s88, %s89
      %p101 = scmp.eq.s32.totalorder %s37, 1
      %p102 = por %p100, %p101
      %p104 = scmp.ne.s32.totalorder %s89, %s103
      %p105 = scmp.eq.s32.totalorder %s37, 0
      %p106 = por %p104, %p105
      %s108 = sadd.s32 %s107, 1
      %p111 = scmp.eq.s32.totalorder %s31, 1
      %p112 = scmp.ne.s32.totalorder %s107, %s109
      %p113 = scmp.eq.s32.totalorder %s31, 0
      %p114 = por %p112, %p113
      %p115 = scmp.ne.s32.totalorder %s107, %s109
      %p116 = scmp.eq.s32.totalorder %s36, 1
      %p117 = por %p115, %p116
      %p118 = scmp.ne.s32.totalorder %s109, %s110
      %p119 = scmp.eq.s32.totalorder %s36, 0
      %p120 = por %p118, %p119
      %p121 = scmp.ne.s32.totalorder %s109, %s110
      %p122 = scmp.eq.s32.totalorder %s37, 1
      %p123 = por %p121, %p122
      %p125 = scmp.ne.s32.totalorder %s110, %s124
      %p126 = scmp.eq.s32.totalorder %s37, 0
      %p127 = por %p125, %p126
      %s129 = sadd.s32 %s128, 1
      %p132 = scmp.eq.s32.totalorder %s31, 1
      %p133 = scmp.ne.s32.totalorder %s128, %s130
      %p134 = scmp.eq.s32.totalorder %s31, 0
      %p135 = por %p133, %p134
      %p136 = scmp.ne.s32.totalorder %s128, %s130
      %p137 = scmp.eq.s32.totalorder %s36, 1
      %p138 = por %p136, %p137
      %p139 = scmp.ne.s32.totalorder %s130, %s131
      %p140 = scmp.eq.s32.totalorder %s36, 0
      %p141 = por %p139, %p140
      %p142 = scmp.ne.s32.totalorder %s130, %s131
      %p143 = scmp.eq.s32.totalorder %s37, 1
      %p144 = por %p142, %p143
      %p146 = scmp.ne.s32.totalorder %s131, %s145
      %p147 = scmp.eq.s32.totalorder %s37, 0
      %p148 = por %p146, %p147
      %s150 = sadd.s32 %s149, 1
      %p153 = scmp.eq.s32.totalorder %s31, 1
      %p154 = scmp.ne.s32.totalorder %s149, %s151
      %p155 = scmp.eq.s32.totalorder %s31, 0
      %p156 = por %p154, %p155
      %p157 = scmp.ne.s32.totalorder %s149, %s151
      %p158 = scmp.eq.s32.totalorder %s36, 1
      %p159 = por %p157, %p158
      %p160 = scmp.ne.s32.totalorder %s151, %s152
      %p161 = scmp.eq.s32.totalorder %s36, 0
      %p162 = por %p160, %p161
      %p163 = scmp.ne.s32.totalorder %s151, %s152
      %p164 = scmp.eq.s32.totalorder %s37, 1
      %p165 = por %p163, %p164
      %p167 = scmp.ne.s32.totalorder %s152, %s166
      %p168 = scmp.eq.s32.totalorder %s37, 0
      %p169 = por %p167, %p168
      %s171 = sadd.s32 %s170, 1
      %p174 = scmp.eq.s32.totalorder %s31, 1
      %p175 = scmp.ne.s32.totalorder %s170, %s172
      %p176 = scmp.eq.s32.totalorder %s31, 0
      %p177 = por %p175, %p176
      %p178 = scmp.ne.s32.totalorder %s170, %s172
      %p179 = scmp.eq.s32.totalorder %s36, 1
      %p180 = por %p178, %p179
      %p181 = scmp.ne.s32.totalorder %s172, %s173
      %p182 = scmp.eq.s32.totalorder %s36, 0
      %p183 = por %p181, %p182
      %p184 = scmp.ne.s32.totalorder %s172, %s173
      %p185 = scmp.eq.s32.totalorder %s37, 1
      %p186 = por %p184, %p185
      %p188 = scmp.ne.s32.totalorder %s173, %s187
      %p189 = scmp.eq.s32.totalorder %s37, 0
      %p190 = por %p188, %p189
      %s192 = sadd.s32 %s191, 1
      %p195 = scmp.eq.s32.totalorder %s31, 1
      %p196 = scmp.ne.s32.totalorder %s191, %s193
      %p197 = scmp.eq.s32.totalorder %s31, 0
      %p198 = por %p196, %p197
      %p199 = scmp.ne.s32.totalorder %s191, %s193
      %p200 = scmp.eq.s32.totalorder %s36, 1
      %p201 = por %p199, %p200
      %p202 = scmp.ne.s32.totalorder %s193, %s194
      %p203 = scmp.eq.s32.totalorder %s36, 0
      %p204 = por %p202, %p203
      %p205 = scmp.ne.s32.totalorder %s193, %s194
      %p206 = scmp.eq.s32.totalorder %s37, 1
      %p207 = por %p205, %p206
      %p209 = scmp.ne.s32.totalorder %s194, %s208
      %p210 = scmp.eq.s32.totalorder %s37, 0
      %p211 = por %p209, %p210
      %s213 = sadd.s32 %s212, 1
      %p216 = scmp.eq.s32.totalorder %s31, 1
      %p217 = scmp.ne.s32.totalorder %s212, %s214
      %p218 = scmp.eq.s32.totalorder %s31, 0
      %p219 = por %p217, %p218
      %p220 = scmp.ne.s32.totalorder %s212, %s214
      %p221 = scmp.eq.s32.totalorder %s36, 1
      %p222 = por %p220, %p221
      %p223 = scmp.ne.s32.totalorder %s214, %s215
      %p224 = scmp.eq.s32.totalorder %s36, 0
      %p225 = por %p223, %p224
      %p226 = scmp.ne.s32.totalorder %s214, %s215
      %p227 = scmp.eq.s32.totalorder %s37, 1
      %p228 = por %p226, %p227
      %p230 = scmp.ne.s32.totalorder %s215, %s229
      %p231 = scmp.eq.s32.totalorder %s37, 0
      %p232 = por %p230, %p231
      %s233 = ssub.s32 %s31, %s38
      %p234 = scmp.eq.s32.totalorder %s233, 0
      %s236 = sadd.s32 %s235, 1
      %s237 = scalar_select %p234, %s235, %s236
      %p240 = pneg %p234
      %p241 = scmp.eq.s32.totalorder %s31, 1
      %p242 = por %p240, %p241
      %p243 = scmp.ne.s32.totalorder %s235, %s238
      %p244 = scmp.eq.s32.totalorder %s31, 0
      %p245 = por %p243, %p244
      %p246 = scmp.ne.s32.totalorder %s235, %s238
      %p247 = scmp.eq.s32.totalorder %s36, 1
      %p248 = por %p246, %p247
      %p249 = scmp.ne.s32.totalorder %s238, %s239
      %p250 = scmp.eq.s32.totalorder %s36, 0
      %p251 = por %p249, %p250
      %p252 = scmp.ne.s32.totalorder %s238, %s239
      %p253 = scmp.eq.s32.totalorder %s37, 1
      %p254 = por %p252, %p253
      %p256 = scmp.ne.s32.totalorder %s239, %s255
      %p257 = scmp.eq.s32.totalorder %s37, 0
      %p258 = por %p256, %p257
      %s259 = ssub.s32 %s31, %s38
      %p260 = scmp.eq.s32.totalorder %s259, 0
      %s262 = sadd.s32 %s261, 1
      %s263 = scalar_select %p260, %s261, %s262
      %p266 = pneg %p260
      %p267 = scmp.eq.s32.totalorder %s31, 1
      %p268 = por %p266, %p267
      %p269 = scmp.ne.s32.totalorder %s261, %s264
      %p270 = scmp.eq.s32.totalorder %s31, 0
      %p271 = por %p269, %p270
      %p272 = scmp.ne.s32.totalorder %s261, %s264
      %p273 = scmp.eq.s32.totalorder %s36, 1
      %p274 = por %p272, %p273
      %p275 = scmp.ne.s32.totalorder %s264, %s265
      %p276 = scmp.eq.s32.totalorder %s36, 0
      %p277 = por %p275, %p276
      %p278 = scmp.ne.s32.totalorder %s264, %s265
      %p279 = scmp.eq.s32.totalorder %s37, 1
      %p280 = por %p278, %p279
      %p282 = scmp.ne.s32.totalorder %s265, %s281
      %p283 = scmp.eq.s32.totalorder %s37, 0
      %p284 = por %p282, %p283
      %s285 = ssub.s32 %s31, %s38
      %p286 = scmp.eq.s32.totalorder %s285, 0
      %s288 = sadd.s32 %s287, 1
      %s289 = scalar_select %p286, %s287, %s288
      %p292 = pneg %p286
      %p293 = scmp.eq.s32.totalorder %s31, 1
      %p294 = por %p292, %p293
      %p295 = scmp.ne.s32.totalorder %s287, %s290
      %p296 = scmp.eq.s32.totalorder %s31, 0
      %p297 = por %p295, %p296
      %p298 = scmp.ne.s32.totalorder %s287, %s290
      %p299 = scmp.eq.s32.totalorder %s36, 1
      %p300 = por %p298, %p299
      %p301 = scmp.ne.s32.totalorder %s290, %s291
      %p302 = scmp.eq.s32.totalorder %s36, 0
      %p303 = por %p301, %p302
      %p304 = scmp.ne.s32.totalorder %s290, %s291
      %p305 = scmp.eq.s32.totalorder %s37, 1
      %p306 = por %p304, %p305
      %p308 = scmp.ne.s32.totalorder %s291, %s307
      %p309 = scmp.eq.s32.totalorder %s37, 0
      %p310 = por %p308, %p309
      %s311 = ssub.s32 %s31, %s38
      %p312 = scmp.eq.s32.totalorder %s311, 0
      %s314 = sadd.s32 %s313, 1
      %s315 = scalar_select %p312, %s313, %s314
      %p318 = pneg %p312
      %p319 = scmp.eq.s32.totalorder %s31, 1
      %p320 = por %p318, %p319
      %p321 = scmp.ne.s32.totalorder %s313, %s316
      %p322 = scmp.eq.s32.totalorder %s31, 0
      %p323 = por %p321, %p322
      %p324 = scmp.ne.s32.totalorder %s313, %s316
      %p325 = scmp.eq.s32.totalorder %s36, 1
      %p326 = por %p324, %p325
      %p327 = scmp.ne.s32.totalorder %s316, %s317
      %p328 = scmp.eq.s32.totalorder %s36, 0
      %p329 = por %p327, %p328
      %p330 = scmp.ne.s32.totalorder %s316, %s317
      %p331 = scmp.eq.s32.totalorder %s37, 1
      %p332 = por %p330, %p331
      %p334 = scmp.ne.s32.totalorder %s317, %s333
      %p335 = scmp.eq.s32.totalorder %s37, 0
      %p336 = por %p334, %p335
      %p337 = scmp.le.s32.totalorder 1, %s31
      %p338 = scmp.lt.s32.totalorder %s31, 3
      %p339 = pnand %p337, %p338
      %p340 = pneg %p339
      // Predicated region
      $region9: #{tpu_custom_call.1} parent=5 // pred_check
        _
      $region10: #{tpu_custom_call.1} parent=5 // pred_check_branch
        %342 = sbr.rel (%p339) target = $region12
      $region11: #{tpu_custom_call.1} parent=5 // pred_region
        %s343 = ssub.s32 %s31, 1
        // Predicated region
        $region13: #{tpu_custom_call.1} parent=11 // pred_check
          %p344 = pneg %p78
        $region14: #{tpu_custom_call.1} parent=11 // pred_check_branch
          %346 = sbr.rel (%p344) target = $region16
        $region15: #{tpu_custom_call.1} parent=11 // pred_region
          %348 = vsyncadd [#allocation6], 0
          %s349 = sshll.u32 %s1, 4
          %s350 = int_to_ptr.hbm [resolvable:$true] %s349
          %s351 = sshll.u32 [#allocation5], 4
          %s352 = int_to_ptr.vmem [resolvable:$true] %s351
          %357 = dma.hbm_to_vmem [thread:$0]  %s350, 28672, %s352, [#allocation6], 256, 256, 16
        $region16: #{tpu_custom_call.1} parent=11 // pred_fallthru
          _
        // Predicated region
        $region17: #{tpu_custom_call.1} parent=11 // pred_check
          %p358 = pneg %p99
        $region18: #{tpu_custom_call.1} parent=11 // pred_check_branch
          %360 = sbr.rel (%p358) target = $region20
        $region19: #{tpu_custom_call.1} parent=11 // pred_region
          %362 = vsyncadd [#allocation6], 0
          %s364 = sshll.u32 %s2, 4
          %s365 = int_to_ptr.hbm [resolvable:$true] %s364
          %s366 = sshll.u32 [#allocation7], 4
          %s367 = int_to_ptr.vmem [resolvable:$true] %s366
          %369 = dma.hbm_to_vmem [thread:$0]  %s365, 64, %s367, [#allocation6]
        $region20: #{tpu_custom_call.1} parent=11 // pred_fallthru
          _
        // Predicated region
        $region21: #{tpu_custom_call.1} parent=11 // pred_check
          %p370 = pneg %p120
        $region22: #{tpu_custom_call.1} parent=11 // pred_check_branch
          %372 = sbr.rel (%p370) target = $region24
        $region23: #{tpu_custom_call.1} parent=11 // pred_region
          %374 = vsyncadd [#allocation9], 0
          %s375 = sshll.u32 %s3, 4
          %s376 = int_to_ptr.hbm [resolvable:$true] %s375
          %s377 = sshll.u32 [#allocation8], 4
          %s378 = int_to_ptr.vmem [resolvable:$true] %s377
          %383 = dma.hbm_to_vmem [thread:$0]  %s376, 4096, %s378, [#allocation9], 64, 64, 4
        $region24: #{tpu_custom_call.1} parent=11 // pred_fallthru
          _
        // Predicated region
        $region25: #{tpu_custom_call.1} parent=11 // pred_check
          %p384 = pneg %p141
        $region26: #{tpu_custom_call.1} parent=11 // pred_check_branch
          %386 = sbr.rel (%p384) target = $region28
        $region27: #{tpu_custom_call.1} parent=11 // pred_region
          _
        $region28: #{tpu_custom_call.1} parent=11 // pred_fallthru
          _
        // Predicated region
        $region29: #{tpu_custom_call.1} parent=11 // pred_check
          %p387 = pneg %p162
        $region30: #{tpu_custom_call.1} parent=11 // pred_check_branch
          %389 = sbr.rel (%p387) target = $region32
        $region31: #{tpu_custom_call.1} parent=11 // pred_region
          %391 = vsyncadd [#allocation9], 0
          %s392 = sshll.u32 %s5, 4
          %s393 = int_to_ptr.hbm [resolvable:$true] %s392
          %s394 = sshll.u32 [#allocation10], 4
          %s395 = int_to_ptr.vmem [resolvable:$true] %s394
          %400 = dma.hbm_to_vmem [thread:$0]  %s393, 1024, %s395, [#allocation9], 64, 64, 4
        $region32: #{tpu_custom_call.1} parent=11 // pred_fallthru
          _
        // Predicated region
        $region33: #{tpu_custom_call.1} parent=11 // pred_check
          %p401 = pneg %p183
        $region34: #{tpu_custom_call.1} parent=11 // pred_check_branch
          %403 = sbr.rel (%p401) target = $region36
        $region35: #{tpu_custom_call.1} parent=11 // pred_region
          _
        $region36: #{tpu_custom_call.1} parent=11 // pred_fallthru
          _
        // Predicated region
        $region37: #{tpu_custom_call.1} parent=11 // pred_check
          %p404 = pneg %p204
        $region38: #{tpu_custom_call.1} parent=11 // pred_check_branch
          %406 = sbr.rel (%p404) target = $region40
        $region39: #{tpu_custom_call.1} parent=11 // pred_region
          %408 = vsyncadd [#allocation12], 0
          %s409 = sshll.u32 %s7, 4
          %s410 = int_to_ptr.hbm [resolvable:$true] %s409
          %s411 = sshll.u32 [#allocation11], 4
          %s412 = int_to_ptr.vmem [resolvable:$true] %s411
          %417 = dma.hbm_to_vmem [thread:$0]  %s410, 1024, %s412, [#allocation12], 64, 64, 4
        $region40: #{tpu_custom_call.1} parent=11 // pred_fallthru
          _
        // Predicated region
        $region41: #{tpu_custom_call.1} parent=11 // pred_check
          %p418 = pneg %p225
        $region42: #{tpu_custom_call.1} parent=11 // pred_check_branch
          %420 = sbr.rel (%p418) target = $region44
        $region43: #{tpu_custom_call.1} parent=11 // pred_region
          _
        $region44: #{tpu_custom_call.1} parent=11 // pred_fallthru
          _
      $region12: #{tpu_custom_call.1} parent=5 // pred_fallthru
        _
      %p421 = scmp.lt.s32.totalorder %s31, 2
      // Predicated region
      $region45: #{tpu_custom_call.1} parent=5 // pred_check
        %p422 = pneg %p421
      $region46: #{tpu_custom_call.1} parent=5 // pred_check_branch
        %424 = sbr.rel (%p422) target = $region48
      $region47: #{tpu_custom_call.1} parent=5 // pred_region
        // Predicated region
        $region49: #{tpu_custom_call.1} parent=47 // pred_check
          %p425 = pneg %p51
        $region50: #{tpu_custom_call.1} parent=47 // pred_check_branch
          %427 = sbr.rel (%p425) target = $region52
        $region51: #{tpu_custom_call.1} parent=47 // pred_region
          %s428 = sand.u32 %s31, 1
          %s429 = scalar_lea.sflag [#allocation3], %s428
          %s430 = sand.u32 %s41, 1
          %s431 = smul.addr %s430, 896
          %s432 = scalar_lea.vmem [#allocation2], %s431
          %s433 = smul.u32 32, %s31
          %435 = vsyncadd %s429, 0
          %s436 = smul.addr %s433, 7
          %s437 = smul.addr %s436, 4
          %s438 = scalar_lea.hbm %s0, %s437
          %s439 = sshll.u32 %s438, 4
          %s440 = int_to_ptr.hbm [resolvable:$true] %s439
          %s441 = sshll.u32 %s432, 4
          %s442 = int_to_ptr.vmem [resolvable:$true] %s441
          %447 = dma.hbm_to_vmem [thread:$0]  %s440, 14336, %s442, %s429, 448, 448, 28
        $region52: #{tpu_custom_call.1} parent=47 // pred_fallthru
          _
        // Predicated region
        $region53: #{tpu_custom_call.1} parent=47 // pred_check
          %p448 = pneg %p245
        $region54: #{tpu_custom_call.1} parent=47 // pred_check_branch
          %450 = sbr.rel (%p448) target = $region56
        $region55: #{tpu_custom_call.1} parent=47 // pred_region
          %s451 = sand.u32 %s31, 1
          %s452 = scalar_lea.sflag [#allocation3], %s451
          %s453 = sand.u32 %s235, 1
          %s454 = smul.addr %s453, 256
          %s455 = scalar_lea.vmem [#allocation13], %s454
          %s456 = smul.u32 32, %s31
          %458 = vsyncadd %s452, 0
          %s459 = smul.addr %s456, 8
          %s460 = scalar_lea.hbm %s9, %s459
          %s461 = sshll.u32 %s460, 4
          %s462 = int_to_ptr.hbm [resolvable:$true] %s461
          %s463 = sshll.u32 %s455, 4
          %s464 = int_to_ptr.vmem [resolvable:$true] %s463
          %469 = dma.hbm_to_vmem [thread:$0]  %s462, 4096, %s464, %s452, 128, 128, 8
        $region56: #{tpu_custom_call.1} parent=47 // pred_fallthru
          _
      $region48: #{tpu_custom_call.1} parent=5 // pred_fallthru
        _
      %p470 = scmp.le.s32.totalorder 1, %s31
      %p471 = scmp.lt.s32.totalorder %s31, 3
      %p472 = pnand %p470, %p471
      %p473 = pneg %p472
      // Predicated region
      $region57: #{tpu_custom_call.1} parent=5 // pred_check
        _
      $region58: #{tpu_custom_call.1} parent=5 // pred_check_branch
        %475 = sbr.rel (%p472) target = $region60
      $region59: #{tpu_custom_call.1} parent=5 // pred_region
        %s476 = ssub.s32 %s31, 1
        %s477 = sand.u32 %s36, 1
        %s478 = scalar_lea.sflag [#allocation3], %s477
        %s479 = sand.u32 %s44, 1
        %s480 = smul.addr %s479, 896
        %s481 = scalar_lea.vmem [#allocation2], %s480
        // Predicated region
        $region61: #{tpu_custom_call.1} parent=59 // pred_check
          %p482 = pneg %p57
        $region62: #{tpu_custom_call.1} parent=59 // pred_check_branch
          %484 = sbr.rel (%p482) target = $region64
        $region63: #{tpu_custom_call.1} parent=59 // pred_region
          %486 = dma.done %s478, 14336
        $region64: #{tpu_custom_call.1} parent=59 // pred_fallthru
          _
        // Predicated region
        $region65: #{tpu_custom_call.1} parent=59 // pred_check
          %p487 = pneg %p78
        $region66: #{tpu_custom_call.1} parent=59 // pred_check_branch
          %489 = sbr.rel (%p487) target = $region68
        $region67: #{tpu_custom_call.1} parent=59 // pred_region
          %491 = dma.done [#allocation6], 28672
        $region68: #{tpu_custom_call.1} parent=59 // pred_fallthru
          _
        // Predicated region
        $region69: #{tpu_custom_call.1} parent=59 // pred_check
          %p492 = pneg %p99
        $region70: #{tpu_custom_call.1} parent=59 // pred_check_branch
          %494 = sbr.rel (%p492) target = $region72
        $region71: #{tpu_custom_call.1} parent=59 // pred_region
          %496 = dma.done [#allocation6], 64
        $region72: #{tpu_custom_call.1} parent=59 // pred_fallthru
          _
        // Predicated region
        $region73: #{tpu_custom_call.1} parent=59 // pred_check
          %p497 = pneg %p120
        $region74: #{tpu_custom_call.1} parent=59 // pred_check_branch
          %499 = sbr.rel (%p497) target = $region76
        $region75: #{tpu_custom_call.1} parent=59 // pred_region
          %501 = dma.done [#allocation9], 4096
        $region76: #{tpu_custom_call.1} parent=59 // pred_fallthru
          _
        // Predicated region
        $region77: #{tpu_custom_call.1} parent=59 // pred_check
          %p502 = pneg %p162
        $region78: #{tpu_custom_call.1} parent=59 // pred_check_branch
          %504 = sbr.rel (%p502) target = $region80
        $region79: #{tpu_custom_call.1} parent=59 // pred_region
          %506 = dma.done [#allocation9], 1024
        $region80: #{tpu_custom_call.1} parent=59 // pred_fallthru
          _
        // Predicated region
        $region81: #{tpu_custom_call.1} parent=59 // pred_check
          %p507 = pneg %p204
        $region82: #{tpu_custom_call.1} parent=59 // pred_check_branch
          %509 = sbr.rel (%p507) target = $region84
        $region83: #{tpu_custom_call.1} parent=59 // pred_region
          %511 = dma.done [#allocation12], 1024
        $region84: #{tpu_custom_call.1} parent=59 // pred_fallthru
          _
        %s512 = sand.u32 %s36, 1
        %s513 = scalar_lea.sflag [#allocation3], %s512
        %s514 = sand.u32 %s238, 1
        %s515 = smul.addr %s514, 256
        %s516 = scalar_lea.vmem [#allocation13], %s515
        // Predicated region
        $region85: #{tpu_custom_call.1} parent=59 // pred_check
          %p517 = pneg %p251
        $region86: #{tpu_custom_call.1} parent=59 // pred_check_branch
          %519 = sbr.rel (%p517) target = $region88
        $region87: #{tpu_custom_call.1} parent=59 // pred_region
          %521 = dma.done %s513, 4096
        $region88: #{tpu_custom_call.1} parent=59 // pred_fallthru
          _
        %s522 = sand.u32 %s36, 1
        %s523 = scalar_lea.sflag [#allocation3], %s522
        %s524 = sand.u32 %s44, 1
        %s525 = smul.addr %s524, 896
        %s526 = scalar_lea.vmem [#allocation2], %s525
        %p527 = pneg %p57
        %p528 = pneg %p54
        %p529 = pneg %p78
        %p530 = pneg %p75
        %p531 = pneg %p99
        %p532 = pneg %p96
        %p533 = pneg %p120
        %p534 = pneg %p117
        %p535 = pneg %p141
        %p536 = pneg %p138
        %p537 = pneg %p162
        %p538 = pneg %p159
        %p539 = pneg %p183
        %p540 = pneg %p180
        %p541 = pneg %p204
        %p542 = pneg %p201
        %p543 = pneg %p225
        %p544 = pneg %p222
        %s545 = sand.u32 %s36, 1
        %s546 = scalar_lea.sflag [#allocation3], %s545
        %s547 = sand.u32 %s238, 1
        %s548 = smul.addr %s547, 256
        %s549 = scalar_lea.vmem [#allocation13], %s548
        %p550 = pneg %p251
        %p551 = pneg %p248
        %p552 = pneg %p277
        %p553 = pneg %p274
        %s554 = sand.u32 %s264, 1
        %s555 = scalar_lea.sflag [#allocation4], %s554
        %s556 = sand.u32 %s264, 1
        %s557 = smul.addr %s556, 256
        %s558 = scalar_lea.vmem [#allocation14], %s557
        %p559 = pneg %p303
        %p560 = pneg %p300
        %s561 = sand.u32 %s36, 1
        %s562 = scalar_lea.sflag [#allocation16], %s561
        %s563 = sand.u32 %s290, 1
        %s564 = smul.addr %s563, 256
        %s565 = scalar_lea.vmem [#allocation15], %s564
        %p566 = pneg %p329
        %p567 = pneg %p326
        %s568 = sand.u32 %s36, 1
        %s569 = scalar_lea.sflag [#allocation16], %s568
        %s570 = sand.u32 %s316, 1
        %s571 = smul.addr %s570, 256
        %s572 = scalar_lea.vmem [#allocation17], %s571
        %s573 = smul.u32 32, %s36
        %s574 = smul.u32 32, %s36
        %s575 = smul.u32 32, %s36
        %s576 = smul.u32 32, %s36
        %s577 = smul.u32 32, %s36
        %v578 = vld [vmem:[%s481] sm:$0xff]
        %v579 = vld [vmem:[%s481 + $0x8] sm:$0xff]
        %v580 = vld [vmem:[%s481 + $0x10] sm:$0xff]
        %v581 = vld [vmem:[%s481 + $0x18] sm:$0xf]
        %v582 = vld [vmem:[%s481 + $0x1c] sm:$0xff]
        %v583 = vld [vmem:[%s481 + $0x24] sm:$0xff]
        %v584 = vld [vmem:[%s481 + $0x2c] sm:$0xff]
        %v585 = vld [vmem:[%s481 + $0x34] sm:$0xf]
        %v586 = vld [vmem:[%s481 + $0x38] sm:$0xff]
        %v587 = vld [vmem:[%s481 + $0x40] sm:$0xff]
        %v588 = vld [vmem:[%s481 + $0x48] sm:$0xff]
        %v589 = vld [vmem:[%s481 + $0x50] sm:$0xf]
        %v590 = vld [vmem:[%s481 + $0x54] sm:$0xff]
        %v591 = vld [vmem:[%s481 + $0x5c] sm:$0xff]
        %v592 = vld [vmem:[%s481 + $0x64] sm:$0xff]
        %v593 = vld [vmem:[%s481 + $0x6c] sm:$0xf]
        %v594 = vld [vmem:[%s481 + $0x70] sm:$0xff]
        %v595 = vld [vmem:[%s481 + $0x78] sm:$0xff]
        %v596 = vld [vmem:[%s481 + $0x80] sm:$0xff]
        %v597 = vld [vmem:[%s481 + $0x88] sm:$0xf]
        %v598 = vld [vmem:[%s481 + $0x8c] sm:$0xff]
        %v599 = vld [vmem:[%s481 + $0x94] sm:$0xff]
        %v600 = vld [vmem:[%s481 + $0x9c] sm:$0xff]
        %v601 = vld [vmem:[%s481 + $0xa4] sm:$0xf]
        %v602 = vld [vmem:[%s481 + $0xa8] sm:$0xff]
        %v603 = vld [vmem:[%s481 + $0xb0] sm:$0xff]
        %v604 = vld [vmem:[%s481 + $0xb8] sm:$0xff]
        %v605 = vld [vmem:[%s481 + $0xc0] sm:$0xf]
        %v606 = vld [vmem:[%s481 + $0xc4] sm:$0xff]
        %v607 = vld [vmem:[%s481 + $0xcc] sm:$0xff]
        %v608 = vld [vmem:[%s481 + $0xd4] sm:$0xff]
        %v609 = vld [vmem:[%s481 + $0xdc] sm:$0xf]
        %v610 = vld [vmem:[%s481 + $0xe0] sm:$0xff]
        %v611 = vld [vmem:[%s481 + $0xe8] sm:$0xff]
        %v612 = vld [vmem:[%s481 + $0xf0] sm:$0xff]
        %v613 = vld [vmem:[%s481 + $0xf8] sm:$0xf]
        %v614 = vld [vmem:[%s481 + $0xfc] sm:$0xff]
        %v615 = vld [vmem:[%s481 + $0x104] sm:$0xff]
        %v616 = vld [vmem:[%s481 + $0x10c] sm:$0xff]
        %v617 = vld [vmem:[%s481 + $0x114] sm:$0xf]
        %v618 = vld [vmem:[%s481 + $0x118] sm:$0xff]
        %v619 = vld [vmem:[%s481 + $0x120] sm:$0xff]
        %v620 = vld [vmem:[%s481 + $0x128] sm:$0xff]
        %v621 = vld [vmem:[%s481 + $0x130] sm:$0xf]
        %v622 = vld [vmem:[%s481 + $0x134] sm:$0xff]
        %v623 = vld [vmem:[%s481 + $0x13c] sm:$0xff]
        %v624 = vld [vmem:[%s481 + $0x144] sm:$0xff]
        %v625 = vld [vmem:[%s481 + $0x14c] sm:$0xf]
        %v626 = vld [vmem:[%s481 + $0x150] sm:$0xff]
        %v627 = vld [vmem:[%s481 + $0x158] sm:$0xff]
        %v628 = vld [vmem:[%s481 + $0x160] sm:$0xff]
        %v629 = vld [vmem:[%s481 + $0x168] sm:$0xf]
        %v630 = vld [vmem:[%s481 + $0x16c] sm:$0xff]
        %v631 = vld [vmem:[%s481 + $0x174] sm:$0xff]
        %v632 = vld [vmem:[%s481 + $0x17c] sm:$0xff]
        %v633 = vld [vmem:[%s481 + $0x184] sm:$0xf]
        %v634 = vld [vmem:[%s481 + $0x188] sm:$0xff]
        %v635 = vld [vmem:[%s481 + $0x190] sm:$0xff]
        %v636 = vld [vmem:[%s481 + $0x198] sm:$0xff]
        %v637 = vld [vmem:[%s481 + $0x1a0] sm:$0xf]
        %v638 = vld [vmem:[%s481 + $0x1a4] sm:$0xff]
        %v639 = vld [vmem:[%s481 + $0x1ac] sm:$0xff]
        %v640 = vld [vmem:[%s481 + $0x1b4] sm:$0xff]
        %v641 = vld [vmem:[%s481 + $0x1bc] sm:$0xf]
        %v642 = vld [vmem:[%s481 + $0x1c0] sm:$0xff]
        %v643 = vld [vmem:[%s481 + $0x1c8] sm:$0xff]
        %v644 = vld [vmem:[%s481 + $0x1d0] sm:$0xff]
        %v645 = vld [vmem:[%s481 + $0x1d8] sm:$0xf]
        %v646 = vld [vmem:[%s481 + $0x1dc] sm:$0xff]
        %v647 = vld [vmem:[%s481 + $0x1e4] sm:$0xff]
        %v648 = vld [vmem:[%s481 + $0x1ec] sm:$0xff]
        %v649 = vld [vmem:[%s481 + $0x1f4] sm:$0xf]
        %v650 = vld [vmem:[%s481 + $0x1f8] sm:$0xff]
        %v651 = vld [vmem:[%s481 + $0x200] sm:$0xff]
        %v652 = vld [vmem:[%s481 + $0x208] sm:$0xff]
        %v653 = vld [vmem:[%s481 + $0x210] sm:$0xf]
        %v654 = vld [vmem:[%s481 + $0x214] sm:$0xff]
        %v655 = vld [vmem:[%s481 + $0x21c] sm:$0xff]
        %v656 = vld [vmem:[%s481 + $0x224] sm:$0xff]
        %v657 = vld [vmem:[%s481 + $0x22c] sm:$0xf]
        %v658 = vld [vmem:[%s481 + $0x230] sm:$0xff]
        %v659 = vld [vmem:[%s481 + $0x238] sm:$0xff]
        %v660 = vld [vmem:[%s481 + $0x240] sm:$0xff]
        %v661 = vld [vmem:[%s481 + $0x248] sm:$0xf]
        %v662 = vld [vmem:[%s481 + $0x24c] sm:$0xff]
        %v663 = vld [vmem:[%s481 + $0x254] sm:$0xff]
        %v664 = vld [vmem:[%s481 + $0x25c] sm:$0xff]
        %v665 = vld [vmem:[%s481 + $0x264] sm:$0xf]
        %v666 = vld [vmem:[%s481 + $0x268] sm:$0xff]
        %v667 = vld [vmem:[%s481 + $0x270] sm:$0xff]
        %v668 = vld [vmem:[%s481 + $0x278] sm:$0xff]
        %v669 = vld [vmem:[%s481 + $0x280] sm:$0xf]
        %v670 = vld [vmem:[%s481 + $0x284] sm:$0xff]
        %v671 = vld [vmem:[%s481 + $0x28c] sm:$0xff]
        %v672 = vld [vmem:[%s481 + $0x294] sm:$0xff]
        %v673 = vld [vmem:[%s481 + $0x29c] sm:$0xf]
        %v674 = vld [vmem:[%s481 + $0x2a0] sm:$0xff]
        %v675 = vld [vmem:[%s481 + $0x2a8] sm:$0xff]
        %v676 = vld [vmem:[%s481 + $0x2b0] sm:$0xff]
        %v677 = vld [vmem:[%s481 + $0x2b8] sm:$0xf]
        %v678 = vld [vmem:[%s481 + $0x2bc] sm:$0xff]
        %v679 = vld [vmem:[%s481 + $0x2c4] sm:$0xff]
        %v680 = vld [vmem:[%s481 + $0x2cc] sm:$0xff]
        %v681 = vld [vmem:[%s481 + $0x2d4] sm:$0xf]
        %v682 = vld [vmem:[%s481 + $0x2d8] sm:$0xff]
        %v683 = vld [vmem:[%s481 + $0x2e0] sm:$0xff]
        %v684 = vld [vmem:[%s481 + $0x2e8] sm:$0xff]
        %v685 = vld [vmem:[%s481 + $0x2f0] sm:$0xf]
        %v686 = vld [vmem:[%s481 + $0x2f4] sm:$0xff]
        %v687 = vld [vmem:[%s481 + $0x2fc] sm:$0xff]
        %v688 = vld [vmem:[%s481 + $0x304] sm:$0xff]
        %v689 = vld [vmem:[%s481 + $0x30c] sm:$0xf]
        %v690 = vld [vmem:[%s481 + $0x310] sm:$0xff]
        %v691 = vld [vmem:[%s481 + $0x318] sm:$0xff]
        %v692 = vld [vmem:[%s481 + $0x320] sm:$0xff]
        %v693 = vld [vmem:[%s481 + $0x328] sm:$0xf]
        %v694 = vld [vmem:[%s481 + $0x32c] sm:$0xff]
        %v695 = vld [vmem:[%s481 + $0x334] sm:$0xff]
        %v696 = vld [vmem:[%s481 + $0x33c] sm:$0xff]
        %v697 = vld [vmem:[%s481 + $0x344] sm:$0xf]
        %v698 = vld [vmem:[%s481 + $0x348] sm:$0xff]
        %v699 = vld [vmem:[%s481 + $0x350] sm:$0xff]
        %v700 = vld [vmem:[%s481 + $0x358] sm:$0xff]
        %v701 = vld [vmem:[%s481 + $0x360] sm:$0xf]
        %v702 = vld [vmem:[%s481 + $0x364] sm:$0xff]
        %v703 = vld [vmem:[%s481 + $0x36c] sm:$0xff]
        %v704 = vld [vmem:[%s481 + $0x374] sm:$0xff]
        %v705 = vld [vmem:[%s481 + $0x37c] sm:$0xf]
        %v706 = vld [vmem:[#allocation5] sm:$0xff]
        %v707 = vld [vmem:[#allocation5 + $0x8] sm:$0xff]
        %v708 = vld [vmem:[#allocation5 + $0x10] sm:$0xff]
        %v709 = vld [vmem:[#allocation5 + $0x18] sm:$0xff]
        %v710 = vld [vmem:[#allocation5 + $0x20] sm:$0xff]
        %v711 = vld [vmem:[#allocation5 + $0x28] sm:$0xff]
        %v712 = vld [vmem:[#allocation5 + $0x30] sm:$0xff]
        %v713 = vld [vmem:[#allocation5 + $0x38] sm:$0xff]
        %v714 = vld [vmem:[#allocation5 + $0x40] sm:$0xff]
        %v715 = vld [vmem:[#allocation5 + $0x48] sm:$0xff]
        %v716 = vld [vmem:[#allocation5 + $0x50] sm:$0xff]
        %v717 = vld [vmem:[#allocation5 + $0x58] sm:$0xff]
        %v718 = vld [vmem:[#allocation5 + $0x60] sm:$0xff]
        %v719 = vld [vmem:[#allocation5 + $0x68] sm:$0xff]
        %v720 = vld [vmem:[#allocation5 + $0x70] sm:$0xff]
        %v721 = vld [vmem:[#allocation5 + $0x78] sm:$0xff]
        %v722 = vld [vmem:[#allocation5 + $0x80] sm:$0xff]
        %v723 = vld [vmem:[#allocation5 + $0x88] sm:$0xff]
        %v724 = vld [vmem:[#allocation5 + $0x90] sm:$0xff]
        %v725 = vld [vmem:[#allocation5 + $0x98] sm:$0xff]
        %v726 = vld [vmem:[#allocation5 + $0xa0] sm:$0xff]
        %v727 = vld [vmem:[#allocation5 + $0xa8] sm:$0xff]
        %v728 = vld [vmem:[#allocation5 + $0xb0] sm:$0xff]
        %v729 = vld [vmem:[#allocation5 + $0xb8] sm:$0xff]
        %v730 = vld [vmem:[#allocation5 + $0xc0] sm:$0xff]
        %v731 = vld [vmem:[#allocation5 + $0xc8] sm:$0xff]
        %v732 = vld [vmem:[#allocation5 + $0xd0] sm:$0xff]
        %v733 = vld [vmem:[#allocation5 + $0xd8] sm:$0xff]
        %v734 = vld [vmem:[#allocation5 + $0xe0] sm:$0xff]
        %v735 = vld [vmem:[#allocation5 + $0xe8] sm:$0xff]
        %v736 = vld [vmem:[#allocation5 + $0xf0] sm:$0xff]
        %v737 = vld [vmem:[#allocation5 + $0xf8] sm:$0xff]
        %v738 = vld [vmem:[#allocation5 + $0x100] sm:$0xff]
        %v739 = vld [vmem:[#allocation5 + $0x108] sm:$0xff]
        %v740 = vld [vmem:[#allocation5 + $0x110] sm:$0xff]
        %v741 = vld [vmem:[#allocation5 + $0x118] sm:$0xff]
        %v742 = vld [vmem:[#allocation5 + $0x120] sm:$0xff]
        %v743 = vld [vmem:[#allocation5 + $0x128] sm:$0xff]
        %v744 = vld [vmem:[#allocation5 + $0x130] sm:$0xff]
        %v745 = vld [vmem:[#allocation5 + $0x138] sm:$0xff]
        %v746 = vld [vmem:[#allocation5 + $0x140] sm:$0xff]
        %v747 = vld [vmem:[#allocation5 + $0x148] sm:$0xff]
        %v748 = vld [vmem:[#allocation5 + $0x150] sm:$0xff]
        %v749 = vld [vmem:[#allocation5 + $0x158] sm:$0xff]
        %v750 = vld [vmem:[#allocation5 + $0x160] sm:$0xff]
        %v751 = vld [vmem:[#allocation5 + $0x168] sm:$0xff]
        %v752 = vld [vmem:[#allocation5 + $0x170] sm:$0xff]
        %v753 = vld [vmem:[#allocation5 + $0x178] sm:$0xff]
        %v754 = vld [vmem:[#allocation5 + $0x180] sm:$0xff]
        %v755 = vld [vmem:[#allocation5 + $0x188] sm:$0xff]
        %v756 = vld [vmem:[#allocation5 + $0x190] sm:$0xff]
        %v757 = vld [vmem:[#allocation5 + $0x198] sm:$0xff]
        %v758 = vld [vmem:[#allocation5 + $0x1a0] sm:$0xff]
        %v759 = vld [vmem:[#allocation5 + $0x1a8] sm:$0xff]
        %v760 = vld [vmem:[#allocation5 + $0x1b0] sm:$0xff]
        %v761 = vld [vmem:[#allocation5 + $0x1b8] sm:$0xff]
        %v762 = vld [vmem:[#allocation5 + $0x1c0] sm:$0xff]
        %v763 = vld [vmem:[#allocation5 + $0x1c8] sm:$0xff]
        %v764 = vld [vmem:[#allocation5 + $0x1d0] sm:$0xff]
        %v765 = vld [vmem:[#allocation5 + $0x1d8] sm:$0xff]
        %v766 = vld [vmem:[#allocation5 + $0x1e0] sm:$0xff]
        %v767 = vld [vmem:[#allocation5 + $0x1e8] sm:$0xff]
        %v768 = vld [vmem:[#allocation5 + $0x1f0] sm:$0xff]
        %v769 = vld [vmem:[#allocation5 + $0x1f8] sm:$0xff]
        %v770 = vld [vmem:[#allocation5 + $0x200] sm:$0xff]
        %v771 = vld [vmem:[#allocation5 + $0x208] sm:$0xff]
        %v772 = vld [vmem:[#allocation5 + $0x210] sm:$0xff]
        %v773 = vld [vmem:[#allocation5 + $0x218] sm:$0xff]
        %v774 = vld [vmem:[#allocation5 + $0x220] sm:$0xff]
        %v775 = vld [vmem:[#allocation5 + $0x228] sm:$0xff]
        %v776 = vld [vmem:[#allocation5 + $0x230] sm:$0xff]
        %v777 = vld [vmem:[#allocation5 + $0x238] sm:$0xff]
        %v778 = vld [vmem:[#allocation5 + $0x240] sm:$0xff]
        %v779 = vld [vmem:[#allocation5 + $0x248] sm:$0xff]
        %v780 = vld [vmem:[#allocation5 + $0x250] sm:$0xff]
        %v781 = vld [vmem:[#allocation5 + $0x258] sm:$0xff]
        %v782 = vld [vmem:[#allocation5 + $0x260] sm:$0xff]
        %v783 = vld [vmem:[#allocation5 + $0x268] sm:$0xff]
        %v784 = vld [vmem:[#allocation5 + $0x270] sm:$0xff]
        %v785 = vld [vmem:[#allocation5 + $0x278] sm:$0xff]
        %v786 = vld [vmem:[#allocation5 + $0x280] sm:$0xff]
        %v787 = vld [vmem:[#allocation5 + $0x288] sm:$0xff]
        %v788 = vld [vmem:[#allocation5 + $0x290] sm:$0xff]
        %v789 = vld [vmem:[#allocation5 + $0x298] sm:$0xff]
        %v790 = vld [vmem:[#allocation5 + $0x2a0] sm:$0xff]
        %v791 = vld [vmem:[#allocation5 + $0x2a8] sm:$0xff]
        %v792 = vld [vmem:[#allocation5 + $0x2b0] sm:$0xff]
        %v793 = vld [vmem:[#allocation5 + $0x2b8] sm:$0xff]
        %v794 = vld [vmem:[#allocation5 + $0x2c0] sm:$0xff]
        %v795 = vld [vmem:[#allocation5 + $0x2c8] sm:$0xff]
        %v796 = vld [vmem:[#allocation5 + $0x2d0] sm:$0xff]
        %v797 = vld [vmem:[#allocation5 + $0x2d8] sm:$0xff]
        %v798 = vld [vmem:[#allocation5 + $0x2e0] sm:$0xff]
        %v799 = vld [vmem:[#allocation5 + $0x2e8] sm:$0xff]
        %v800 = vld [vmem:[#allocation5 + $0x2f0] sm:$0xff]
        %v801 = vld [vmem:[#allocation5 + $0x2f8] sm:$0xff]
        %v802 = vld [vmem:[#allocation5 + $0x300] sm:$0xff]
        %v803 = vld [vmem:[#allocation5 + $0x308] sm:$0xff]
        %v804 = vld [vmem:[#allocation5 + $0x310] sm:$0xff]
        %v805 = vld [vmem:[#allocation5 + $0x318] sm:$0xff]
        %v806 = vld [vmem:[#allocation5 + $0x320] sm:$0xff]
        %v807 = vld [vmem:[#allocation5 + $0x328] sm:$0xff]
        %v808 = vld [vmem:[#allocation5 + $0x330] sm:$0xff]
        %v809 = vld [vmem:[#allocation5 + $0x338] sm:$0xff]
        %v810 = vld [vmem:[#allocation5 + $0x340] sm:$0xff]
        %v811 = vld [vmem:[#allocation5 + $0x348] sm:$0xff]
        %v812 = vld [vmem:[#allocation5 + $0x350] sm:$0xff]
        %v813 = vld [vmem:[#allocation5 + $0x358] sm:$0xff]
        %v814 = vld [vmem:[#allocation5 + $0x360] sm:$0xff]
        %v815 = vld [vmem:[#allocation5 + $0x368] sm:$0xff]
        %v816 = vld [vmem:[#allocation5 + $0x370] sm:$0xff]
        %v817 = vld [vmem:[#allocation5 + $0x378] sm:$0xff]
        %v818 = vld [vmem:[#allocation5 + $0x380] sm:$0xff]
        %v819 = vld [vmem:[#allocation5 + $0x388] sm:$0xff]
        %v820 = vld [vmem:[#allocation5 + $0x390] sm:$0xff]
        %v821 = vld [vmem:[#allocation5 + $0x398] sm:$0xff]
        %v822 = vld [vmem:[#allocation5 + $0x3a0] sm:$0xff]
        %v823 = vld [vmem:[#allocation5 + $0x3a8] sm:$0xff]
        %v824 = vld [vmem:[#allocation5 + $0x3b0] sm:$0xff]
        %v825 = vld [vmem:[#allocation5 + $0x3b8] sm:$0xff]
        %v826 = vld [vmem:[#allocation5 + $0x3c0] sm:$0xff]
        %v827 = vld [vmem:[#allocation5 + $0x3c8] sm:$0xff]
        %v828 = vld [vmem:[#allocation5 + $0x3d0] sm:$0xff]
        %v829 = vld [vmem:[#allocation5 + $0x3d8] sm:$0xff]
        %v830 = vld [vmem:[#allocation5 + $0x3e0] sm:$0xff]
        %v831 = vld [vmem:[#allocation5 + $0x3e8] sm:$0xff]
        %v832 = vld [vmem:[#allocation5 + $0x3f0] sm:$0xff]
        %v833 = vld [vmem:[#allocation5 + $0x3f8] sm:$0xff]
        %v834 = vld [vmem:[#allocation5 + $0x400] sm:$0xff]
        %v835 = vld [vmem:[#allocation5 + $0x408] sm:$0xff]
        %v836 = vld [vmem:[#allocation5 + $0x410] sm:$0xff]
        %v837 = vld [vmem:[#allocation5 + $0x418] sm:$0xff]
        %v838 = vld [vmem:[#allocation5 + $0x420] sm:$0xff]
        %v839 = vld [vmem:[#allocation5 + $0x428] sm:$0xff]
        %v840 = vld [vmem:[#allocation5 + $0x430] sm:$0xff]
        %v841 = vld [vmem:[#allocation5 + $0x438] sm:$0xff]
        %v842 = vld [vmem:[#allocation5 + $0x440] sm:$0xff]
        %v843 = vld [vmem:[#allocation5 + $0x448] sm:$0xff]
        %v844 = vld [vmem:[#allocation5 + $0x450] sm:$0xff]
        %v845 = vld [vmem:[#allocation5 + $0x458] sm:$0xff]
        %v846 = vld [vmem:[#allocation5 + $0x460] sm:$0xff]
        %v847 = vld [vmem:[#allocation5 + $0x468] sm:$0xff]
        %v848 = vld [vmem:[#allocation5 + $0x470] sm:$0xff]
        %v849 = vld [vmem:[#allocation5 + $0x478] sm:$0xff]
        %v850 = vld [vmem:[#allocation5 + $0x480] sm:$0xff]
        %v851 = vld [vmem:[#allocation5 + $0x488] sm:$0xff]
        %v852 = vld [vmem:[#allocation5 + $0x490] sm:$0xff]
        %v853 = vld [vmem:[#allocation5 + $0x498] sm:$0xff]
        %v854 = vld [vmem:[#allocation5 + $0x4a0] sm:$0xff]
        %v855 = vld [vmem:[#allocation5 + $0x4a8] sm:$0xff]
        %v856 = vld [vmem:[#allocation5 + $0x4b0] sm:$0xff]
        %v857 = vld [vmem:[#allocation5 + $0x4b8] sm:$0xff]
        %v858 = vld [vmem:[#allocation5 + $0x4c0] sm:$0xff]
        %v859 = vld [vmem:[#allocation5 + $0x4c8] sm:$0xff]
        %v860 = vld [vmem:[#allocation5 + $0x4d0] sm:$0xff]
        %v861 = vld [vmem:[#allocation5 + $0x4d8] sm:$0xff]
        %v862 = vld [vmem:[#allocation5 + $0x4e0] sm:$0xff]
        %v863 = vld [vmem:[#allocation5 + $0x4e8] sm:$0xff]
        %v864 = vld [vmem:[#allocation5 + $0x4f0] sm:$0xff]
        %v865 = vld [vmem:[#allocation5 + $0x4f8] sm:$0xff]
        %v866 = vld [vmem:[#allocation5 + $0x500] sm:$0xff]
        %v867 = vld [vmem:[#allocation5 + $0x508] sm:$0xff]
        %v868 = vld [vmem:[#allocation5 + $0x510] sm:$0xff]
        %v869 = vld [vmem:[#allocation5 + $0x518] sm:$0xff]
        %v870 = vld [vmem:[#allocation5 + $0x520] sm:$0xff]
        %v871 = vld [vmem:[#allocation5 + $0x528] sm:$0xff]
        %v872 = vld [vmem:[#allocation5 + $0x530] sm:$0xff]
        %v873 = vld [vmem:[#allocation5 + $0x538] sm:$0xff]
        %v874 = vld [vmem:[#allocation5 + $0x540] sm:$0xff]
        %v875 = vld [vmem:[#allocation5 + $0x548] sm:$0xff]
        %v876 = vld [vmem:[#allocation5 + $0x550] sm:$0xff]
        %v877 = vld [vmem:[#allocation5 + $0x558] sm:$0xff]
        %v878 = vld [vmem:[#allocation5 + $0x560] sm:$0xff]
        %v879 = vld [vmem:[#allocation5 + $0x568] sm:$0xff]
        %v880 = vld [vmem:[#allocation5 + $0x570] sm:$0xff]
        %v881 = vld [vmem:[#allocation5 + $0x578] sm:$0xff]
        %v882 = vld [vmem:[#allocation5 + $0x580] sm:$0xff]
        %v883 = vld [vmem:[#allocation5 + $0x588] sm:$0xff]
        %v884 = vld [vmem:[#allocation5 + $0x590] sm:$0xff]
        %v885 = vld [vmem:[#allocation5 + $0x598] sm:$0xff]
        %v886 = vld [vmem:[#allocation5 + $0x5a0] sm:$0xff]
        %v887 = vld [vmem:[#allocation5 + $0x5a8] sm:$0xff]
        %v888 = vld [vmem:[#allocation5 + $0x5b0] sm:$0xff]
        %v889 = vld [vmem:[#allocation5 + $0x5b8] sm:$0xff]
        %v890 = vld [vmem:[#allocation5 + $0x5c0] sm:$0xff]
        %v891 = vld [vmem:[#allocation5 + $0x5c8] sm:$0xff]
        %v892 = vld [vmem:[#allocation5 + $0x5d0] sm:$0xff]
        %v893 = vld [vmem:[#allocation5 + $0x5d8] sm:$0xff]
        %v894 = vld [vmem:[#allocation5 + $0x5e0] sm:$0xff]
        %v895 = vld [vmem:[#allocation5 + $0x5e8] sm:$0xff]
        %v896 = vld [vmem:[#allocation5 + $0x5f0] sm:$0xff]
        %v897 = vld [vmem:[#allocation5 + $0x5f8] sm:$0xff]
        %v898 = vld [vmem:[#allocation5 + $0x600] sm:$0xff]
        %v899 = vld [vmem:[#allocation5 + $0x608] sm:$0xff]
        %v900 = vld [vmem:[#allocation5 + $0x610] sm:$0xff]
        %v901 = vld [vmem:[#allocation5 + $0x618] sm:$0xff]
        %v902 = vld [vmem:[#allocation5 + $0x620] sm:$0xff]
        %v903 = vld [vmem:[#allocation5 + $0x628] sm:$0xff]
        %v904 = vld [vmem:[#allocation5 + $0x630] sm:$0xff]
        %v905 = vld [vmem:[#allocation5 + $0x638] sm:$0xff]
        %v906 = vld [vmem:[#allocation5 + $0x640] sm:$0xff]
        %v907 = vld [vmem:[#allocation5 + $0x648] sm:$0xff]
        %v908 = vld [vmem:[#allocation5 + $0x650] sm:$0xff]
        %v909 = vld [vmem:[#allocation5 + $0x658] sm:$0xff]
        %v910 = vld [vmem:[#allocation5 + $0x660] sm:$0xff]
        %v911 = vld [vmem:[#allocation5 + $0x668] sm:$0xff]
        %v912 = vld [vmem:[#allocation5 + $0x670] sm:$0xff]
        %v913 = vld [vmem:[#allocation5 + $0x678] sm:$0xff]
        %v914 = vld [vmem:[#allocation5 + $0x680] sm:$0xff]
        %v915 = vld [vmem:[#allocation5 + $0x688] sm:$0xff]
        %v916 = vld [vmem:[#allocation5 + $0x690] sm:$0xff]
        %v917 = vld [vmem:[#allocation5 + $0x698] sm:$0xff]
        %v918 = vld [vmem:[#allocation5 + $0x6a0] sm:$0xff]
        %v919 = vld [vmem:[#allocation5 + $0x6a8] sm:$0xff]
        %v920 = vld [vmem:[#allocation5 + $0x6b0] sm:$0xff]
        %v921 = vld [vmem:[#allocation5 + $0x6b8] sm:$0xff]
        %v922 = vld [vmem:[#allocation5 + $0x6c0] sm:$0xff]
        %v923 = vld [vmem:[#allocation5 + $0x6c8] sm:$0xff]
        %v924 = vld [vmem:[#allocation5 + $0x6d0] sm:$0xff]
        %v925 = vld [vmem:[#allocation5 + $0x6d8] sm:$0xff]
        %v926 = vld [vmem:[#allocation5 + $0x6e0] sm:$0xff]
        %v927 = vld [vmem:[#allocation5 + $0x6e8] sm:$0xff]
        %v928 = vld [vmem:[#allocation5 + $0x6f0] sm:$0xff]
        %v929 = vld [vmem:[#allocation5 + $0x6f8] sm:$0xff]
        %v930 = vld [vmem:[#allocation7] sm:$0xf]
        %v932 = vperm.slane %v930, 0
        %v933 = vperm.slane %v930, 1
        %v934 = vperm.slane %v930, 2
        %v935 = vperm.slane %v930, 3
        %v1068 = vunpack.c.l.b16 %v578
        %v1069 = vunpack.c.h.b16 %v578
        %v1070 = vunpack.c.l.b16 %v579
        %v1071 = vunpack.c.h.b16 %v579
        %v1072 = vunpack.c.l.b16 %v580
        %v1073 = vunpack.c.h.b16 %v580
        %v1074 = vunpack.c.l.b16 %v581
        %v1075 = vunpack.c.l.b16 %v582
        %v1076 = vunpack.c.h.b16 %v582
        %v1077 = vunpack.c.l.b16 %v583
        %v1078 = vunpack.c.h.b16 %v583
        %v1079 = vunpack.c.l.b16 %v584
        %v1080 = vunpack.c.h.b16 %v584
        %v1081 = vunpack.c.l.b16 %v585
        %v1082 = vunpack.c.l.b16 %v586
        %v1083 = vunpack.c.h.b16 %v586
        %v1084 = vunpack.c.l.b16 %v587
        %v1085 = vunpack.c.h.b16 %v587
        %v1086 = vunpack.c.l.b16 %v588
        %v1087 = vunpack.c.h.b16 %v588
        %v1088 = vunpack.c.l.b16 %v589
        %v1089 = vunpack.c.l.b16 %v590
        %v1090 = vunpack.c.h.b16 %v590
        %v1091 = vunpack.c.l.b16 %v591
        %v1092 = vunpack.c.h.b16 %v591
        %v1093 = vunpack.c.l.b16 %v592
        %v1094 = vunpack.c.h.b16 %v592
        %v1095 = vunpack.c.l.b16 %v593
        %v1096 = vunpack.c.l.b16 %v594
        %v1097 = vunpack.c.h.b16 %v594
        %v1098 = vunpack.c.l.b16 %v595
        %v1099 = vunpack.c.h.b16 %v595
        %v1100 = vunpack.c.l.b16 %v596
        %v1101 = vunpack.c.h.b16 %v596
        %v1102 = vunpack.c.l.b16 %v597
        %v1103 = vunpack.c.l.b16 %v598
        %v1104 = vunpack.c.h.b16 %v598
        %v1105 = vunpack.c.l.b16 %v599
        %v1106 = vunpack.c.h.b16 %v599
        %v1107 = vunpack.c.l.b16 %v600
        %v1108 = vunpack.c.h.b16 %v600
        %v1109 = vunpack.c.l.b16 %v601
        %v1110 = vunpack.c.l.b16 %v602
        %v1111 = vunpack.c.h.b16 %v602
        %v1112 = vunpack.c.l.b16 %v603
        %v1113 = vunpack.c.h.b16 %v603
        %v1114 = vunpack.c.l.b16 %v604
        %v1115 = vunpack.c.h.b16 %v604
        %v1116 = vunpack.c.l.b16 %v605
        %v1117 = vunpack.c.l.b16 %v606
        %v1118 = vunpack.c.h.b16 %v606
        %v1119 = vunpack.c.l.b16 %v607
        %v1120 = vunpack.c.h.b16 %v607
        %v1121 = vunpack.c.l.b16 %v608
        %v1122 = vunpack.c.h.b16 %v608
        %v1123 = vunpack.c.l.b16 %v609
        %v1124 = vunpack.c.l.b16 %v610
        %v1125 = vunpack.c.h.b16 %v610
        %v1126 = vunpack.c.l.b16 %v611
        %v1127 = vunpack.c.h.b16 %v611
        %v1128 = vunpack.c.l.b16 %v612
        %v1129 = vunpack.c.h.b16 %v612
        %v1130 = vunpack.c.l.b16 %v613
        %v1131 = vunpack.c.l.b16 %v614
        %v1132 = vunpack.c.h.b16 %v614
        %v1133 = vunpack.c.l.b16 %v615
        %v1134 = vunpack.c.h.b16 %v615
        %v1135 = vunpack.c.l.b16 %v616
        %v1136 = vunpack.c.h.b16 %v616
        %v1137 = vunpack.c.l.b16 %v617
        %v1138 = vunpack.c.l.b16 %v618
        %v1139 = vunpack.c.h.b16 %v618
        %v1140 = vunpack.c.l.b16 %v619
        %v1141 = vunpack.c.h.b16 %v619
        %v1142 = vunpack.c.l.b16 %v620
        %v1143 = vunpack.c.h.b16 %v620
        %v1144 = vunpack.c.l.b16 %v621
        %v1145 = vunpack.c.l.b16 %v622
        %v1146 = vunpack.c.h.b16 %v622
        %v1147 = vunpack.c.l.b16 %v623
        %v1148 = vunpack.c.h.b16 %v623
        %v1149 = vunpack.c.l.b16 %v624
        %v1150 = vunpack.c.h.b16 %v624
        %v1151 = vunpack.c.l.b16 %v625
        %v1152 = vunpack.c.l.b16 %v626
        %v1153 = vunpack.c.h.b16 %v626
        %v1154 = vunpack.c.l.b16 %v627
        %v1155 = vunpack.c.h.b16 %v627
        %v1156 = vunpack.c.l.b16 %v628
        %v1157 = vunpack.c.h.b16 %v628
        %v1158 = vunpack.c.l.b16 %v629
        %v1159 = vunpack.c.l.b16 %v630
        %v1160 = vunpack.c.h.b16 %v630
        %v1161 = vunpack.c.l.b16 %v631
        %v1162 = vunpack.c.h.b16 %v631
        %v1163 = vunpack.c.l.b16 %v632
        %v1164 = vunpack.c.h.b16 %v632
        %v1165 = vunpack.c.l.b16 %v633
        %v1166 = vunpack.c.l.b16 %v634
        %v1167 = vunpack.c.h.b16 %v634
        %v1168 = vunpack.c.l.b16 %v635
        %v1169 = vunpack.c.h.b16 %v635
        %v1170 = vunpack.c.l.b16 %v636
        %v1171 = vunpack.c.h.b16 %v636
        %v1172 = vunpack.c.l.b16 %v637
        %v1173 = vunpack.c.l.b16 %v638
        %v1174 = vunpack.c.h.b16 %v638
        %v1175 = vunpack.c.l.b16 %v639
        %v1176 = vunpack.c.h.b16 %v639
        %v1177 = vunpack.c.l.b16 %v640
        %v1178 = vunpack.c.h.b16 %v640
        %v1179 = vunpack.c.l.b16 %v641
        %v1180 = vunpack.c.l.b16 %v642
        %v1181 = vunpack.c.h.b16 %v642
        %v1182 = vunpack.c.l.b16 %v643
        %v1183 = vunpack.c.h.b16 %v643
        %v1184 = vunpack.c.l.b16 %v644
        %v1185 = vunpack.c.h.b16 %v644
        %v1186 = vunpack.c.l.b16 %v645
        %v1187 = vunpack.c.l.b16 %v646
        %v1188 = vunpack.c.h.b16 %v646
        %v1189 = vunpack.c.l.b16 %v647
        %v1190 = vunpack.c.h.b16 %v647
        %v1191 = vunpack.c.l.b16 %v648
        %v1192 = vunpack.c.h.b16 %v648
        %v1193 = vunpack.c.l.b16 %v649
        %v1194 = vunpack.c.l.b16 %v650
        %v1195 = vunpack.c.h.b16 %v650
        %v1196 = vunpack.c.l.b16 %v651
        %v1197 = vunpack.c.h.b16 %v651
        %v1198 = vunpack.c.l.b16 %v652
        %v1199 = vunpack.c.h.b16 %v652
        %v1200 = vunpack.c.l.b16 %v653
        %v1201 = vunpack.c.l.b16 %v654
        %v1202 = vunpack.c.h.b16 %v654
        %v1203 = vunpack.c.l.b16 %v655
        %v1204 = vunpack.c.h.b16 %v655
        %v1205 = vunpack.c.l.b16 %v656
        %v1206 = vunpack.c.h.b16 %v656
        %v1207 = vunpack.c.l.b16 %v657
        %v1208 = vunpack.c.l.b16 %v658
        %v1209 = vunpack.c.h.b16 %v658
        %v1210 = vunpack.c.l.b16 %v659
        %v1211 = vunpack.c.h.b16 %v659
        %v1212 = vunpack.c.l.b16 %v660
        %v1213 = vunpack.c.h.b16 %v660
        %v1214 = vunpack.c.l.b16 %v661
        %v1215 = vunpack.c.l.b16 %v662
        %v1216 = vunpack.c.h.b16 %v662
        %v1217 = vunpack.c.l.b16 %v663
        %v1218 = vunpack.c.h.b16 %v663
        %v1219 = vunpack.c.l.b16 %v664
        %v1220 = vunpack.c.h.b16 %v664
        %v1221 = vunpack.c.l.b16 %v665
        %v1222 = vunpack.c.l.b16 %v666
        %v1223 = vunpack.c.h.b16 %v666
        %v1224 = vunpack.c.l.b16 %v667
        %v1225 = vunpack.c.h.b16 %v667
        %v1226 = vunpack.c.l.b16 %v668
        %v1227 = vunpack.c.h.b16 %v668
        %v1228 = vunpack.c.l.b16 %v669
        %v1229 = vunpack.c.l.b16 %v670
        %v1230 = vunpack.c.h.b16 %v670
        %v1231 = vunpack.c.l.b16 %v671
        %v1232 = vunpack.c.h.b16 %v671
        %v1233 = vunpack.c.l.b16 %v672
        %v1234 = vunpack.c.h.b16 %v672
        %v1235 = vunpack.c.l.b16 %v673
        %v1236 = vunpack.c.l.b16 %v674
        %v1237 = vunpack.c.h.b16 %v674
        %v1238 = vunpack.c.l.b16 %v675
        %v1239 = vunpack.c.h.b16 %v675
        %v1240 = vunpack.c.l.b16 %v676
        %v1241 = vunpack.c.h.b16 %v676
        %v1242 = vunpack.c.l.b16 %v677
        %v1243 = vunpack.c.l.b16 %v678
        %v1244 = vunpack.c.h.b16 %v678
        %v1245 = vunpack.c.l.b16 %v679
        %v1246 = vunpack.c.h.b16 %v679
        %v1247 = vunpack.c.l.b16 %v680
        %v1248 = vunpack.c.h.b16 %v680
        %v1249 = vunpack.c.l.b16 %v681
        %v1250 = vunpack.c.l.b16 %v682
        %v1251 = vunpack.c.h.b16 %v682
        %v1252 = vunpack.c.l.b16 %v683
        %v1253 = vunpack.c.h.b16 %v683
        %v1254 = vunpack.c.l.b16 %v684
        %v1255 = vunpack.c.h.b16 %v684
        %v1256 = vunpack.c.l.b16 %v685
        %v1257 = vunpack.c.l.b16 %v686
        %v1258 = vunpack.c.h.b16 %v686
        %v1259 = vunpack.c.l.b16 %v687
        %v1260 = vunpack.c.h.b16 %v687
        %v1261 = vunpack.c.l.b16 %v688
        %v1262 = vunpack.c.h.b16 %v688
        %v1263 = vunpack.c.l.b16 %v689
        %v1264 = vunpack.c.l.b16 %v690
        %v1265 = vunpack.c.h.b16 %v690
        %v1266 = vunpack.c.l.b16 %v691
        %v1267 = vunpack.c.h.b16 %v691
        %v1268 = vunpack.c.l.b16 %v692
        %v1269 = vunpack.c.h.b16 %v692
        %v1270 = vunpack.c.l.b16 %v693
        %v1271 = vunpack.c.l.b16 %v694
        %v1272 = vunpack.c.h.b16 %v694
        %v1273 = vunpack.c.l.b16 %v695
        %v1274 = vunpack.c.h.b16 %v695
        %v1275 = vunpack.c.l.b16 %v696
        %v1276 = vunpack.c.h.b16 %v696
        %v1277 = vunpack.c.l.b16 %v697
        %v1278 = vunpack.c.l.b16 %v698
        %v1279 = vunpack.c.h.b16 %v698
        %v1280 = vunpack.c.l.b16 %v699
        %v1281 = vunpack.c.h.b16 %v699
        %v1282 = vunpack.c.l.b16 %v700
        %v1283 = vunpack.c.h.b16 %v700
        %v1284 = vunpack.c.l.b16 %v701
        %v1285 = vunpack.c.l.b16 %v702
        %v1286 = vunpack.c.h.b16 %v702
        %v1287 = vunpack.c.l.b16 %v703
        %v1288 = vunpack.c.h.b16 %v703
        %v1289 = vunpack.c.l.b16 %v704
        %v1290 = vunpack.c.h.b16 %v704
        %v1291 = vunpack.c.l.b16 %v705
        %v1292 = vpack.c.b16 %v1075, %v1068
        %v1293 = vpack.c.b16 %v1076, %v1069
        %v1294 = vpack.c.b16 %v1077, %v1070
        %v1295 = vpack.c.b16 %v1078, %v1071
        %v1296 = vpack.c.b16 %v1079, %v1072
        %v1297 = vpack.c.b16 %v1080, %v1073
        %v1298 = vpack.c.b16 %v1081, %v1074
        %v1299 = vpack.c.b16 %v1089, %v1082
        %v1300 = vpack.c.b16 %v1090, %v1083
        %v1301 = vpack.c.b16 %v1091, %v1084
        %v1302 = vpack.c.b16 %v1092, %v1085
        %v1303 = vpack.c.b16 %v1093, %v1086
        %v1304 = vpack.c.b16 %v1094, %v1087
        %v1305 = vpack.c.b16 %v1095, %v1088
        %v1306 = vpack.c.b16 %v1103, %v1096
        %v1307 = vpack.c.b16 %v1104, %v1097
        %v1308 = vpack.c.b16 %v1105, %v1098
        %v1309 = vpack.c.b16 %v1106, %v1099
        %v1310 = vpack.c.b16 %v1107, %v1100
        %v1311 = vpack.c.b16 %v1108, %v1101
        %v1312 = vpack.c.b16 %v1109, %v1102
        %v1313 = vpack.c.b16 %v1117, %v1110
        %v1314 = vpack.c.b16 %v1118, %v1111
        %v1315 = vpack.c.b16 %v1119, %v1112
        %v1316 = vpack.c.b16 %v1120, %v1113
        %v1317 = vpack.c.b16 %v1121, %v1114
        %v1318 = vpack.c.b16 %v1122, %v1115
        %v1319 = vpack.c.b16 %v1123, %v1116
        %v1320 = vpack.c.b16 %v1131, %v1124
        %v1321 = vpack.c.b16 %v1132, %v1125
        %v1322 = vpack.c.b16 %v1133, %v1126
        %v1323 = vpack.c.b16 %v1134, %v1127
        %v1324 = vpack.c.b16 %v1135, %v1128
        %v1325 = vpack.c.b16 %v1136, %v1129
        %v1326 = vpack.c.b16 %v1137, %v1130
        %v1327 = vpack.c.b16 %v1145, %v1138
        %v1328 = vpack.c.b16 %v1146, %v1139
        %v1329 = vpack.c.b16 %v1147, %v1140
        %v1330 = vpack.c.b16 %v1148, %v1141
        %v1331 = vpack.c.b16 %v1149, %v1142
        %v1332 = vpack.c.b16 %v1150, %v1143
        %v1333 = vpack.c.b16 %v1151, %v1144
        %v1334 = vpack.c.b16 %v1159, %v1152
        %v1335 = vpack.c.b16 %v1160, %v1153
        %v1336 = vpack.c.b16 %v1161, %v1154
        %v1337 = vpack.c.b16 %v1162, %v1155
        %v1338 = vpack.c.b16 %v1163, %v1156
        %v1339 = vpack.c.b16 %v1164, %v1157
        %v1340 = vpack.c.b16 %v1165, %v1158
        %v1341 = vpack.c.b16 %v1173, %v1166
        %v1342 = vpack.c.b16 %v1174, %v1167
        %v1343 = vpack.c.b16 %v1175, %v1168
        %v1344 = vpack.c.b16 %v1176, %v1169
        %v1345 = vpack.c.b16 %v1177, %v1170
        %v1346 = vpack.c.b16 %v1178, %v1171
        %v1347 = vpack.c.b16 %v1179, %v1172
        %v1348 = vpack.c.b16 %v1187, %v1180
        %v1349 = vpack.c.b16 %v1188, %v1181
        %v1350 = vpack.c.b16 %v1189, %v1182
        %v1351 = vpack.c.b16 %v1190, %v1183
        %v1352 = vpack.c.b16 %v1191, %v1184
        %v1353 = vpack.c.b16 %v1192, %v1185
        %v1354 = vpack.c.b16 %v1193, %v1186
        %v1355 = vpack.c.b16 %v1201, %v1194
        %v1356 = vpack.c.b16 %v1202, %v1195
        %v1357 = vpack.c.b16 %v1203, %v1196
        %v1358 = vpack.c.b16 %v1204, %v1197
        %v1359 = vpack.c.b16 %v1205, %v1198
        %v1360 = vpack.c.b16 %v1206, %v1199
        %v1361 = vpack.c.b16 %v1207, %v1200
        %v1362 = vpack.c.b16 %v1215, %v1208
        %v1363 = vpack.c.b16 %v1216, %v1209
        %v1364 = vpack.c.b16 %v1217, %v1210
        %v1365 = vpack.c.b16 %v1218, %v1211
        %v1366 = vpack.c.b16 %v1219, %v1212
        %v1367 = vpack.c.b16 %v1220, %v1213
        %v1368 = vpack.c.b16 %v1221, %v1214
        %v1369 = vpack.c.b16 %v1229, %v1222
        %v1370 = vpack.c.b16 %v1230, %v1223
        %v1371 = vpack.c.b16 %v1231, %v1224
        %v1372 = vpack.c.b16 %v1232, %v1225
        %v1373 = vpack.c.b16 %v1233, %v1226
        %v1374 = vpack.c.b16 %v1234, %v1227
        %v1375 = vpack.c.b16 %v1235, %v1228
        %v1376 = vpack.c.b16 %v1243, %v1236
        %v1377 = vpack.c.b16 %v1244, %v1237
        %v1378 = vpack.c.b16 %v1245, %v1238
        %v1379 = vpack.c.b16 %v1246, %v1239
        %v1380 = vpack.c.b16 %v1247, %v1240
        %v1381 = vpack.c.b16 %v1248, %v1241
        %v1382 = vpack.c.b16 %v1249, %v1242
        %v1383 = vpack.c.b16 %v1257, %v1250
        %v1384 = vpack.c.b16 %v1258, %v1251
        %v1385 = vpack.c.b16 %v1259, %v1252
        %v1386 = vpack.c.b16 %v1260, %v1253
        %v1387 = vpack.c.b16 %v1261, %v1254
        %v1388 = vpack.c.b16 %v1262, %v1255
        %v1389 = vpack.c.b16 %v1263, %v1256
        %v1390 = vpack.c.b16 %v1271, %v1264
        %v1391 = vpack.c.b16 %v1272, %v1265
        %v1392 = vpack.c.b16 %v1273, %v1266
        %v1393 = vpack.c.b16 %v1274, %v1267
        %v1394 = vpack.c.b16 %v1275, %v1268
        %v1395 = vpack.c.b16 %v1276, %v1269
        %v1396 = vpack.c.b16 %v1277, %v1270
        %v1397 = vpack.c.b16 %v1285, %v1278
        %v1398 = vpack.c.b16 %v1286, %v1279
        %v1399 = vpack.c.b16 %v1287, %v1280
        %v1400 = vpack.c.b16 %v1288, %v1281
        %v1401 = vpack.c.b16 %v1289, %v1282
        %v1402 = vpack.c.b16 %v1290, %v1283
        %v1403 = vpack.c.b16 %v1291, %v1284
        %v1740 = vunpack.c.l.b16 %v706
        %v1741 = vunpack.c.h.b16 %v706
        %v1742 = vunpack.c.l.b16 %v707
        %v1743 = vunpack.c.h.b16 %v707
        %v1744 = vunpack.c.l.b16 %v708
        %v1745 = vunpack.c.h.b16 %v708
        %v1746 = vunpack.c.l.b16 %v709
        %v1747 = vunpack.c.h.b16 %v709
        %v1748 = vunpack.c.l.b16 %v710
        %v1749 = vunpack.c.h.b16 %v710
        %v1750 = vunpack.c.l.b16 %v711
        %v1751 = vunpack.c.h.b16 %v711
        %v1752 = vunpack.c.l.b16 %v712
        %v1753 = vunpack.c.h.b16 %v712
        %v1754 = vunpack.c.l.b16 %v713
        %v1755 = vunpack.c.h.b16 %v713
        %v1756 = vunpack.c.l.b16 %v714
        %v1757 = vunpack.c.h.b16 %v714
        %v1758 = vunpack.c.l.b16 %v715
        %v1759 = vunpack.c.h.b16 %v715
        %v1760 = vunpack.c.l.b16 %v716
        %v1761 = vunpack.c.h.b16 %v716
        %v1762 = vunpack.c.l.b16 %v717
        %v1763 = vunpack.c.h.b16 %v717
        %v1764 = vunpack.c.l.b16 %v718
        %v1765 = vunpack.c.h.b16 %v718
        %v1766 = vunpack.c.l.b16 %v719
        %v1767 = vunpack.c.h.b16 %v719
        %v1768 = vunpack.c.l.b16 %v720
        %v1769 = vunpack.c.h.b16 %v720
        %v1770 = vunpack.c.l.b16 %v721
        %v1771 = vunpack.c.h.b16 %v721
        %v1772 = vunpack.c.l.b16 %v722
        %v1773 = vunpack.c.h.b16 %v722
        %v1774 = vunpack.c.l.b16 %v723
        %v1775 = vunpack.c.h.b16 %v723
        %v1776 = vunpack.c.l.b16 %v724
        %v1777 = vunpack.c.h.b16 %v724
        %v1778 = vunpack.c.l.b16 %v725
        %v1779 = vunpack.c.h.b16 %v725
        %v1780 = vunpack.c.l.b16 %v726
        %v1781 = vunpack.c.h.b16 %v726
        %v1782 = vunpack.c.l.b16 %v727
        %v1783 = vunpack.c.h.b16 %v727
        %v1784 = vunpack.c.l.b16 %v728
        %v1785 = vunpack.c.h.b16 %v728
        %v1786 = vunpack.c.l.b16 %v729
        %v1787 = vunpack.c.h.b16 %v729
        %v1788 = vunpack.c.l.b16 %v730
        %v1789 = vunpack.c.h.b16 %v730
        %v1790 = vunpack.c.l.b16 %v731
        %v1791 = vunpack.c.h.b16 %v731
        %v1792 = vunpack.c.l.b16 %v732
        %v1793 = vunpack.c.h.b16 %v732
        %v1794 = vunpack.c.l.b16 %v733
        %v1795 = vunpack.c.h.b16 %v733
        %v1796 = vunpack.c.l.b16 %v734
        %v1797 = vunpack.c.h.b16 %v734
        %v1798 = vunpack.c.l.b16 %v735
        %v1799 = vunpack.c.h.b16 %v735
        %v1800 = vunpack.c.l.b16 %v736
        %v1801 = vunpack.c.h.b16 %v736
        %v1802 = vunpack.c.l.b16 %v737
        %v1803 = vunpack.c.h.b16 %v737
        %v1804 = vunpack.c.l.b16 %v738
        %v1805 = vunpack.c.h.b16 %v738
        %v1806 = vunpack.c.l.b16 %v739
        %v1807 = vunpack.c.h.b16 %v739
        %v1808 = vunpack.c.l.b16 %v740
        %v1809 = vunpack.c.h.b16 %v740
        %v1810 = vunpack.c.l.b16 %v741
        %v1811 = vunpack.c.h.b16 %v741
        %v1812 = vunpack.c.l.b16 %v742
        %v1813 = vunpack.c.h.b16 %v742
        %v1814 = vunpack.c.l.b16 %v743
        %v1815 = vunpack.c.h.b16 %v743
        %v1816 = vunpack.c.l.b16 %v744
        %v1817 = vunpack.c.h.b16 %v744
        %v1818 = vunpack.c.l.b16 %v745
        %v1819 = vunpack.c.h.b16 %v745
        %v1820 = vunpack.c.l.b16 %v746
        %v1821 = vunpack.c.h.b16 %v746
        %v1822 = vunpack.c.l.b16 %v747
        %v1823 = vunpack.c.h.b16 %v747
        %v1824 = vunpack.c.l.b16 %v748
        %v1825 = vunpack.c.h.b16 %v748
        %v1826 = vunpack.c.l.b16 %v749
        %v1827 = vunpack.c.h.b16 %v749
        %v1828 = vunpack.c.l.b16 %v750
        %v1829 = vunpack.c.h.b16 %v750
        %v1830 = vunpack.c.l.b16 %v751
        %v1831 = vunpack.c.h.b16 %v751
        %v1832 = vunpack.c.l.b16 %v752
        %v1833 = vunpack.c.h.b16 %v752
        %v1834 = vunpack.c.l.b16 %v753
        %v1835 = vunpack.c.h.b16 %v753
        %v1836 = vunpack.c.l.b16 %v754
        %v1837 = vunpack.c.h.b16 %v754
        %v1838 = vunpack.c.l.b16 %v755
        %v1839 = vunpack.c.h.b16 %v755
        %v1840 = vunpack.c.l.b16 %v756
        %v1841 = vunpack.c.h.b16 %v756
        %v1842 = vunpack.c.l.b16 %v757
        %v1843 = vunpack.c.h.b16 %v757
        %v1844 = vunpack.c.l.b16 %v758
        %v1845 = vunpack.c.h.b16 %v758
        %v1846 = vunpack.c.l.b16 %v759
        %v1847 = vunpack.c.h.b16 %v759
        %v1848 = vunpack.c.l.b16 %v760
        %v1849 = vunpack.c.h.b16 %v760
        %v1850 = vunpack.c.l.b16 %v761
        %v1851 = vunpack.c.h.b16 %v761
        %v1852 = vunpack.c.l.b16 %v762
        %v1853 = vunpack.c.h.b16 %v762
        %v1854 = vunpack.c.l.b16 %v763
        %v1855 = vunpack.c.h.b16 %v763
        %v1856 = vunpack.c.l.b16 %v764
        %v1857 = vunpack.c.h.b16 %v764
        %v1858 = vunpack.c.l.b16 %v765
        %v1859 = vunpack.c.h.b16 %v765
        %v1860 = vunpack.c.l.b16 %v766
        %v1861 = vunpack.c.h.b16 %v766
        %v1862 = vunpack.c.l.b16 %v767
        %v1863 = vunpack.c.h.b16 %v767
        %v1864 = vunpack.c.l.b16 %v768
        %v1865 = vunpack.c.h.b16 %v768
        %v1866 = vunpack.c.l.b16 %v769
        %v1867 = vunpack.c.h.b16 %v769
        %v1868 = vunpack.c.l.b16 %v770
        %v1869 = vunpack.c.h.b16 %v770
        %v1870 = vunpack.c.l.b16 %v771
        %v1871 = vunpack.c.h.b16 %v771
        %v1872 = vunpack.c.l.b16 %v772
        %v1873 = vunpack.c.h.b16 %v772
        %v1874 = vunpack.c.l.b16 %v773
        %v1875 = vunpack.c.h.b16 %v773
        %v1876 = vunpack.c.l.b16 %v774
        %v1877 = vunpack.c.h.b16 %v774
        %v1878 = vunpack.c.l.b16 %v775
        %v1879 = vunpack.c.h.b16 %v775
        %v1880 = vunpack.c.l.b16 %v776
        %v1881 = vunpack.c.h.b16 %v776
        %v1882 = vunpack.c.l.b16 %v777
        %v1883 = vunpack.c.h.b16 %v777
        %v1884 = vunpack.c.l.b16 %v778
        %v1885 = vunpack.c.h.b16 %v778
        %v1886 = vunpack.c.l.b16 %v779
        %v1887 = vunpack.c.h.b16 %v779
        %v1888 = vunpack.c.l.b16 %v780
        %v1889 = vunpack.c.h.b16 %v780
        %v1890 = vunpack.c.l.b16 %v781
        %v1891 = vunpack.c.h.b16 %v781
        %v1892 = vunpack.c.l.b16 %v782
        %v1893 = vunpack.c.h.b16 %v782
        %v1894 = vunpack.c.l.b16 %v783
        %v1895 = vunpack.c.h.b16 %v783
        %v1896 = vunpack.c.l.b16 %v784
        %v1897 = vunpack.c.h.b16 %v784
        %v1898 = vunpack.c.l.b16 %v785
        %v1899 = vunpack.c.h.b16 %v785
        %v1900 = vunpack.c.l.b16 %v786
        %v1901 = vunpack.c.h.b16 %v786
        %v1902 = vunpack.c.l.b16 %v787
        %v1903 = vunpack.c.h.b16 %v787
        %v1904 = vunpack.c.l.b16 %v788
        %v1905 = vunpack.c.h.b16 %v788
        %v1906 = vunpack.c.l.b16 %v789
        %v1907 = vunpack.c.h.b16 %v789
        %v1908 = vunpack.c.l.b16 %v790
        %v1909 = vunpack.c.h.b16 %v790
        %v1910 = vunpack.c.l.b16 %v791
        %v1911 = vunpack.c.h.b16 %v791
        %v1912 = vunpack.c.l.b16 %v792
        %v1913 = vunpack.c.h.b16 %v792
        %v1914 = vunpack.c.l.b16 %v793
        %v1915 = vunpack.c.h.b16 %v793
        %v1916 = vunpack.c.l.b16 %v794
        %v1917 = vunpack.c.h.b16 %v794
        %v1918 = vunpack.c.l.b16 %v795
        %v1919 = vunpack.c.h.b16 %v795
        %v1920 = vunpack.c.l.b16 %v796
        %v1921 = vunpack.c.h.b16 %v796
        %v1922 = vunpack.c.l.b16 %v797
        %v1923 = vunpack.c.h.b16 %v797
        %v1924 = vunpack.c.l.b16 %v798
        %v1925 = vunpack.c.h.b16 %v798
        %v1926 = vunpack.c.l.b16 %v799
        %v1927 = vunpack.c.h.b16 %v799
        %v1928 = vunpack.c.l.b16 %v800
        %v1929 = vunpack.c.h.b16 %v800
        %v1930 = vunpack.c.l.b16 %v801
        %v1931 = vunpack.c.h.b16 %v801
        %v1932 = vunpack.c.l.b16 %v802
        %v1933 = vunpack.c.h.b16 %v802
        %v1934 = vunpack.c.l.b16 %v803
        %v1935 = vunpack.c.h.b16 %v803
        %v1936 = vunpack.c.l.b16 %v804
        %v1937 = vunpack.c.h.b16 %v804
        %v1938 = vunpack.c.l.b16 %v805
        %v1939 = vunpack.c.h.b16 %v805
        %v1940 = vunpack.c.l.b16 %v806
        %v1941 = vunpack.c.h.b16 %v806
        %v1942 = vunpack.c.l.b16 %v807
        %v1943 = vunpack.c.h.b16 %v807
        %v1944 = vunpack.c.l.b16 %v808
        %v1945 = vunpack.c.h.b16 %v808
        %v1946 = vunpack.c.l.b16 %v809
        %v1947 = vunpack.c.h.b16 %v809
        %v1948 = vunpack.c.l.b16 %v810
        %v1949 = vunpack.c.h.b16 %v810
        %v1950 = vunpack.c.l.b16 %v811
        %v1951 = vunpack.c.h.b16 %v811
        %v1952 = vunpack.c.l.b16 %v812
        %v1953 = vunpack.c.h.b16 %v812
        %v1954 = vunpack.c.l.b16 %v813
        %v1955 = vunpack.c.h.b16 %v813
        %v1956 = vunpack.c.l.b16 %v814
        %v1957 = vunpack.c.h.b16 %v814
        %v1958 = vunpack.c.l.b16 %v815
        %v1959 = vunpack.c.h.b16 %v815
        %v1960 = vunpack.c.l.b16 %v816
        %v1961 = vunpack.c.h.b16 %v816
        %v1962 = vunpack.c.l.b16 %v817
        %v1963 = vunpack.c.h.b16 %v817
        %v1964 = vunpack.c.l.b16 %v818
        %v1965 = vunpack.c.h.b16 %v818
        %v1966 = vunpack.c.l.b16 %v819
        %v1967 = vunpack.c.h.b16 %v819
        %v1968 = vunpack.c.l.b16 %v820
        %v1969 = vunpack.c.h.b16 %v820
        %v1970 = vunpack.c.l.b16 %v821
        %v1971 = vunpack.c.h.b16 %v821
        %v1972 = vunpack.c.l.b16 %v822
        %v1973 = vunpack.c.h.b16 %v822
        %v1974 = vunpack.c.l.b16 %v823
        %v1975 = vunpack.c.h.b16 %v823
        %v1976 = vunpack.c.l.b16 %v824
        %v1977 = vunpack.c.h.b16 %v824
        %v1978 = vunpack.c.l.b16 %v825
        %v1979 = vunpack.c.h.b16 %v825
        %v1980 = vunpack.c.l.b16 %v826
        %v1981 = vunpack.c.h.b16 %v826
        %v1982 = vunpack.c.l.b16 %v827
        %v1983 = vunpack.c.h.b16 %v827
        %v1984 = vunpack.c.l.b16 %v828
        %v1985 = vunpack.c.h.b16 %v828
        %v1986 = vunpack.c.l.b16 %v829
        %v1987 = vunpack.c.h.b16 %v829
        %v1988 = vunpack.c.l.b16 %v830
        %v1989 = vunpack.c.h.b16 %v830
        %v1990 = vunpack.c.l.b16 %v831
        %v1991 = vunpack.c.h.b16 %v831
        %v1992 = vunpack.c.l.b16 %v832
        %v1993 = vunpack.c.h.b16 %v832
        %v1994 = vunpack.c.l.b16 %v833
        %v1995 = vunpack.c.h.b16 %v833
        %v1996 = vunpack.c.l.b16 %v834
        %v1997 = vunpack.c.h.b16 %v834
        %v1998 = vunpack.c.l.b16 %v835
        %v1999 = vunpack.c.h.b16 %v835
        %v2000 = vunpack.c.l.b16 %v836
        %v2001 = vunpack.c.h.b16 %v836
        %v2002 = vunpack.c.l.b16 %v837
        %v2003 = vunpack.c.h.b16 %v837
        %v2004 = vunpack.c.l.b16 %v838
        %v2005 = vunpack.c.h.b16 %v838
        %v2006 = vunpack.c.l.b16 %v839
        %v2007 = vunpack.c.h.b16 %v839
        %v2008 = vunpack.c.l.b16 %v840
        %v2009 = vunpack.c.h.b16 %v840
        %v2010 = vunpack.c.l.b16 %v841
        %v2011 = vunpack.c.h.b16 %v841
        %v2012 = vunpack.c.l.b16 %v842
        %v2013 = vunpack.c.h.b16 %v842
        %v2014 = vunpack.c.l.b16 %v843
        %v2015 = vunpack.c.h.b16 %v843
        %v2016 = vunpack.c.l.b16 %v844
        %v2017 = vunpack.c.h.b16 %v844
        %v2018 = vunpack.c.l.b16 %v845
        %v2019 = vunpack.c.h.b16 %v845
        %v2020 = vunpack.c.l.b16 %v846
        %v2021 = vunpack.c.h.b16 %v846
        %v2022 = vunpack.c.l.b16 %v847
        %v2023 = vunpack.c.h.b16 %v847
        %v2024 = vunpack.c.l.b16 %v848
        %v2025 = vunpack.c.h.b16 %v848
        %v2026 = vunpack.c.l.b16 %v849
        %v2027 = vunpack.c.h.b16 %v849
        %v2028 = vunpack.c.l.b16 %v850
        %v2029 = vunpack.c.h.b16 %v850
        %v2030 = vunpack.c.l.b16 %v851
        %v2031 = vunpack.c.h.b16 %v851
        %v2032 = vunpack.c.l.b16 %v852
        %v2033 = vunpack.c.h.b16 %v852
        %v2034 = vunpack.c.l.b16 %v853
        %v2035 = vunpack.c.h.b16 %v853
        %v2036 = vunpack.c.l.b16 %v854
        %v2037 = vunpack.c.h.b16 %v854
        %v2038 = vunpack.c.l.b16 %v855
        %v2039 = vunpack.c.h.b16 %v855
        %v2040 = vunpack.c.l.b16 %v856
        %v2041 = vunpack.c.h.b16 %v856
        %v2042 = vunpack.c.l.b16 %v857
        %v2043 = vunpack.c.h.b16 %v857
        %v2044 = vunpack.c.l.b16 %v858
        %v2045 = vunpack.c.h.b16 %v858
        %v2046 = vunpack.c.l.b16 %v859
        %v2047 = vunpack.c.h.b16 %v859
        %v2048 = vunpack.c.l.b16 %v860
        %v2049 = vunpack.c.h.b16 %v860
        %v2050 = vunpack.c.l.b16 %v861
        %v2051 = vunpack.c.h.b16 %v861
        %v2052 = vunpack.c.l.b16 %v862
        %v2053 = vunpack.c.h.b16 %v862
        %v2054 = vunpack.c.l.b16 %v863
        %v2055 = vunpack.c.h.b16 %v863
        %v2056 = vunpack.c.l.b16 %v864
        %v2057 = vunpack.c.h.b16 %v864
        %v2058 = vunpack.c.l.b16 %v865
        %v2059 = vunpack.c.h.b16 %v865
        %v2060 = vunpack.c.l.b16 %v866
        %v2061 = vunpack.c.h.b16 %v866
        %v2062 = vunpack.c.l.b16 %v867
        %v2063 = vunpack.c.h.b16 %v867
        %v2064 = vunpack.c.l.b16 %v868
        %v2065 = vunpack.c.h.b16 %v868
        %v2066 = vunpack.c.l.b16 %v869
        %v2067 = vunpack.c.h.b16 %v869
        %v2068 = vunpack.c.l.b16 %v870
        %v2069 = vunpack.c.h.b16 %v870
        %v2070 = vunpack.c.l.b16 %v871
        %v2071 = vunpack.c.h.b16 %v871
        %v2072 = vunpack.c.l.b16 %v872
        %v2073 = vunpack.c.h.b16 %v872
        %v2074 = vunpack.c.l.b16 %v873
        %v2075 = vunpack.c.h.b16 %v873
        %v2076 = vunpack.c.l.b16 %v874
        %v2077 = vunpack.c.h.b16 %v874
        %v2078 = vunpack.c.l.b16 %v875
        %v2079 = vunpack.c.h.b16 %v875
        %v2080 = vunpack.c.l.b16 %v876
        %v2081 = vunpack.c.h.b16 %v876
        %v2082 = vunpack.c.l.b16 %v877
        %v2083 = vunpack.c.h.b16 %v877
        %v2084 = vunpack.c.l.b16 %v878
        %v2085 = vunpack.c.h.b16 %v878
        %v2086 = vunpack.c.l.b16 %v879
        %v2087 = vunpack.c.h.b16 %v879
        %v2088 = vunpack.c.l.b16 %v880
        %v2089 = vunpack.c.h.b16 %v880
        %v2090 = vunpack.c.l.b16 %v881
        %v2091 = vunpack.c.h.b16 %v881
        %v2092 = vunpack.c.l.b16 %v882
        %v2093 = vunpack.c.h.b16 %v882
        %v2094 = vunpack.c.l.b16 %v883
        %v2095 = vunpack.c.h.b16 %v883
        %v2096 = vunpack.c.l.b16 %v884
        %v2097 = vunpack.c.h.b16 %v884
        %v2098 = vunpack.c.l.b16 %v885
        %v2099 = vunpack.c.h.b16 %v885
        %v2100 = vunpack.c.l.b16 %v886
        %v2101 = vunpack.c.h.b16 %v886
        %v2102 = vunpack.c.l.b16 %v887
        %v2103 = vunpack.c.h.b16 %v887
        %v2104 = vunpack.c.l.b16 %v888
        %v2105 = vunpack.c.h.b16 %v888
        %v2106 = vunpack.c.l.b16 %v889
        %v2107 = vunpack.c.h.b16 %v889
        %v2108 = vunpack.c.l.b16 %v890
        %v2109 = vunpack.c.h.b16 %v890
        %v2110 = vunpack.c.l.b16 %v891
        %v2111 = vunpack.c.h.b16 %v891
        %v2112 = vunpack.c.l.b16 %v892
        %v2113 = vunpack.c.h.b16 %v892
        %v2114 = vunpack.c.l.b16 %v893
        %v2115 = vunpack.c.h.b16 %v893
        %v2116 = vunpack.c.l.b16 %v894
        %v2117 = vunpack.c.h.b16 %v894
        %v2118 = vunpack.c.l.b16 %v895
        %v2119 = vunpack.c.h.b16 %v895
        %v2120 = vunpack.c.l.b16 %v896
        %v2121 = vunpack.c.h.b16 %v896
        %v2122 = vunpack.c.l.b16 %v897
        %v2123 = vunpack.c.h.b16 %v897
        %v2124 = vunpack.c.l.b16 %v898
        %v2125 = vunpack.c.h.b16 %v898
        %v2126 = vunpack.c.l.b16 %v899
        %v2127 = vunpack.c.h.b16 %v899
        %v2128 = vunpack.c.l.b16 %v900
        %v2129 = vunpack.c.h.b16 %v900
        %v2130 = vunpack.c.l.b16 %v901
        %v2131 = vunpack.c.h.b16 %v901
        %v2132 = vunpack.c.l.b16 %v902
        %v2133 = vunpack.c.h.b16 %v902
        %v2134 = vunpack.c.l.b16 %v903
        %v2135 = vunpack.c.h.b16 %v903
        %v2136 = vunpack.c.l.b16 %v904
        %v2137 = vunpack.c.h.b16 %v904
        %v2138 = vunpack.c.l.b16 %v905
        %v2139 = vunpack.c.h.b16 %v905
        %v2140 = vunpack.c.l.b16 %v906
        %v2141 = vunpack.c.h.b16 %v906
        %v2142 = vunpack.c.l.b16 %v907
        %v2143 = vunpack.c.h.b16 %v907
        %v2144 = vunpack.c.l.b16 %v908
        %v2145 = vunpack.c.h.b16 %v908
        %v2146 = vunpack.c.l.b16 %v909
        %v2147 = vunpack.c.h.b16 %v909
        %v2148 = vunpack.c.l.b16 %v910
        %v2149 = vunpack.c.h.b16 %v910
        %v2150 = vunpack.c.l.b16 %v911
        %v2151 = vunpack.c.h.b16 %v911
        %v2152 = vunpack.c.l.b16 %v912
        %v2153 = vunpack.c.h.b16 %v912
        %v2154 = vunpack.c.l.b16 %v913
        %v2155 = vunpack.c.h.b16 %v913
        %v2156 = vunpack.c.l.b16 %v914
        %v2157 = vunpack.c.h.b16 %v914
        %v2158 = vunpack.c.l.b16 %v915
        %v2159 = vunpack.c.h.b16 %v915
        %v2160 = vunpack.c.l.b16 %v916
        %v2161 = vunpack.c.h.b16 %v916
        %v2162 = vunpack.c.l.b16 %v917
        %v2163 = vunpack.c.h.b16 %v917
        %v2164 = vunpack.c.l.b16 %v918
        %v2165 = vunpack.c.h.b16 %v918
        %v2166 = vunpack.c.l.b16 %v919
        %v2167 = vunpack.c.h.b16 %v919
        %v2168 = vunpack.c.l.b16 %v920
        %v2169 = vunpack.c.h.b16 %v920
        %v2170 = vunpack.c.l.b16 %v921
        %v2171 = vunpack.c.h.b16 %v921
        %v2172 = vunpack.c.l.b16 %v922
        %v2173 = vunpack.c.h.b16 %v922
        %v2174 = vunpack.c.l.b16 %v923
        %v2175 = vunpack.c.h.b16 %v923
        %v2176 = vunpack.c.l.b16 %v924
        %v2177 = vunpack.c.h.b16 %v924
        %v2178 = vunpack.c.l.b16 %v925
        %v2179 = vunpack.c.h.b16 %v925
        %v2180 = vunpack.c.l.b16 %v926
        %v2181 = vunpack.c.h.b16 %v926
        %v2182 = vunpack.c.l.b16 %v927
        %v2183 = vunpack.c.h.b16 %v927
        %v2184 = vunpack.c.l.b16 %v928
        %v2185 = vunpack.c.h.b16 %v928
        %v2186 = vunpack.c.l.b16 %v929
        %v2187 = vunpack.c.h.b16 %v929
        %v2188 = vpack.c.b16 %v1744, %v1740
        %v2189 = vpack.c.b16 %v1745, %v1741
        %v2190 = vpack.c.b16 %v1746, %v1742
        %v2191 = vpack.c.b16 %v1747, %v1743
        %v2192 = vpack.c.b16 %v1752, %v1748
        %v2193 = vpack.c.b16 %v1753, %v1749
        %v2194 = vpack.c.b16 %v1754, %v1750
        %v2195 = vpack.c.b16 %v1755, %v1751
        %v2196 = vpack.c.b16 %v1760, %v1756
        %v2197 = vpack.c.b16 %v1761, %v1757
        %v2198 = vpack.c.b16 %v1762, %v1758
        %v2199 = vpack.c.b16 %v1763, %v1759
        %v2200 = vpack.c.b16 %v1768, %v1764
        %v2201 = vpack.c.b16 %v1769, %v1765
        %v2202 = vpack.c.b16 %v1770, %v1766
        %v2203 = vpack.c.b16 %v1771, %v1767
        %v2204 = vpack.c.b16 %v1776, %v1772
        %v2205 = vpack.c.b16 %v1777, %v1773
        %v2206 = vpack.c.b16 %v1778, %v1774
        %v2207 = vpack.c.b16 %v1779, %v1775
        %v2208 = vpack.c.b16 %v1784, %v1780
        %v2209 = vpack.c.b16 %v1785, %v1781
        %v2210 = vpack.c.b16 %v1786, %v1782
        %v2211 = vpack.c.b16 %v1787, %v1783
        %v2212 = vpack.c.b16 %v1792, %v1788
        %v2213 = vpack.c.b16 %v1793, %v1789
        %v2214 = vpack.c.b16 %v1794, %v1790
        %v2215 = vpack.c.b16 %v1795, %v1791
        %v2216 = vpack.c.b16 %v1800, %v1796
        %v2217 = vpack.c.b16 %v1801, %v1797
        %v2218 = vpack.c.b16 %v1802, %v1798
        %v2219 = vpack.c.b16 %v1803, %v1799
        %v2220 = vpack.c.b16 %v1808, %v1804
        %v2221 = vpack.c.b16 %v1809, %v1805
        %v2222 = vpack.c.b16 %v1810, %v1806
        %v2223 = vpack.c.b16 %v1811, %v1807
        %v2224 = vpack.c.b16 %v1816, %v1812
        %v2225 = vpack.c.b16 %v1817, %v1813
        %v2226 = vpack.c.b16 %v1818, %v1814
        %v2227 = vpack.c.b16 %v1819, %v1815
        %v2228 = vpack.c.b16 %v1824, %v1820
        %v2229 = vpack.c.b16 %v1825, %v1821
        %v2230 = vpack.c.b16 %v1826, %v1822
        %v2231 = vpack.c.b16 %v1827, %v1823
        %v2232 = vpack.c.b16 %v1832, %v1828
        %v2233 = vpack.c.b16 %v1833, %v1829
        %v2234 = vpack.c.b16 %v1834, %v1830
        %v2235 = vpack.c.b16 %v1835, %v1831
        %v2236 = vpack.c.b16 %v1840, %v1836
        %v2237 = vpack.c.b16 %v1841, %v1837
        %v2238 = vpack.c.b16 %v1842, %v1838
        %v2239 = vpack.c.b16 %v1843, %v1839
        %v2240 = vpack.c.b16 %v1848, %v1844
        %v2241 = vpack.c.b16 %v1849, %v1845
        %v2242 = vpack.c.b16 %v1850, %v1846
        %v2243 = vpack.c.b16 %v1851, %v1847
        %v2244 = vpack.c.b16 %v1856, %v1852
        %v2245 = vpack.c.b16 %v1857, %v1853
        %v2246 = vpack.c.b16 %v1858, %v1854
        %v2247 = vpack.c.b16 %v1859, %v1855
        %v2248 = vpack.c.b16 %v1864, %v1860
        %v2249 = vpack.c.b16 %v1865, %v1861
        %v2250 = vpack.c.b16 %v1866, %v1862
        %v2251 = vpack.c.b16 %v1867, %v1863
        %v2252 = vpack.c.b16 %v1872, %v1868
        %v2253 = vpack.c.b16 %v1873, %v1869
        %v2254 = vpack.c.b16 %v1874, %v1870
        %v2255 = vpack.c.b16 %v1875, %v1871
        %v2256 = vpack.c.b16 %v1880, %v1876
        %v2257 = vpack.c.b16 %v1881, %v1877
        %v2258 = vpack.c.b16 %v1882, %v1878
        %v2259 = vpack.c.b16 %v1883, %v1879
        %v2260 = vpack.c.b16 %v1888, %v1884
        %v2261 = vpack.c.b16 %v1889, %v1885
        %v2262 = vpack.c.b16 %v1890, %v1886
        %v2263 = vpack.c.b16 %v1891, %v1887
        %v2264 = vpack.c.b16 %v1896, %v1892
        %v2265 = vpack.c.b16 %v1897, %v1893
        %v2266 = vpack.c.b16 %v1898, %v1894
        %v2267 = vpack.c.b16 %v1899, %v1895
        %v2268 = vpack.c.b16 %v1904, %v1900
        %v2269 = vpack.c.b16 %v1905, %v1901
        %v2270 = vpack.c.b16 %v1906, %v1902
        %v2271 = vpack.c.b16 %v1907, %v1903
        %v2272 = vpack.c.b16 %v1912, %v1908
        %v2273 = vpack.c.b16 %v1913, %v1909
        %v2274 = vpack.c.b16 %v1914, %v1910
        %v2275 = vpack.c.b16 %v1915, %v1911
        %v2276 = vpack.c.b16 %v1920, %v1916
        %v2277 = vpack.c.b16 %v1921, %v1917
        %v2278 = vpack.c.b16 %v1922, %v1918
        %v2279 = vpack.c.b16 %v1923, %v1919
        %v2280 = vpack.c.b16 %v1928, %v1924
        %v2281 = vpack.c.b16 %v1929, %v1925
        %v2282 = vpack.c.b16 %v1930, %v1926
        %v2283 = vpack.c.b16 %v1931, %v1927
        %v2284 = vpack.c.b16 %v1936, %v1932
        %v2285 = vpack.c.b16 %v1937, %v1933
        %v2286 = vpack.c.b16 %v1938, %v1934
        %v2287 = vpack.c.b16 %v1939, %v1935
        %v2288 = vpack.c.b16 %v1944, %v1940
        %v2289 = vpack.c.b16 %v1945, %v1941
        %v2290 = vpack.c.b16 %v1946, %v1942
        %v2291 = vpack.c.b16 %v1947, %v1943
        %v2292 = vpack.c.b16 %v1952, %v1948
        %v2293 = vpack.c.b16 %v1953, %v1949
        %v2294 = vpack.c.b16 %v1954, %v1950
        %v2295 = vpack.c.b16 %v1955, %v1951
        %v2296 = vpack.c.b16 %v1960, %v1956
        %v2297 = vpack.c.b16 %v1961, %v1957
        %v2298 = vpack.c.b16 %v1962, %v1958
        %v2299 = vpack.c.b16 %v1963, %v1959
        %v2300 = vpack.c.b16 %v1968, %v1964
        %v2301 = vpack.c.b16 %v1969, %v1965
        %v2302 = vpack.c.b16 %v1970, %v1966
        %v2303 = vpack.c.b16 %v1971, %v1967
        %v2304 = vpack.c.b16 %v1976, %v1972
        %v2305 = vpack.c.b16 %v1977, %v1973
        %v2306 = vpack.c.b16 %v1978, %v1974
        %v2307 = vpack.c.b16 %v1979, %v1975
        %v2308 = vpack.c.b16 %v1984, %v1980
        %v2309 = vpack.c.b16 %v1985, %v1981
        %v2310 = vpack.c.b16 %v1986, %v1982
        %v2311 = vpack.c.b16 %v1987, %v1983
        %v2312 = vpack.c.b16 %v1992, %v1988
        %v2313 = vpack.c.b16 %v1993, %v1989
        %v2314 = vpack.c.b16 %v1994, %v1990
        %v2315 = vpack.c.b16 %v1995, %v1991
        %v2316 = vpack.c.b16 %v2000, %v1996
        %v2317 = vpack.c.b16 %v2001, %v1997
        %v2318 = vpack.c.b16 %v2002, %v1998
        %v2319 = vpack.c.b16 %v2003, %v1999
        %v2320 = vpack.c.b16 %v2008, %v2004
        %v2321 = vpack.c.b16 %v2009, %v2005
        %v2322 = vpack.c.b16 %v2010, %v2006
        %v2323 = vpack.c.b16 %v2011, %v2007
        %v2324 = vpack.c.b16 %v2016, %v2012
        %v2325 = vpack.c.b16 %v2017, %v2013
        %v2326 = vpack.c.b16 %v2018, %v2014
        %v2327 = vpack.c.b16 %v2019, %v2015
        %v2328 = vpack.c.b16 %v2024, %v2020
        %v2329 = vpack.c.b16 %v2025, %v2021
        %v2330 = vpack.c.b16 %v2026, %v2022
        %v2331 = vpack.c.b16 %v2027, %v2023
        %v2332 = vpack.c.b16 %v2032, %v2028
        %v2333 = vpack.c.b16 %v2033, %v2029
        %v2334 = vpack.c.b16 %v2034, %v2030
        %v2335 = vpack.c.b16 %v2035, %v2031
        %v2336 = vpack.c.b16 %v2040, %v2036
        %v2337 = vpack.c.b16 %v2041, %v2037
        %v2338 = vpack.c.b16 %v2042, %v2038
        %v2339 = vpack.c.b16 %v2043, %v2039
        %v2340 = vpack.c.b16 %v2048, %v2044
        %v2341 = vpack.c.b16 %v2049, %v2045
        %v2342 = vpack.c.b16 %v2050, %v2046
        %v2343 = vpack.c.b16 %v2051, %v2047
        %v2344 = vpack.c.b16 %v2056, %v2052
        %v2345 = vpack.c.b16 %v2057, %v2053
        %v2346 = vpack.c.b16 %v2058, %v2054
        %v2347 = vpack.c.b16 %v2059, %v2055
        %v2348 = vpack.c.b16 %v2064, %v2060
        %v2349 = vpack.c.b16 %v2065, %v2061
        %v2350 = vpack.c.b16 %v2066, %v2062
        %v2351 = vpack.c.b16 %v2067, %v2063
        %v2352 = vpack.c.b16 %v2072, %v2068
        %v2353 = vpack.c.b16 %v2073, %v2069
        %v2354 = vpack.c.b16 %v2074, %v2070
        %v2355 = vpack.c.b16 %v2075, %v2071
        %v2356 = vpack.c.b16 %v2080, %v2076
        %v2357 = vpack.c.b16 %v2081, %v2077
        %v2358 = vpack.c.b16 %v2082, %v2078
        %v2359 = vpack.c.b16 %v2083, %v2079
        %v2360 = vpack.c.b16 %v2088, %v2084
        %v2361 = vpack.c.b16 %v2089, %v2085
        %v2362 = vpack.c.b16 %v2090, %v2086
        %v2363 = vpack.c.b16 %v2091, %v2087
        %v2364 = vpack.c.b16 %v2096, %v2092
        %v2365 = vpack.c.b16 %v2097, %v2093
        %v2366 = vpack.c.b16 %v2098, %v2094
        %v2367 = vpack.c.b16 %v2099, %v2095
        %v2368 = vpack.c.b16 %v2104, %v2100
        %v2369 = vpack.c.b16 %v2105, %v2101
        %v2370 = vpack.c.b16 %v2106, %v2102
        %v2371 = vpack.c.b16 %v2107, %v2103
        %v2372 = vpack.c.b16 %v2112, %v2108
        %v2373 = vpack.c.b16 %v2113, %v2109
        %v2374 = vpack.c.b16 %v2114, %v2110
        %v2375 = vpack.c.b16 %v2115, %v2111
        %v2376 = vpack.c.b16 %v2120, %v2116
        %v2377 = vpack.c.b16 %v2121, %v2117
        %v2378 = vpack.c.b16 %v2122, %v2118
        %v2379 = vpack.c.b16 %v2123, %v2119
        %v2380 = vpack.c.b16 %v2128, %v2124
        %v2381 = vpack.c.b16 %v2129, %v2125
        %v2382 = vpack.c.b16 %v2130, %v2126
        %v2383 = vpack.c.b16 %v2131, %v2127
        %v2384 = vpack.c.b16 %v2136, %v2132
        %v2385 = vpack.c.b16 %v2137, %v2133
        %v2386 = vpack.c.b16 %v2138, %v2134
        %v2387 = vpack.c.b16 %v2139, %v2135
        %v2388 = vpack.c.b16 %v2144, %v2140
        %v2389 = vpack.c.b16 %v2145, %v2141
        %v2390 = vpack.c.b16 %v2146, %v2142
        %v2391 = vpack.c.b16 %v2147, %v2143
        %v2392 = vpack.c.b16 %v2152, %v2148
        %v2393 = vpack.c.b16 %v2153, %v2149
        %v2394 = vpack.c.b16 %v2154, %v2150
        %v2395 = vpack.c.b16 %v2155, %v2151
        %v2396 = vpack.c.b16 %v2160, %v2156
        %v2397 = vpack.c.b16 %v2161, %v2157
        %v2398 = vpack.c.b16 %v2162, %v2158
        %v2399 = vpack.c.b16 %v2163, %v2159
        %v2400 = vpack.c.b16 %v2168, %v2164
        %v2401 = vpack.c.b16 %v2169, %v2165
        %v2402 = vpack.c.b16 %v2170, %v2166
        %v2403 = vpack.c.b16 %v2171, %v2167
        %v2404 = vpack.c.b16 %v2176, %v2172
        %v2405 = vpack.c.b16 %v2177, %v2173
        %v2406 = vpack.c.b16 %v2178, %v2174
        %v2407 = vpack.c.b16 %v2179, %v2175
        %v2408 = vpack.c.b16 %v2184, %v2180
        %v2409 = vpack.c.b16 %v2185, %v2181
        %v2410 = vpack.c.b16 %v2186, %v2182
        %v2411 = vpack.c.b16 %v2187, %v2183
        %2636 = vmatpush.bf16.msra.mxu0 %v2216
        %2637 = vmatpush.bf16.msra.mxu0 %v2212
        %2638 = vmatpush.bf16.msra.mxu0 %v2208
        %2639 = vmatpush.bf16.msra.mxu0 %v2204
        %2640 = vmatpush.bf16.msra.mxu0 %v2200
        %2641 = vmatpush.bf16.msra.mxu0 %v2196
        %2642 = vmatpush.bf16.msra.mxu0 %v2192
        %2643 = vmatpush.bf16.msra.mxu0 %v2188
        %2644 = vmatmul.bf16.gmra.mxu0 %v1292
        %v2645 = vpop.f32.mrf.mxu0
        %v2646 = vadd.f32 %v932, %v2645
        %v2647 = vpop.f32.mrf.mxu0
        %v2648 = vadd.f32 %v932, %v2647
        %2649 = vmatmul.bf16.gmra.mxu0 %v1299
        %v2650 = vpop.f32.mrf.mxu0
        %v2651 = vadd.f32 %v932, %v2650
        %v2652 = vpop.f32.mrf.mxu0
        %v2653 = vadd.f32 %v932, %v2652
        %2654 = vmatmul.bf16.gmra.mxu0 %v1306
        %v2655 = vpop.f32.mrf.mxu0
        %v2656 = vadd.f32 %v932, %v2655
        %v2657 = vpop.f32.mrf.mxu0
        %v2658 = vadd.f32 %v932, %v2657
        %2659 = vmatmul.bf16.gmra.mxu0 %v1313
        %v2660 = vpop.f32.mrf.mxu0
        %v2661 = vadd.f32 %v932, %v2660
        %v2662 = vpop.f32.mrf.mxu0
        %v2663 = vadd.f32 %v932, %v2662
        %2664 = vmatmul.bf16.gmra.mxu0 %v1320
        %v2665 = vpop.f32.mrf.mxu0
        %v2666 = vadd.f32 %v932, %v2665
        %v2667 = vpop.f32.mrf.mxu0
        %v2668 = vadd.f32 %v932, %v2667
        %2669 = vmatmul.bf16.gmra.mxu0 %v1327
        %v2670 = vpop.f32.mrf.mxu0
        %v2671 = vadd.f32 %v932, %v2670
        %v2672 = vpop.f32.mrf.mxu0
        %v2673 = vadd.f32 %v932, %v2672
        %2674 = vmatmul.bf16.gmra.mxu0 %v1334
        %v2675 = vpop.f32.mrf.mxu0
        %v2676 = vadd.f32 %v932, %v2675
        %v2677 = vpop.f32.mrf.mxu0
        %v2678 = vadd.f32 %v932, %v2677
        %2679 = vmatmul.bf16.gmra.mxu0 %v1341
        %v2680 = vpop.f32.mrf.mxu0
        %v2681 = vadd.f32 %v932, %v2680
        %v2682 = vpop.f32.mrf.mxu0
        %v2683 = vadd.f32 %v932, %v2682
        %2684 = vmatmul.bf16.gmra.mxu0 %v1348
        %v2685 = vpop.f32.mrf.mxu0
        %v2686 = vadd.f32 %v932, %v2685
        %v2687 = vpop.f32.mrf.mxu0
        %v2688 = vadd.f32 %v932, %v2687
        %2689 = vmatmul.bf16.gmra.mxu0 %v1355
        %v2690 = vpop.f32.mrf.mxu0
        %v2691 = vadd.f32 %v932, %v2690
        %v2692 = vpop.f32.mrf.mxu0
        %v2693 = vadd.f32 %v932, %v2692
        %2694 = vmatmul.bf16.gmra.mxu0 %v1362
        %v2695 = vpop.f32.mrf.mxu0
        %v2696 = vadd.f32 %v932, %v2695
        %v2697 = vpop.f32.mrf.mxu0
        %v2698 = vadd.f32 %v932, %v2697
        %2699 = vmatmul.bf16.gmra.mxu0 %v1369
        %v2700 = vpop.f32.mrf.mxu0
        %v2701 = vadd.f32 %v932, %v2700
        %v2702 = vpop.f32.mrf.mxu0
        %v2703 = vadd.f32 %v932, %v2702
        %2704 = vmatmul.bf16.gmra.mxu0 %v1376
        %v2705 = vpop.f32.mrf.mxu0
        %v2706 = vadd.f32 %v932, %v2705
        %v2707 = vpop.f32.mrf.mxu0
        %v2708 = vadd.f32 %v932, %v2707
        %2709 = vmatmul.bf16.gmra.mxu0 %v1383
        %v2710 = vpop.f32.mrf.mxu0
        %v2711 = vadd.f32 %v932, %v2710
        %v2712 = vpop.f32.mrf.mxu0
        %v2713 = vadd.f32 %v932, %v2712
        %2714 = vmatmul.bf16.gmra.mxu0 %v1390
        %v2715 = vpop.f32.mrf.mxu0
        %v2716 = vadd.f32 %v932, %v2715
        %v2717 = vpop.f32.mrf.mxu0
        %v2718 = vadd.f32 %v932, %v2717
        %2719 = vmatmul.bf16.gmra.mxu0 %v1397
        %v2720 = vpop.f32.mrf.mxu0
        %v2721 = vadd.f32 %v932, %v2720
        %v2722 = vpop.f32.mrf.mxu0
        %v2723 = vadd.f32 %v932, %v2722
        %2724 = vdwg.mxu0
        %2725 = vmatpush.bf16.msra.mxu0 %v2248
        %2726 = vmatpush.bf16.msra.mxu0 %v2244
        %2727 = vmatpush.bf16.msra.mxu0 %v2240
        %2728 = vmatpush.bf16.msra.mxu0 %v2236
        %2729 = vmatpush.bf16.msra.mxu0 %v2232
        %2730 = vmatpush.bf16.msra.mxu0 %v2228
        %2731 = vmatpush.bf16.msra.mxu0 %v2224
        %2732 = vmatpush.bf16.msra.mxu0 %v2220
        %2733 = vmatmul.bf16.gmra.mxu0 %v1293
        %v2734 = vpop.f32.mrf.mxu0
        %v2735 = vadd.f32 %v2646, %v2734
        %v2736 = vpop.f32.mrf.mxu0
        %v2737 = vadd.f32 %v2648, %v2736
        %2738 = vmatmul.bf16.gmra.mxu0 %v1300
        %v2739 = vpop.f32.mrf.mxu0
        %v2740 = vadd.f32 %v2651, %v2739
        %v2741 = vpop.f32.mrf.mxu0
        %v2742 = vadd.f32 %v2653, %v2741
        %2743 = vmatmul.bf16.gmra.mxu0 %v1307
        %v2744 = vpop.f32.mrf.mxu0
        %v2745 = vadd.f32 %v2656, %v2744
        %v2746 = vpop.f32.mrf.mxu0
        %v2747 = vadd.f32 %v2658, %v2746
        %2748 = vmatmul.bf16.gmra.mxu0 %v1314
        %v2749 = vpop.f32.mrf.mxu0
        %v2750 = vadd.f32 %v2661, %v2749
        %v2751 = vpop.f32.mrf.mxu0
        %v2752 = vadd.f32 %v2663, %v2751
        %2753 = vmatmul.bf16.gmra.mxu0 %v1321
        %v2754 = vpop.f32.mrf.mxu0
        %v2755 = vadd.f32 %v2666, %v2754
        %v2756 = vpop.f32.mrf.mxu0
        %v2757 = vadd.f32 %v2668, %v2756
        %2758 = vmatmul.bf16.gmra.mxu0 %v1328
        %v2759 = vpop.f32.mrf.mxu0
        %v2760 = vadd.f32 %v2671, %v2759
        %v2761 = vpop.f32.mrf.mxu0
        %v2762 = vadd.f32 %v2673, %v2761
        %2763 = vmatmul.bf16.gmra.mxu0 %v1335
        %v2764 = vpop.f32.mrf.mxu0
        %v2765 = vadd.f32 %v2676, %v2764
        %v2766 = vpop.f32.mrf.mxu0
        %v2767 = vadd.f32 %v2678, %v2766
        %2768 = vmatmul.bf16.gmra.mxu0 %v1342
        %v2769 = vpop.f32.mrf.mxu0
        %v2770 = vadd.f32 %v2681, %v2769
        %v2771 = vpop.f32.mrf.mxu0
        %v2772 = vadd.f32 %v2683, %v2771
        %2773 = vmatmul.bf16.gmra.mxu0 %v1349
        %v2774 = vpop.f32.mrf.mxu0
        %v2775 = vadd.f32 %v2686, %v2774
        %v2776 = vpop.f32.mrf.mxu0
        %v2777 = vadd.f32 %v2688, %v2776
        %2778 = vmatmul.bf16.gmra.mxu0 %v1356
        %v2779 = vpop.f32.mrf.mxu0
        %v2780 = vadd.f32 %v2691, %v2779
        %v2781 = vpop.f32.mrf.mxu0
        %v2782 = vadd.f32 %v2693, %v2781
        %2783 = vmatmul.bf16.gmra.mxu0 %v1363
        %v2784 = vpop.f32.mrf.mxu0
        %v2785 = vadd.f32 %v2696, %v2784
        %v2786 = vpop.f32.mrf.mxu0
        %v2787 = vadd.f32 %v2698, %v2786
        %2788 = vmatmul.bf16.gmra.mxu0 %v1370
        %v2789 = vpop.f32.mrf.mxu0
        %v2790 = vadd.f32 %v2701, %v2789
        %v2791 = vpop.f32.mrf.mxu0
        %v2792 = vadd.f32 %v2703, %v2791
        %2793 = vmatmul.bf16.gmra.mxu0 %v1377
        %v2794 = vpop.f32.mrf.mxu0
        %v2795 = vadd.f32 %v2706, %v2794
        %v2796 = vpop.f32.mrf.mxu0
        %v2797 = vadd.f32 %v2708, %v2796
        %2798 = vmatmul.bf16.gmra.mxu0 %v1384
        %v2799 = vpop.f32.mrf.mxu0
        %v2800 = vadd.f32 %v2711, %v2799
        %v2801 = vpop.f32.mrf.mxu0
        %v2802 = vadd.f32 %v2713, %v2801
        %2803 = vmatmul.bf16.gmra.mxu0 %v1391
        %v2804 = vpop.f32.mrf.mxu0
        %v2805 = vadd.f32 %v2716, %v2804
        %v2806 = vpop.f32.mrf.mxu0
        %v2807 = vadd.f32 %v2718, %v2806
        %2808 = vmatmul.bf16.gmra.mxu0 %v1398
        %v2809 = vpop.f32.mrf.mxu0
        %v2810 = vadd.f32 %v2721, %v2809
        %v2811 = vpop.f32.mrf.mxu0
        %v2812 = vadd.f32 %v2723, %v2811
        %2813 = vdwg.mxu0
        %2814 = vmatpush.bf16.msra.mxu0 %v2280
        %2815 = vmatpush.bf16.msra.mxu0 %v2276
        %2816 = vmatpush.bf16.msra.mxu0 %v2272
        %2817 = vmatpush.bf16.msra.mxu0 %v2268
        %2818 = vmatpush.bf16.msra.mxu0 %v2264
        %2819 = vmatpush.bf16.msra.mxu0 %v2260
        %2820 = vmatpush.bf16.msra.mxu0 %v2256
        %2821 = vmatpush.bf16.msra.mxu0 %v2252
        %2822 = vmatmul.bf16.gmra.mxu0 %v1294
        %v2823 = vpop.f32.mrf.mxu0
        %v2824 = vadd.f32 %v2735, %v2823
        %v2825 = vpop.f32.mrf.mxu0
        %v2826 = vadd.f32 %v2737, %v2825
        %2827 = vmatmul.bf16.gmra.mxu0 %v1301
        %v2828 = vpop.f32.mrf.mxu0
        %v2829 = vadd.f32 %v2740, %v2828
        %v2830 = vpop.f32.mrf.mxu0
        %v2831 = vadd.f32 %v2742, %v2830
        %2832 = vmatmul.bf16.gmra.mxu0 %v1308
        %v2833 = vpop.f32.mrf.mxu0
        %v2834 = vadd.f32 %v2745, %v2833
        %v2835 = vpop.f32.mrf.mxu0
        %v2836 = vadd.f32 %v2747, %v2835
        %2837 = vmatmul.bf16.gmra.mxu0 %v1315
        %v2838 = vpop.f32.mrf.mxu0
        %v2839 = vadd.f32 %v2750, %v2838
        %v2840 = vpop.f32.mrf.mxu0
        %v2841 = vadd.f32 %v2752, %v2840
        %2842 = vmatmul.bf16.gmra.mxu0 %v1322
        %v2843 = vpop.f32.mrf.mxu0
        %v2844 = vadd.f32 %v2755, %v2843
        %v2845 = vpop.f32.mrf.mxu0
        %v2846 = vadd.f32 %v2757, %v2845
        %2847 = vmatmul.bf16.gmra.mxu0 %v1329
        %v2848 = vpop.f32.mrf.mxu0
        %v2849 = vadd.f32 %v2760, %v2848
        %v2850 = vpop.f32.mrf.mxu0
        %v2851 = vadd.f32 %v2762, %v2850
        %2852 = vmatmul.bf16.gmra.mxu0 %v1336
        %v2853 = vpop.f32.mrf.mxu0
        %v2854 = vadd.f32 %v2765, %v2853
        %v2855 = vpop.f32.mrf.mxu0
        %v2856 = vadd.f32 %v2767, %v2855
        %2857 = vmatmul.bf16.gmra.mxu0 %v1343
        %v2858 = vpop.f32.mrf.mxu0
        %v2859 = vadd.f32 %v2770, %v2858
        %v2860 = vpop.f32.mrf.mxu0
        %v2861 = vadd.f32 %v2772, %v2860
        %2862 = vmatmul.bf16.gmra.mxu0 %v1350
        %v2863 = vpop.f32.mrf.mxu0
        %v2864 = vadd.f32 %v2775, %v2863
        %v2865 = vpop.f32.mrf.mxu0
        %v2866 = vadd.f32 %v2777, %v2865
        %2867 = vmatmul.bf16.gmra.mxu0 %v1357
        %v2868 = vpop.f32.mrf.mxu0
        %v2869 = vadd.f32 %v2780, %v2868
        %v2870 = vpop.f32.mrf.mxu0
        %v2871 = vadd.f32 %v2782, %v2870
        %2872 = vmatmul.bf16.gmra.mxu0 %v1364
        %v2873 = vpop.f32.mrf.mxu0
        %v2874 = vadd.f32 %v2785, %v2873
        %v2875 = vpop.f32.mrf.mxu0
        %v2876 = vadd.f32 %v2787, %v2875
        %2877 = vmatmul.bf16.gmra.mxu0 %v1371
        %v2878 = vpop.f32.mrf.mxu0
        %v2879 = vadd.f32 %v2790, %v2878
        %v2880 = vpop.f32.mrf.mxu0
        %v2881 = vadd.f32 %v2792, %v2880
        %2882 = vmatmul.bf16.gmra.mxu0 %v1378
        %v2883 = vpop.f32.mrf.mxu0
        %v2884 = vadd.f32 %v2795, %v2883
        %v2885 = vpop.f32.mrf.mxu0
        %v2886 = vadd.f32 %v2797, %v2885
        %2887 = vmatmul.bf16.gmra.mxu0 %v1385
        %v2888 = vpop.f32.mrf.mxu0
        %v2889 = vadd.f32 %v2800, %v2888
        %v2890 = vpop.f32.mrf.mxu0
        %v2891 = vadd.f32 %v2802, %v2890
        %2892 = vmatmul.bf16.gmra.mxu0 %v1392
        %v2893 = vpop.f32.mrf.mxu0
        %v2894 = vadd.f32 %v2805, %v2893
        %v2895 = vpop.f32.mrf.mxu0
        %v2896 = vadd.f32 %v2807, %v2895
        %2897 = vmatmul.bf16.gmra.mxu0 %v1399
        %v2898 = vpop.f32.mrf.mxu0
        %v2899 = vadd.f32 %v2810, %v2898
        %v2900 = vpop.f32.mrf.mxu0
        %v2901 = vadd.f32 %v2812, %v2900
        %2902 = vdwg.mxu0
        %2903 = vmatpush.bf16.msra.mxu0 %v2312
        %2904 = vmatpush.bf16.msra.mxu0 %v2308
        %2905 = vmatpush.bf16.msra.mxu0 %v2304
        %2906 = vmatpush.bf16.msra.mxu0 %v2300
        %2907 = vmatpush.bf16.msra.mxu0 %v2296
        %2908 = vmatpush.bf16.msra.mxu0 %v2292
        %2909 = vmatpush.bf16.msra.mxu0 %v2288
        %2910 = vmatpush.bf16.msra.mxu0 %v2284
        %2911 = vmatmul.bf16.gmra.mxu0 %v1295
        %v2912 = vpop.f32.mrf.mxu0
        %v2913 = vadd.f32 %v2824, %v2912
        %v2914 = vpop.f32.mrf.mxu0
        %v2915 = vadd.f32 %v2826, %v2914
        %2916 = vmatmul.bf16.gmra.mxu0 %v1302
        %v2917 = vpop.f32.mrf.mxu0
        %v2918 = vadd.f32 %v2829, %v2917
        %v2919 = vpop.f32.mrf.mxu0
        %v2920 = vadd.f32 %v2831, %v2919
        %2921 = vmatmul.bf16.gmra.mxu0 %v1309
        %v2922 = vpop.f32.mrf.mxu0
        %v2923 = vadd.f32 %v2834, %v2922
        %v2924 = vpop.f32.mrf.mxu0
        %v2925 = vadd.f32 %v2836, %v2924
        %2926 = vmatmul.bf16.gmra.mxu0 %v1316
        %v2927 = vpop.f32.mrf.mxu0
        %v2928 = vadd.f32 %v2839, %v2927
        %v2929 = vpop.f32.mrf.mxu0
        %v2930 = vadd.f32 %v2841, %v2929
        %2931 = vmatmul.bf16.gmra.mxu0 %v1323
        %v2932 = vpop.f32.mrf.mxu0
        %v2933 = vadd.f32 %v2844, %v2932
        %v2934 = vpop.f32.mrf.mxu0
        %v2935 = vadd.f32 %v2846, %v2934
        %2936 = vmatmul.bf16.gmra.mxu0 %v1330
        %v2937 = vpop.f32.mrf.mxu0
        %v2938 = vadd.f32 %v2849, %v2937
        %v2939 = vpop.f32.mrf.mxu0
        %v2940 = vadd.f32 %v2851, %v2939
        %2941 = vmatmul.bf16.gmra.mxu0 %v1337
        %v2942 = vpop.f32.mrf.mxu0
        %v2943 = vadd.f32 %v2854, %v2942
        %v2944 = vpop.f32.mrf.mxu0
        %v2945 = vadd.f32 %v2856, %v2944
        %2946 = vmatmul.bf16.gmra.mxu0 %v1344
        %v2947 = vpop.f32.mrf.mxu0
        %v2948 = vadd.f32 %v2859, %v2947
        %v2949 = vpop.f32.mrf.mxu0
        %v2950 = vadd.f32 %v2861, %v2949
        %2951 = vmatmul.bf16.gmra.mxu0 %v1351
        %v2952 = vpop.f32.mrf.mxu0
        %v2953 = vadd.f32 %v2864, %v2952
        %v2954 = vpop.f32.mrf.mxu0
        %v2955 = vadd.f32 %v2866, %v2954
        %2956 = vmatmul.bf16.gmra.mxu0 %v1358
        %v2957 = vpop.f32.mrf.mxu0
        %v2958 = vadd.f32 %v2869, %v2957
        %v2959 = vpop.f32.mrf.mxu0
        %v2960 = vadd.f32 %v2871, %v2959
        %2961 = vmatmul.bf16.gmra.mxu0 %v1365
        %v2962 = vpop.f32.mrf.mxu0
        %v2963 = vadd.f32 %v2874, %v2962
        %v2964 = vpop.f32.mrf.mxu0
        %v2965 = vadd.f32 %v2876, %v2964
        %2966 = vmatmul.bf16.gmra.mxu0 %v1372
        %v2967 = vpop.f32.mrf.mxu0
        %v2968 = vadd.f32 %v2879, %v2967
        %v2969 = vpop.f32.mrf.mxu0
        %v2970 = vadd.f32 %v2881, %v2969
        %2971 = vmatmul.bf16.gmra.mxu0 %v1379
        %v2972 = vpop.f32.mrf.mxu0
        %v2973 = vadd.f32 %v2884, %v2972
        %v2974 = vpop.f32.mrf.mxu0
        %v2975 = vadd.f32 %v2886, %v2974
        %2976 = vmatmul.bf16.gmra.mxu0 %v1386
        %v2977 = vpop.f32.mrf.mxu0
        %v2978 = vadd.f32 %v2889, %v2977
        %v2979 = vpop.f32.mrf.mxu0
        %v2980 = vadd.f32 %v2891, %v2979
        %2981 = vmatmul.bf16.gmra.mxu0 %v1393
        %v2982 = vpop.f32.mrf.mxu0
        %v2983 = vadd.f32 %v2894, %v2982
        %v2984 = vpop.f32.mrf.mxu0
        %v2985 = vadd.f32 %v2896, %v2984
        %2986 = vmatmul.bf16.gmra.mxu0 %v1400
        %v2987 = vpop.f32.mrf.mxu0
        %v2988 = vadd.f32 %v2899, %v2987
        %v2989 = vpop.f32.mrf.mxu0
        %v2990 = vadd.f32 %v2901, %v2989
        %2991 = vdwg.mxu0
        %2992 = vmatpush.bf16.msra.mxu0 %v2344
        %2993 = vmatpush.bf16.msra.mxu0 %v2340
        %2994 = vmatpush.bf16.msra.mxu0 %v2336
        %2995 = vmatpush.bf16.msra.mxu0 %v2332
        %2996 = vmatpush.bf16.msra.mxu0 %v2328
        %2997 = vmatpush.bf16.msra.mxu0 %v2324
        %2998 = vmatpush.bf16.msra.mxu0 %v2320
        %2999 = vmatpush.bf16.msra.mxu0 %v2316
        %3000 = vmatmul.bf16.gmra.mxu0 %v1296
        %v3001 = vpop.f32.mrf.mxu0
        %v3002 = vadd.f32 %v2913, %v3001
        %v3003 = vpop.f32.mrf.mxu0
        %v3004 = vadd.f32 %v2915, %v3003
        %3005 = vmatmul.bf16.gmra.mxu0 %v1303
        %v3006 = vpop.f32.mrf.mxu0
        %v3007 = vadd.f32 %v2918, %v3006
        %v3008 = vpop.f32.mrf.mxu0
        %v3009 = vadd.f32 %v2920, %v3008
        %3010 = vmatmul.bf16.gmra.mxu0 %v1310
        %v3011 = vpop.f32.mrf.mxu0
        %v3012 = vadd.f32 %v2923, %v3011
        %v3013 = vpop.f32.mrf.mxu0
        %v3014 = vadd.f32 %v2925, %v3013
        %3015 = vmatmul.bf16.gmra.mxu0 %v1317
        %v3016 = vpop.f32.mrf.mxu0
        %v3017 = vadd.f32 %v2928, %v3016
        %v3018 = vpop.f32.mrf.mxu0
        %v3019 = vadd.f32 %v2930, %v3018
        %3020 = vmatmul.bf16.gmra.mxu0 %v1324
        %v3021 = vpop.f32.mrf.mxu0
        %v3022 = vadd.f32 %v2933, %v3021
        %v3023 = vpop.f32.mrf.mxu0
        %v3024 = vadd.f32 %v2935, %v3023
        %3025 = vmatmul.bf16.gmra.mxu0 %v1331
        %v3026 = vpop.f32.mrf.mxu0
        %v3027 = vadd.f32 %v2938, %v3026
        %v3028 = vpop.f32.mrf.mxu0
        %v3029 = vadd.f32 %v2940, %v3028
        %3030 = vmatmul.bf16.gmra.mxu0 %v1338
        %v3031 = vpop.f32.mrf.mxu0
        %v3032 = vadd.f32 %v2943, %v3031
        %v3033 = vpop.f32.mrf.mxu0
        %v3034 = vadd.f32 %v2945, %v3033
        %3035 = vmatmul.bf16.gmra.mxu0 %v1345
        %v3036 = vpop.f32.mrf.mxu0
        %v3037 = vadd.f32 %v2948, %v3036
        %v3038 = vpop.f32.mrf.mxu0
        %v3039 = vadd.f32 %v2950, %v3038
        %3040 = vmatmul.bf16.gmra.mxu0 %v1352
        %v3041 = vpop.f32.mrf.mxu0
        %v3042 = vadd.f32 %v2953, %v3041
        %v3043 = vpop.f32.mrf.mxu0
        %v3044 = vadd.f32 %v2955, %v3043
        %3045 = vmatmul.bf16.gmra.mxu0 %v1359
        %v3046 = vpop.f32.mrf.mxu0
        %v3047 = vadd.f32 %v2958, %v3046
        %v3048 = vpop.f32.mrf.mxu0
        %v3049 = vadd.f32 %v2960, %v3048
        %3050 = vmatmul.bf16.gmra.mxu0 %v1366
        %v3051 = vpop.f32.mrf.mxu0
        %v3052 = vadd.f32 %v2963, %v3051
        %v3053 = vpop.f32.mrf.mxu0
        %v3054 = vadd.f32 %v2965, %v3053
        %3055 = vmatmul.bf16.gmra.mxu0 %v1373
        %v3056 = vpop.f32.mrf.mxu0
        %v3057 = vadd.f32 %v2968, %v3056
        %v3058 = vpop.f32.mrf.mxu0
        %v3059 = vadd.f32 %v2970, %v3058
        %3060 = vmatmul.bf16.gmra.mxu0 %v1380
        %v3061 = vpop.f32.mrf.mxu0
        %v3062 = vadd.f32 %v2973, %v3061
        %v3063 = vpop.f32.mrf.mxu0
        %v3064 = vadd.f32 %v2975, %v3063
        %3065 = vmatmul.bf16.gmra.mxu0 %v1387
        %v3066 = vpop.f32.mrf.mxu0
        %v3067 = vadd.f32 %v2978, %v3066
        %v3068 = vpop.f32.mrf.mxu0
        %v3069 = vadd.f32 %v2980, %v3068
        %3070 = vmatmul.bf16.gmra.mxu0 %v1394
        %v3071 = vpop.f32.mrf.mxu0
        %v3072 = vadd.f32 %v2983, %v3071
        %v3073 = vpop.f32.mrf.mxu0
        %v3074 = vadd.f32 %v2985, %v3073
        %3075 = vmatmul.bf16.gmra.mxu0 %v1401
        %v3076 = vpop.f32.mrf.mxu0
        %v3077 = vadd.f32 %v2988, %v3076
        %v3078 = vpop.f32.mrf.mxu0
        %v3079 = vadd.f32 %v2990, %v3078
        %3080 = vdwg.mxu0
        %3081 = vmatpush.bf16.msra.mxu0 %v2376
        %3082 = vmatpush.bf16.msra.mxu0 %v2372
        %3083 = vmatpush.bf16.msra.mxu0 %v2368
        %3084 = vmatpush.bf16.msra.mxu0 %v2364
        %3085 = vmatpush.bf16.msra.mxu0 %v2360
        %3086 = vmatpush.bf16.msra.mxu0 %v2356
        %3087 = vmatpush.bf16.msra.mxu0 %v2352
        %3088 = vmatpush.bf16.msra.mxu0 %v2348
        %3089 = vmatmul.bf16.gmra.mxu0 %v1297
        %v3090 = vpop.f32.mrf.mxu0
        %v3091 = vadd.f32 %v3002, %v3090
        %v3092 = vpop.f32.mrf.mxu0
        %v3093 = vadd.f32 %v3004, %v3092
        %3094 = vmatmul.bf16.gmra.mxu0 %v1304
        %v3095 = vpop.f32.mrf.mxu0
        %v3096 = vadd.f32 %v3007, %v3095
        %v3097 = vpop.f32.mrf.mxu0
        %v3098 = vadd.f32 %v3009, %v3097
        %3099 = vmatmul.bf16.gmra.mxu0 %v1311
        %v3100 = vpop.f32.mrf.mxu0
        %v3101 = vadd.f32 %v3012, %v3100
        %v3102 = vpop.f32.mrf.mxu0
        %v3103 = vadd.f32 %v3014, %v3102
        %3104 = vmatmul.bf16.gmra.mxu0 %v1318
        %v3105 = vpop.f32.mrf.mxu0
        %v3106 = vadd.f32 %v3017, %v3105
        %v3107 = vpop.f32.mrf.mxu0
        %v3108 = vadd.f32 %v3019, %v3107
        %3109 = vmatmul.bf16.gmra.mxu0 %v1325
        %v3110 = vpop.f32.mrf.mxu0
        %v3111 = vadd.f32 %v3022, %v3110
        %v3112 = vpop.f32.mrf.mxu0
        %v3113 = vadd.f32 %v3024, %v3112
        %3114 = vmatmul.bf16.gmra.mxu0 %v1332
        %v3115 = vpop.f32.mrf.mxu0
        %v3116 = vadd.f32 %v3027, %v3115
        %v3117 = vpop.f32.mrf.mxu0
        %v3118 = vadd.f32 %v3029, %v3117
        %3119 = vmatmul.bf16.gmra.mxu0 %v1339
        %v3120 = vpop.f32.mrf.mxu0
        %v3121 = vadd.f32 %v3032, %v3120
        %v3122 = vpop.f32.mrf.mxu0
        %v3123 = vadd.f32 %v3034, %v3122
        %3124 = vmatmul.bf16.gmra.mxu0 %v1346
        %v3125 = vpop.f32.mrf.mxu0
        %v3126 = vadd.f32 %v3037, %v3125
        %v3127 = vpop.f32.mrf.mxu0
        %v3128 = vadd.f32 %v3039, %v3127
        %3129 = vmatmul.bf16.gmra.mxu0 %v1353
        %v3130 = vpop.f32.mrf.mxu0
        %v3131 = vadd.f32 %v3042, %v3130
        %v3132 = vpop.f32.mrf.mxu0
        %v3133 = vadd.f32 %v3044, %v3132
        %3134 = vmatmul.bf16.gmra.mxu0 %v1360
        %v3135 = vpop.f32.mrf.mxu0
        %v3136 = vadd.f32 %v3047, %v3135
        %v3137 = vpop.f32.mrf.mxu0
        %v3138 = vadd.f32 %v3049, %v3137
        %3139 = vmatmul.bf16.gmra.mxu0 %v1367
        %v3140 = vpop.f32.mrf.mxu0
        %v3141 = vadd.f32 %v3052, %v3140
        %v3142 = vpop.f32.mrf.mxu0
        %v3143 = vadd.f32 %v3054, %v3142
        %3144 = vmatmul.bf16.gmra.mxu0 %v1374
        %v3145 = vpop.f32.mrf.mxu0
        %v3146 = vadd.f32 %v3057, %v3145
        %v3147 = vpop.f32.mrf.mxu0
        %v3148 = vadd.f32 %v3059, %v3147
        %3149 = vmatmul.bf16.gmra.mxu0 %v1381
        %v3150 = vpop.f32.mrf.mxu0
        %v3151 = vadd.f32 %v3062, %v3150
        %v3152 = vpop.f32.mrf.mxu0
        %v3153 = vadd.f32 %v3064, %v3152
        %3154 = vmatmul.bf16.gmra.mxu0 %v1388
        %v3155 = vpop.f32.mrf.mxu0
        %v3156 = vadd.f32 %v3067, %v3155
        %v3157 = vpop.f32.mrf.mxu0
        %v3158 = vadd.f32 %v3069, %v3157
        %3159 = vmatmul.bf16.gmra.mxu0 %v1395
        %v3160 = vpop.f32.mrf.mxu0
        %v3161 = vadd.f32 %v3072, %v3160
        %v3162 = vpop.f32.mrf.mxu0
        %v3163 = vadd.f32 %v3074, %v3162
        %3164 = vmatmul.bf16.gmra.mxu0 %v1402
        %v3165 = vpop.f32.mrf.mxu0
        %v3166 = vadd.f32 %v3077, %v3165
        %v3167 = vpop.f32.mrf.mxu0
        %v3168 = vadd.f32 %v3079, %v3167
        %3169 = vdwg.mxu0
        %3170 = vmatpush.bf16.msra.mxu0 %v2408
        %3171 = vmatpush.bf16.msra.mxu0 %v2404
        %3172 = vmatpush.bf16.msra.mxu0 %v2400
        %3173 = vmatpush.bf16.msra.mxu0 %v2396
        %3174 = vmatpush.bf16.msra.mxu0 %v2392
        %3175 = vmatpush.bf16.msra.mxu0 %v2388
        %3176 = vmatpush.bf16.msra.mxu0 %v2384
        %3177 = vmatpush.bf16.msra.mxu0 %v2380
        %3178 = vmatmul.bf16.gmra.mxu0 %v1298
        %v3179 = vpop.f32.mrf.mxu0
        %v3180 = vadd.f32 %v3091, %v3179
        %v3181 = vpop.f32.mrf.mxu0
        %v3182 = vadd.f32 %v3093, %v3181
        %3183 = vmatmul.bf16.gmra.mxu0 %v1305
        %v3184 = vpop.f32.mrf.mxu0
        %v3185 = vadd.f32 %v3096, %v3184
        %v3186 = vpop.f32.mrf.mxu0
        %v3187 = vadd.f32 %v3098, %v3186
        %3188 = vmatmul.bf16.gmra.mxu0 %v1312
        %v3189 = vpop.f32.mrf.mxu0
        %v3190 = vadd.f32 %v3101, %v3189
        %v3191 = vpop.f32.mrf.mxu0
        %v3192 = vadd.f32 %v3103, %v3191
        %3193 = vmatmul.bf16.gmra.mxu0 %v1319
        %v3194 = vpop.f32.mrf.mxu0
        %v3195 = vadd.f32 %v3106, %v3194
        %v3196 = vpop.f32.mrf.mxu0
        %v3197 = vadd.f32 %v3108, %v3196
        %3198 = vmatmul.bf16.gmra.mxu0 %v1326
        %v3199 = vpop.f32.mrf.mxu0
        %v3200 = vadd.f32 %v3111, %v3199
        %v3201 = vpop.f32.mrf.mxu0
        %v3202 = vadd.f32 %v3113, %v3201
        %3203 = vmatmul.bf16.gmra.mxu0 %v1333
        %v3204 = vpop.f32.mrf.mxu0
        %v3205 = vadd.f32 %v3116, %v3204
        %v3206 = vpop.f32.mrf.mxu0
        %v3207 = vadd.f32 %v3118, %v3206
        %3208 = vmatmul.bf16.gmra.mxu0 %v1340
        %v3209 = vpop.f32.mrf.mxu0
        %v3210 = vadd.f32 %v3121, %v3209
        %v3211 = vpop.f32.mrf.mxu0
        %v3212 = vadd.f32 %v3123, %v3211
        %3213 = vmatmul.bf16.gmra.mxu0 %v1347
        %v3214 = vpop.f32.mrf.mxu0
        %v3215 = vadd.f32 %v3126, %v3214
        %v3216 = vpop.f32.mrf.mxu0
        %v3217 = vadd.f32 %v3128, %v3216
        %3218 = vmatmul.bf16.gmra.mxu0 %v1354
        %v3219 = vpop.f32.mrf.mxu0
        %v3220 = vadd.f32 %v3131, %v3219
        %v3221 = vpop.f32.mrf.mxu0
        %v3222 = vadd.f32 %v3133, %v3221
        %3223 = vmatmul.bf16.gmra.mxu0 %v1361
        %v3224 = vpop.f32.mrf.mxu0
        %v3225 = vadd.f32 %v3136, %v3224
        %v3226 = vpop.f32.mrf.mxu0
        %v3227 = vadd.f32 %v3138, %v3226
        %3228 = vmatmul.bf16.gmra.mxu0 %v1368
        %v3229 = vpop.f32.mrf.mxu0
        %v3230 = vadd.f32 %v3141, %v3229
        %v3231 = vpop.f32.mrf.mxu0
        %v3232 = vadd.f32 %v3143, %v3231
        %3233 = vmatmul.bf16.gmra.mxu0 %v1375
        %v3234 = vpop.f32.mrf.mxu0
        %v3235 = vadd.f32 %v3146, %v3234
        %v3236 = vpop.f32.mrf.mxu0
        %v3237 = vadd.f32 %v3148, %v3236
        %3238 = vmatmul.bf16.gmra.mxu0 %v1382
        %v3239 = vpop.f32.mrf.mxu0
        %v3240 = vadd.f32 %v3151, %v3239
        %v3241 = vpop.f32.mrf.mxu0
        %v3242 = vadd.f32 %v3153, %v3241
        %3243 = vmatmul.bf16.gmra.mxu0 %v1389
        %v3244 = vpop.f32.mrf.mxu0
        %v3245 = vadd.f32 %v3156, %v3244
        %v3246 = vpop.f32.mrf.mxu0
        %v3247 = vadd.f32 %v3158, %v3246
        %3248 = vmatmul.bf16.gmra.mxu0 %v1396
        %v3249 = vpop.f32.mrf.mxu0
        %v3250 = vadd.f32 %v3161, %v3249
        %v3251 = vpop.f32.mrf.mxu0
        %v3252 = vadd.f32 %v3163, %v3251
        %3253 = vmatmul.bf16.gmra.mxu0 %v1403
        %v3254 = vpop.f32.mrf.mxu0
        %v3255 = vadd.f32 %v3166, %v3254
        %v3256 = vpop.f32.mrf.mxu0
        %v3257 = vadd.f32 %v3168, %v3256
        %3258 = vdwg.mxu0
        %3259 = vmatpush.bf16.msra.mxu0 %v2217
        %3260 = vmatpush.bf16.msra.mxu0 %v2213
        %3261 = vmatpush.bf16.msra.mxu0 %v2209
        %3262 = vmatpush.bf16.msra.mxu0 %v2205
        %3263 = vmatpush.bf16.msra.mxu0 %v2201
        %3264 = vmatpush.bf16.msra.mxu0 %v2197
        %3265 = vmatpush.bf16.msra.mxu0 %v2193
        %3266 = vmatpush.bf16.msra.mxu0 %v2189
        %3267 = vmatmul.bf16.gmra.mxu0 %v1292
        %v3268 = vpop.f32.mrf.mxu0
        %v3269 = vadd.f32 %v933, %v3268
        %v3270 = vpop.f32.mrf.mxu0
        %v3271 = vadd.f32 %v933, %v3270
        %3272 = vmatmul.bf16.gmra.mxu0 %v1299
        %v3273 = vpop.f32.mrf.mxu0
        %v3274 = vadd.f32 %v933, %v3273
        %v3275 = vpop.f32.mrf.mxu0
        %v3276 = vadd.f32 %v933, %v3275
        %3277 = vmatmul.bf16.gmra.mxu0 %v1306
        %v3278 = vpop.f32.mrf.mxu0
        %v3279 = vadd.f32 %v933, %v3278
        %v3280 = vpop.f32.mrf.mxu0
        %v3281 = vadd.f32 %v933, %v3280
        %3282 = vmatmul.bf16.gmra.mxu0 %v1313
        %v3283 = vpop.f32.mrf.mxu0
        %v3284 = vadd.f32 %v933, %v3283
        %v3285 = vpop.f32.mrf.mxu0
        %v3286 = vadd.f32 %v933, %v3285
        %3287 = vmatmul.bf16.gmra.mxu0 %v1320
        %v3288 = vpop.f32.mrf.mxu0
        %v3289 = vadd.f32 %v933, %v3288
        %v3290 = vpop.f32.mrf.mxu0
        %v3291 = vadd.f32 %v933, %v3290
        %3292 = vmatmul.bf16.gmra.mxu0 %v1327
        %v3293 = vpop.f32.mrf.mxu0
        %v3294 = vadd.f32 %v933, %v3293
        %v3295 = vpop.f32.mrf.mxu0
        %v3296 = vadd.f32 %v933, %v3295
        %3297 = vmatmul.bf16.gmra.mxu0 %v1334
        %v3298 = vpop.f32.mrf.mxu0
        %v3299 = vadd.f32 %v933, %v3298
        %v3300 = vpop.f32.mrf.mxu0
        %v3301 = vadd.f32 %v933, %v3300
        %3302 = vmatmul.bf16.gmra.mxu0 %v1341
        %v3303 = vpop.f32.mrf.mxu0
        %v3304 = vadd.f32 %v933, %v3303
        %v3305 = vpop.f32.mrf.mxu0
        %v3306 = vadd.f32 %v933, %v3305
        %3307 = vmatmul.bf16.gmra.mxu0 %v1348
        %v3308 = vpop.f32.mrf.mxu0
        %v3309 = vadd.f32 %v933, %v3308
        %v3310 = vpop.f32.mrf.mxu0
        %v3311 = vadd.f32 %v933, %v3310
        %3312 = vmatmul.bf16.gmra.mxu0 %v1355
        %v3313 = vpop.f32.mrf.mxu0
        %v3314 = vadd.f32 %v933, %v3313
        %v3315 = vpop.f32.mrf.mxu0
        %v3316 = vadd.f32 %v933, %v3315
        %3317 = vmatmul.bf16.gmra.mxu0 %v1362
        %v3318 = vpop.f32.mrf.mxu0
        %v3319 = vadd.f32 %v933, %v3318
        %v3320 = vpop.f32.mrf.mxu0
        %v3321 = vadd.f32 %v933, %v3320
        %3322 = vmatmul.bf16.gmra.mxu0 %v1369
        %v3323 = vpop.f32.mrf.mxu0
        %v3324 = vadd.f32 %v933, %v3323
        %v3325 = vpop.f32.mrf.mxu0
        %v3326 = vadd.f32 %v933, %v3325
        %3327 = vmatmul.bf16.gmra.mxu0 %v1376
        %v3328 = vpop.f32.mrf.mxu0
        %v3329 = vadd.f32 %v933, %v3328
        %v3330 = vpop.f32.mrf.mxu0
        %v3331 = vadd.f32 %v933, %v3330
        %3332 = vmatmul.bf16.gmra.mxu0 %v1383
        %v3333 = vpop.f32.mrf.mxu0
        %v3334 = vadd.f32 %v933, %v3333
        %v3335 = vpop.f32.mrf.mxu0
        %v3336 = vadd.f32 %v933, %v3335
        %3337 = vmatmul.bf16.gmra.mxu0 %v1390
        %v3338 = vpop.f32.mrf.mxu0
        %v3339 = vadd.f32 %v933, %v3338
        %v3340 = vpop.f32.mrf.mxu0
        %v3341 = vadd.f32 %v933, %v3340
        %3342 = vmatmul.bf16.gmra.mxu0 %v1397
        %v3343 = vpop.f32.mrf.mxu0
        %v3344 = vadd.f32 %v933, %v3343
        %v3345 = vpop.f32.mrf.mxu0
        %v3346 = vadd.f32 %v933, %v3345
        %3347 = vdwg.mxu0
        %3348 = vmatpush.bf16.msra.mxu0 %v2249
        %3349 = vmatpush.bf16.msra.mxu0 %v2245
        %3350 = vmatpush.bf16.msra.mxu0 %v2241
        %3351 = vmatpush.bf16.msra.mxu0 %v2237
        %3352 = vmatpush.bf16.msra.mxu0 %v2233
        %3353 = vmatpush.bf16.msra.mxu0 %v2229
        %3354 = vmatpush.bf16.msra.mxu0 %v2225
        %3355 = vmatpush.bf16.msra.mxu0 %v2221
        %3356 = vmatmul.bf16.gmra.mxu0 %v1293
        %v3357 = vpop.f32.mrf.mxu0
        %v3358 = vadd.f32 %v3269, %v3357
        %v3359 = vpop.f32.mrf.mxu0
        %v3360 = vadd.f32 %v3271, %v3359
        %3361 = vmatmul.bf16.gmra.mxu0 %v1300
        %v3362 = vpop.f32.mrf.mxu0
        %v3363 = vadd.f32 %v3274, %v3362
        %v3364 = vpop.f32.mrf.mxu0
        %v3365 = vadd.f32 %v3276, %v3364
        %3366 = vmatmul.bf16.gmra.mxu0 %v1307
        %v3367 = vpop.f32.mrf.mxu0
        %v3368 = vadd.f32 %v3279, %v3367
        %v3369 = vpop.f32.mrf.mxu0
        %v3370 = vadd.f32 %v3281, %v3369
        %3371 = vmatmul.bf16.gmra.mxu0 %v1314
        %v3372 = vpop.f32.mrf.mxu0
        %v3373 = vadd.f32 %v3284, %v3372
        %v3374 = vpop.f32.mrf.mxu0
        %v3375 = vadd.f32 %v3286, %v3374
        %3376 = vmatmul.bf16.gmra.mxu0 %v1321
        %v3377 = vpop.f32.mrf.mxu0
        %v3378 = vadd.f32 %v3289, %v3377
        %v3379 = vpop.f32.mrf.mxu0
        %v3380 = vadd.f32 %v3291, %v3379
        %3381 = vmatmul.bf16.gmra.mxu0 %v1328
        %v3382 = vpop.f32.mrf.mxu0
        %v3383 = vadd.f32 %v3294, %v3382
        %v3384 = vpop.f32.mrf.mxu0
        %v3385 = vadd.f32 %v3296, %v3384
        %3386 = vmatmul.bf16.gmra.mxu0 %v1335
        %v3387 = vpop.f32.mrf.mxu0
        %v3388 = vadd.f32 %v3299, %v3387
        %v3389 = vpop.f32.mrf.mxu0
        %v3390 = vadd.f32 %v3301, %v3389
        %3391 = vmatmul.bf16.gmra.mxu0 %v1342
        %v3392 = vpop.f32.mrf.mxu0
        %v3393 = vadd.f32 %v3304, %v3392
        %v3394 = vpop.f32.mrf.mxu0
        %v3395 = vadd.f32 %v3306, %v3394
        %3396 = vmatmul.bf16.gmra.mxu0 %v1349
        %v3397 = vpop.f32.mrf.mxu0
        %v3398 = vadd.f32 %v3309, %v3397
        %v3399 = vpop.f32.mrf.mxu0
        %v3400 = vadd.f32 %v3311, %v3399
        %3401 = vmatmul.bf16.gmra.mxu0 %v1356
        %v3402 = vpop.f32.mrf.mxu0
        %v3403 = vadd.f32 %v3314, %v3402
        %v3404 = vpop.f32.mrf.mxu0
        %v3405 = vadd.f32 %v3316, %v3404
        %3406 = vmatmul.bf16.gmra.mxu0 %v1363
        %v3407 = vpop.f32.mrf.mxu0
        %v3408 = vadd.f32 %v3319, %v3407
        %v3409 = vpop.f32.mrf.mxu0
        %v3410 = vadd.f32 %v3321, %v3409
        %3411 = vmatmul.bf16.gmra.mxu0 %v1370
        %v3412 = vpop.f32.mrf.mxu0
        %v3413 = vadd.f32 %v3324, %v3412
        %v3414 = vpop.f32.mrf.mxu0
        %v3415 = vadd.f32 %v3326, %v3414
        %3416 = vmatmul.bf16.gmra.mxu0 %v1377
        %v3417 = vpop.f32.mrf.mxu0
        %v3418 = vadd.f32 %v3329, %v3417
        %v3419 = vpop.f32.mrf.mxu0
        %v3420 = vadd.f32 %v3331, %v3419
        %3421 = vmatmul.bf16.gmra.mxu0 %v1384
        %v3422 = vpop.f32.mrf.mxu0
        %v3423 = vadd.f32 %v3334, %v3422
        %v3424 = vpop.f32.mrf.mxu0
        %v3425 = vadd.f32 %v3336, %v3424
        %3426 = vmatmul.bf16.gmra.mxu0 %v1391
        %v3427 = vpop.f32.mrf.mxu0
        %v3428 = vadd.f32 %v3339, %v3427
        %v3429 = vpop.f32.mrf.mxu0
        %v3430 = vadd.f32 %v3341, %v3429
        %3431 = vmatmul.bf16.gmra.mxu0 %v1398
        %v3432 = vpop.f32.mrf.mxu0
        %v3433 = vadd.f32 %v3344, %v3432
        %v3434 = vpop.f32.mrf.mxu0
        %v3435 = vadd.f32 %v3346, %v3434
        %3436 = vdwg.mxu0
        %3437 = vmatpush.bf16.msra.mxu0 %v2281
        %3438 = vmatpush.bf16.msra.mxu0 %v2277
        %3439 = vmatpush.bf16.msra.mxu0 %v2273
        %3440 = vmatpush.bf16.msra.mxu0 %v2269
        %3441 = vmatpush.bf16.msra.mxu0 %v2265
        %3442 = vmatpush.bf16.msra.mxu0 %v2261
        %3443 = vmatpush.bf16.msra.mxu0 %v2257
        %3444 = vmatpush.bf16.msra.mxu0 %v2253
        %3445 = vmatmul.bf16.gmra.mxu0 %v1294
        %v3446 = vpop.f32.mrf.mxu0
        %v3447 = vadd.f32 %v3358, %v3446
        %v3448 = vpop.f32.mrf.mxu0
        %v3449 = vadd.f32 %v3360, %v3448
        %3450 = vmatmul.bf16.gmra.mxu0 %v1301
        %v3451 = vpop.f32.mrf.mxu0
        %v3452 = vadd.f32 %v3363, %v3451
        %v3453 = vpop.f32.mrf.mxu0
        %v3454 = vadd.f32 %v3365, %v3453
        %3455 = vmatmul.bf16.gmra.mxu0 %v1308
        %v3456 = vpop.f32.mrf.mxu0
        %v3457 = vadd.f32 %v3368, %v3456
        %v3458 = vpop.f32.mrf.mxu0
        %v3459 = vadd.f32 %v3370, %v3458
        %3460 = vmatmul.bf16.gmra.mxu0 %v1315
        %v3461 = vpop.f32.mrf.mxu0
        %v3462 = vadd.f32 %v3373, %v3461
        %v3463 = vpop.f32.mrf.mxu0
        %v3464 = vadd.f32 %v3375, %v3463
        %3465 = vmatmul.bf16.gmra.mxu0 %v1322
        %v3466 = vpop.f32.mrf.mxu0
        %v3467 = vadd.f32 %v3378, %v3466
        %v3468 = vpop.f32.mrf.mxu0
        %v3469 = vadd.f32 %v3380, %v3468
        %3470 = vmatmul.bf16.gmra.mxu0 %v1329
        %v3471 = vpop.f32.mrf.mxu0
        %v3472 = vadd.f32 %v3383, %v3471
        %v3473 = vpop.f32.mrf.mxu0
        %v3474 = vadd.f32 %v3385, %v3473
        %3475 = vmatmul.bf16.gmra.mxu0 %v1336
        %v3476 = vpop.f32.mrf.mxu0
        %v3477 = vadd.f32 %v3388, %v3476
        %v3478 = vpop.f32.mrf.mxu0
        %v3479 = vadd.f32 %v3390, %v3478
        %3480 = vmatmul.bf16.gmra.mxu0 %v1343
        %v3481 = vpop.f32.mrf.mxu0
        %v3482 = vadd.f32 %v3393, %v3481
        %v3483 = vpop.f32.mrf.mxu0
        %v3484 = vadd.f32 %v3395, %v3483
        %3485 = vmatmul.bf16.gmra.mxu0 %v1350
        %v3486 = vpop.f32.mrf.mxu0
        %v3487 = vadd.f32 %v3398, %v3486
        %v3488 = vpop.f32.mrf.mxu0
        %v3489 = vadd.f32 %v3400, %v3488
        %3490 = vmatmul.bf16.gmra.mxu0 %v1357
        %v3491 = vpop.f32.mrf.mxu0
        %v3492 = vadd.f32 %v3403, %v3491
        %v3493 = vpop.f32.mrf.mxu0
        %v3494 = vadd.f32 %v3405, %v3493
        %3495 = vmatmul.bf16.gmra.mxu0 %v1364
        %v3496 = vpop.f32.mrf.mxu0
        %v3497 = vadd.f32 %v3408, %v3496
        %v3498 = vpop.f32.mrf.mxu0
        %v3499 = vadd.f32 %v3410, %v3498
        %3500 = vmatmul.bf16.gmra.mxu0 %v1371
        %v3501 = vpop.f32.mrf.mxu0
        %v3502 = vadd.f32 %v3413, %v3501
        %v3503 = vpop.f32.mrf.mxu0
        %v3504 = vadd.f32 %v3415, %v3503
        %3505 = vmatmul.bf16.gmra.mxu0 %v1378
        %v3506 = vpop.f32.mrf.mxu0
        %v3507 = vadd.f32 %v3418, %v3506
        %v3508 = vpop.f32.mrf.mxu0
        %v3509 = vadd.f32 %v3420, %v3508
        %3510 = vmatmul.bf16.gmra.mxu0 %v1385
        %v3511 = vpop.f32.mrf.mxu0
        %v3512 = vadd.f32 %v3423, %v3511
        %v3513 = vpop.f32.mrf.mxu0
        %v3514 = vadd.f32 %v3425, %v3513
        %3515 = vmatmul.bf16.gmra.mxu0 %v1392
        %v3516 = vpop.f32.mrf.mxu0
        %v3517 = vadd.f32 %v3428, %v3516
        %v3518 = vpop.f32.mrf.mxu0
        %v3519 = vadd.f32 %v3430, %v3518
        %3520 = vmatmul.bf16.gmra.mxu0 %v1399
        %v3521 = vpop.f32.mrf.mxu0
        %v3522 = vadd.f32 %v3433, %v3521
        %v3523 = vpop.f32.mrf.mxu0
        %v3524 = vadd.f32 %v3435, %v3523
        %3525 = vdwg.mxu0
        %3526 = vmatpush.bf16.msra.mxu0 %v2313
        %3527 = vmatpush.bf16.msra.mxu0 %v2309
        %3528 = vmatpush.bf16.msra.mxu0 %v2305
        %3529 = vmatpush.bf16.msra.mxu0 %v2301
        %3530 = vmatpush.bf16.msra.mxu0 %v2297
        %3531 = vmatpush.bf16.msra.mxu0 %v2293
        %3532 = vmatpush.bf16.msra.mxu0 %v2289
        %3533 = vmatpush.bf16.msra.mxu0 %v2285
        %3534 = vmatmul.bf16.gmra.mxu0 %v1295
        %v3535 = vpop.f32.mrf.mxu0
        %v3536 = vadd.f32 %v3447, %v3535
        %v3537 = vpop.f32.mrf.mxu0
        %v3538 = vadd.f32 %v3449, %v3537
        %3539 = vmatmul.bf16.gmra.mxu0 %v1302
        %v3540 = vpop.f32.mrf.mxu0
        %v3541 = vadd.f32 %v3452, %v3540
        %v3542 = vpop.f32.mrf.mxu0
        %v3543 = vadd.f32 %v3454, %v3542
        %3544 = vmatmul.bf16.gmra.mxu0 %v1309
        %v3545 = vpop.f32.mrf.mxu0
        %v3546 = vadd.f32 %v3457, %v3545
        %v3547 = vpop.f32.mrf.mxu0
        %v3548 = vadd.f32 %v3459, %v3547
        %3549 = vmatmul.bf16.gmra.mxu0 %v1316
        %v3550 = vpop.f32.mrf.mxu0
        %v3551 = vadd.f32 %v3462, %v3550
        %v3552 = vpop.f32.mrf.mxu0
        %v3553 = vadd.f32 %v3464, %v3552
        %3554 = vmatmul.bf16.gmra.mxu0 %v1323
        %v3555 = vpop.f32.mrf.mxu0
        %v3556 = vadd.f32 %v3467, %v3555
        %v3557 = vpop.f32.mrf.mxu0
        %v3558 = vadd.f32 %v3469, %v3557
        %3559 = vmatmul.bf16.gmra.mxu0 %v1330
        %v3560 = vpop.f32.mrf.mxu0
        %v3561 = vadd.f32 %v3472, %v3560
        %v3562 = vpop.f32.mrf.mxu0
        %v3563 = vadd.f32 %v3474, %v3562
        %3564 = vmatmul.bf16.gmra.mxu0 %v1337
        %v3565 = vpop.f32.mrf.mxu0
        %v3566 = vadd.f32 %v3477, %v3565
        %v3567 = vpop.f32.mrf.mxu0
        %v3568 = vadd.f32 %v3479, %v3567
        %3569 = vmatmul.bf16.gmra.mxu0 %v1344
        %v3570 = vpop.f32.mrf.mxu0
        %v3571 = vadd.f32 %v3482, %v3570
        %v3572 = vpop.f32.mrf.mxu0
        %v3573 = vadd.f32 %v3484, %v3572
        %3574 = vmatmul.bf16.gmra.mxu0 %v1351
        %v3575 = vpop.f32.mrf.mxu0
        %v3576 = vadd.f32 %v3487, %v3575
        %v3577 = vpop.f32.mrf.mxu0
        %v3578 = vadd.f32 %v3489, %v3577
        %3579 = vmatmul.bf16.gmra.mxu0 %v1358
        %v3580 = vpop.f32.mrf.mxu0
        %v3581 = vadd.f32 %v3492, %v3580
        %v3582 = vpop.f32.mrf.mxu0
        %v3583 = vadd.f32 %v3494, %v3582
        %3584 = vmatmul.bf16.gmra.mxu0 %v1365
        %v3585 = vpop.f32.mrf.mxu0
        %v3586 = vadd.f32 %v3497, %v3585
        %v3587 = vpop.f32.mrf.mxu0
        %v3588 = vadd.f32 %v3499, %v3587
        %3589 = vmatmul.bf16.gmra.mxu0 %v1372
        %v3590 = vpop.f32.mrf.mxu0
        %v3591 = vadd.f32 %v3502, %v3590
        %v3592 = vpop.f32.mrf.mxu0
        %v3593 = vadd.f32 %v3504, %v3592
        %3594 = vmatmul.bf16.gmra.mxu0 %v1379
        %v3595 = vpop.f32.mrf.mxu0
        %v3596 = vadd.f32 %v3507, %v3595
        %v3597 = vpop.f32.mrf.mxu0
        %v3598 = vadd.f32 %v3509, %v3597
        %3599 = vmatmul.bf16.gmra.mxu0 %v1386
        %v3600 = vpop.f32.mrf.mxu0
        %v3601 = vadd.f32 %v3512, %v3600
        %v3602 = vpop.f32.mrf.mxu0
        %v3603 = vadd.f32 %v3514, %v3602
        %3604 = vmatmul.bf16.gmra.mxu0 %v1393
        %v3605 = vpop.f32.mrf.mxu0
        %v3606 = vadd.f32 %v3517, %v3605
        %v3607 = vpop.f32.mrf.mxu0
        %v3608 = vadd.f32 %v3519, %v3607
        %3609 = vmatmul.bf16.gmra.mxu0 %v1400
        %v3610 = vpop.f32.mrf.mxu0
        %v3611 = vadd.f32 %v3522, %v3610
        %v3612 = vpop.f32.mrf.mxu0
        %v3613 = vadd.f32 %v3524, %v3612
        %3614 = vdwg.mxu0
        %3615 = vmatpush.bf16.msra.mxu0 %v2345
        %3616 = vmatpush.bf16.msra.mxu0 %v2341
        %3617 = vmatpush.bf16.msra.mxu0 %v2337
        %3618 = vmatpush.bf16.msra.mxu0 %v2333
        %3619 = vmatpush.bf16.msra.mxu0 %v2329
        %3620 = vmatpush.bf16.msra.mxu0 %v2325
        %3621 = vmatpush.bf16.msra.mxu0 %v2321
        %3622 = vmatpush.bf16.msra.mxu0 %v2317
        %3623 = vmatmul.bf16.gmra.mxu0 %v1296
        %v3624 = vpop.f32.mrf.mxu0
        %v3625 = vadd.f32 %v3536, %v3624
        %v3626 = vpop.f32.mrf.mxu0
        %v3627 = vadd.f32 %v3538, %v3626
        %3628 = vmatmul.bf16.gmra.mxu0 %v1303
        %v3629 = vpop.f32.mrf.mxu0
        %v3630 = vadd.f32 %v3541, %v3629
        %v3631 = vpop.f32.mrf.mxu0
        %v3632 = vadd.f32 %v3543, %v3631
        %3633 = vmatmul.bf16.gmra.mxu0 %v1310
        %v3634 = vpop.f32.mrf.mxu0
        %v3635 = vadd.f32 %v3546, %v3634
        %v3636 = vpop.f32.mrf.mxu0
        %v3637 = vadd.f32 %v3548, %v3636
        %3638 = vmatmul.bf16.gmra.mxu0 %v1317
        %v3639 = vpop.f32.mrf.mxu0
        %v3640 = vadd.f32 %v3551, %v3639
        %v3641 = vpop.f32.mrf.mxu0
        %v3642 = vadd.f32 %v3553, %v3641
        %3643 = vmatmul.bf16.gmra.mxu0 %v1324
        %v3644 = vpop.f32.mrf.mxu0
        %v3645 = vadd.f32 %v3556, %v3644
        %v3646 = vpop.f32.mrf.mxu0
        %v3647 = vadd.f32 %v3558, %v3646
        %3648 = vmatmul.bf16.gmra.mxu0 %v1331
        %v3649 = vpop.f32.mrf.mxu0
        %v3650 = vadd.f32 %v3561, %v3649
        %v3651 = vpop.f32.mrf.mxu0
        %v3652 = vadd.f32 %v3563, %v3651
        %3653 = vmatmul.bf16.gmra.mxu0 %v1338
        %v3654 = vpop.f32.mrf.mxu0
        %v3655 = vadd.f32 %v3566, %v3654
        %v3656 = vpop.f32.mrf.mxu0
        %v3657 = vadd.f32 %v3568, %v3656
        %3658 = vmatmul.bf16.gmra.mxu0 %v1345
        %v3659 = vpop.f32.mrf.mxu0
        %v3660 = vadd.f32 %v3571, %v3659
        %v3661 = vpop.f32.mrf.mxu0
        %v3662 = vadd.f32 %v3573, %v3661
        %3663 = vmatmul.bf16.gmra.mxu0 %v1352
        %v3664 = vpop.f32.mrf.mxu0
        %v3665 = vadd.f32 %v3576, %v3664
        %v3666 = vpop.f32.mrf.mxu0
        %v3667 = vadd.f32 %v3578, %v3666
        %3668 = vmatmul.bf16.gmra.mxu0 %v1359
        %v3669 = vpop.f32.mrf.mxu0
        %v3670 = vadd.f32 %v3581, %v3669
        %v3671 = vpop.f32.mrf.mxu0
        %v3672 = vadd.f32 %v3583, %v3671
        %3673 = vmatmul.bf16.gmra.mxu0 %v1366
        %v3674 = vpop.f32.mrf.mxu0
        %v3675 = vadd.f32 %v3586, %v3674
        %v3676 = vpop.f32.mrf.mxu0
        %v3677 = vadd.f32 %v3588, %v3676
        %3678 = vmatmul.bf16.gmra.mxu0 %v1373
        %v3679 = vpop.f32.mrf.mxu0
        %v3680 = vadd.f32 %v3591, %v3679
        %v3681 = vpop.f32.mrf.mxu0
        %v3682 = vadd.f32 %v3593, %v3681
        %3683 = vmatmul.bf16.gmra.mxu0 %v1380
        %v3684 = vpop.f32.mrf.mxu0
        %v3685 = vadd.f32 %v3596, %v3684
        %v3686 = vpop.f32.mrf.mxu0
        %v3687 = vadd.f32 %v3598, %v3686
        %3688 = vmatmul.bf16.gmra.mxu0 %v1387
        %v3689 = vpop.f32.mrf.mxu0
        %v3690 = vadd.f32 %v3601, %v3689
        %v3691 = vpop.f32.mrf.mxu0
        %v3692 = vadd.f32 %v3603, %v3691
        %3693 = vmatmul.bf16.gmra.mxu0 %v1394
        %v3694 = vpop.f32.mrf.mxu0
        %v3695 = vadd.f32 %v3606, %v3694
        %v3696 = vpop.f32.mrf.mxu0
        %v3697 = vadd.f32 %v3608, %v3696
        %3698 = vmatmul.bf16.gmra.mxu0 %v1401
        %v3699 = vpop.f32.mrf.mxu0
        %v3700 = vadd.f32 %v3611, %v3699
        %v3701 = vpop.f32.mrf.mxu0
        %v3702 = vadd.f32 %v3613, %v3701
        %3703 = vdwg.mxu0
        %3704 = vmatpush.bf16.msra.mxu0 %v2377
        %3705 = vmatpush.bf16.msra.mxu0 %v2373
        %3706 = vmatpush.bf16.msra.mxu0 %v2369
        %3707 = vmatpush.bf16.msra.mxu0 %v2365
        %3708 = vmatpush.bf16.msra.mxu0 %v2361
        %3709 = vmatpush.bf16.msra.mxu0 %v2357
        %3710 = vmatpush.bf16.msra.mxu0 %v2353
        %3711 = vmatpush.bf16.msra.mxu0 %v2349
        %3712 = vmatmul.bf16.gmra.mxu0 %v1297
        %v3713 = vpop.f32.mrf.mxu0
        %v3714 = vadd.f32 %v3625, %v3713
        %v3715 = vpop.f32.mrf.mxu0
        %v3716 = vadd.f32 %v3627, %v3715
        %3717 = vmatmul.bf16.gmra.mxu0 %v1304
        %v3718 = vpop.f32.mrf.mxu0
        %v3719 = vadd.f32 %v3630, %v3718
        %v3720 = vpop.f32.mrf.mxu0
        %v3721 = vadd.f32 %v3632, %v3720
        %3722 = vmatmul.bf16.gmra.mxu0 %v1311
        %v3723 = vpop.f32.mrf.mxu0
        %v3724 = vadd.f32 %v3635, %v3723
        %v3725 = vpop.f32.mrf.mxu0
        %v3726 = vadd.f32 %v3637, %v3725
        %3727 = vmatmul.bf16.gmra.mxu0 %v1318
        %v3728 = vpop.f32.mrf.mxu0
        %v3729 = vadd.f32 %v3640, %v3728
        %v3730 = vpop.f32.mrf.mxu0
        %v3731 = vadd.f32 %v3642, %v3730
        %3732 = vmatmul.bf16.gmra.mxu0 %v1325
        %v3733 = vpop.f32.mrf.mxu0
        %v3734 = vadd.f32 %v3645, %v3733
        %v3735 = vpop.f32.mrf.mxu0
        %v3736 = vadd.f32 %v3647, %v3735
        %3737 = vmatmul.bf16.gmra.mxu0 %v1332
        %v3738 = vpop.f32.mrf.mxu0
        %v3739 = vadd.f32 %v3650, %v3738
        %v3740 = vpop.f32.mrf.mxu0
        %v3741 = vadd.f32 %v3652, %v3740
        %3742 = vmatmul.bf16.gmra.mxu0 %v1339
        %v3743 = vpop.f32.mrf.mxu0
        %v3744 = vadd.f32 %v3655, %v3743
        %v3745 = vpop.f32.mrf.mxu0
        %v3746 = vadd.f32 %v3657, %v3745
        %3747 = vmatmul.bf16.gmra.mxu0 %v1346
        %v3748 = vpop.f32.mrf.mxu0
        %v3749 = vadd.f32 %v3660, %v3748
        %v3750 = vpop.f32.mrf.mxu0
        %v3751 = vadd.f32 %v3662, %v3750
        %3752 = vmatmul.bf16.gmra.mxu0 %v1353
        %v3753 = vpop.f32.mrf.mxu0
        %v3754 = vadd.f32 %v3665, %v3753
        %v3755 = vpop.f32.mrf.mxu0
        %v3756 = vadd.f32 %v3667, %v3755
        %3757 = vmatmul.bf16.gmra.mxu0 %v1360
        %v3758 = vpop.f32.mrf.mxu0
        %v3759 = vadd.f32 %v3670, %v3758
        %v3760 = vpop.f32.mrf.mxu0
        %v3761 = vadd.f32 %v3672, %v3760
        %3762 = vmatmul.bf16.gmra.mxu0 %v1367
        %v3763 = vpop.f32.mrf.mxu0
        %v3764 = vadd.f32 %v3675, %v3763
        %v3765 = vpop.f32.mrf.mxu0
        %v3766 = vadd.f32 %v3677, %v3765
        %3767 = vmatmul.bf16.gmra.mxu0 %v1374
        %v3768 = vpop.f32.mrf.mxu0
        %v3769 = vadd.f32 %v3680, %v3768
        %v3770 = vpop.f32.mrf.mxu0
        %v3771 = vadd.f32 %v3682, %v3770
        %3772 = vmatmul.bf16.gmra.mxu0 %v1381
        %v3773 = vpop.f32.mrf.mxu0
        %v3774 = vadd.f32 %v3685, %v3773
        %v3775 = vpop.f32.mrf.mxu0
        %v3776 = vadd.f32 %v3687, %v3775
        %3777 = vmatmul.bf16.gmra.mxu0 %v1388
        %v3778 = vpop.f32.mrf.mxu0
        %v3779 = vadd.f32 %v3690, %v3778
        %v3780 = vpop.f32.mrf.mxu0
        %v3781 = vadd.f32 %v3692, %v3780
        %3782 = vmatmul.bf16.gmra.mxu0 %v1395
        %v3783 = vpop.f32.mrf.mxu0
        %v3784 = vadd.f32 %v3695, %v3783
        %v3785 = vpop.f32.mrf.mxu0
        %v3786 = vadd.f32 %v3697, %v3785
        %3787 = vmatmul.bf16.gmra.mxu0 %v1402
        %v3788 = vpop.f32.mrf.mxu0
        %v3789 = vadd.f32 %v3700, %v3788
        %v3790 = vpop.f32.mrf.mxu0
        %v3791 = vadd.f32 %v3702, %v3790
        %3792 = vdwg.mxu0
        %3793 = vmatpush.bf16.msra.mxu0 %v2409
        %3794 = vmatpush.bf16.msra.mxu0 %v2405
        %3795 = vmatpush.bf16.msra.mxu0 %v2401
        %3796 = vmatpush.bf16.msra.mxu0 %v2397
        %3797 = vmatpush.bf16.msra.mxu0 %v2393
        %3798 = vmatpush.bf16.msra.mxu0 %v2389
        %3799 = vmatpush.bf16.msra.mxu0 %v2385
        %3800 = vmatpush.bf16.msra.mxu0 %v2381
        %3801 = vmatmul.bf16.gmra.mxu0 %v1298
        %v3802 = vpop.f32.mrf.mxu0
        %v3803 = vadd.f32 %v3714, %v3802
        %v3804 = vpop.f32.mrf.mxu0
        %v3805 = vadd.f32 %v3716, %v3804
        %3806 = vmatmul.bf16.gmra.mxu0 %v1305
        %v3807 = vpop.f32.mrf.mxu0
        %v3808 = vadd.f32 %v3719, %v3807
        %v3809 = vpop.f32.mrf.mxu0
        %v3810 = vadd.f32 %v3721, %v3809
        %3811 = vmatmul.bf16.gmra.mxu0 %v1312
        %v3812 = vpop.f32.mrf.mxu0
        %v3813 = vadd.f32 %v3724, %v3812
        %v3814 = vpop.f32.mrf.mxu0
        %v3815 = vadd.f32 %v3726, %v3814
        %3816 = vmatmul.bf16.gmra.mxu0 %v1319
        %v3817 = vpop.f32.mrf.mxu0
        %v3818 = vadd.f32 %v3729, %v3817
        %v3819 = vpop.f32.mrf.mxu0
        %v3820 = vadd.f32 %v3731, %v3819
        %3821 = vmatmul.bf16.gmra.mxu0 %v1326
        %v3822 = vpop.f32.mrf.mxu0
        %v3823 = vadd.f32 %v3734, %v3822
        %v3824 = vpop.f32.mrf.mxu0
        %v3825 = vadd.f32 %v3736, %v3824
        %3826 = vmatmul.bf16.gmra.mxu0 %v1333
        %v3827 = vpop.f32.mrf.mxu0
        %v3828 = vadd.f32 %v3739, %v3827
        %v3829 = vpop.f32.mrf.mxu0
        %v3830 = vadd.f32 %v3741, %v3829
        %3831 = vmatmul.bf16.gmra.mxu0 %v1340
        %v3832 = vpop.f32.mrf.mxu0
        %v3833 = vadd.f32 %v3744, %v3832
        %v3834 = vpop.f32.mrf.mxu0
        %v3835 = vadd.f32 %v3746, %v3834
        %3836 = vmatmul.bf16.gmra.mxu0 %v1347
        %v3837 = vpop.f32.mrf.mxu0
        %v3838 = vadd.f32 %v3749, %v3837
        %v3839 = vpop.f32.mrf.mxu0
        %v3840 = vadd.f32 %v3751, %v3839
        %3841 = vmatmul.bf16.gmra.mxu0 %v1354
        %v3842 = vpop.f32.mrf.mxu0
        %v3843 = vadd.f32 %v3754, %v3842
        %v3844 = vpop.f32.mrf.mxu0
        %v3845 = vadd.f32 %v3756, %v3844
        %3846 = vmatmul.bf16.gmra.mxu0 %v1361
        %v3847 = vpop.f32.mrf.mxu0
        %v3848 = vadd.f32 %v3759, %v3847
        %v3849 = vpop.f32.mrf.mxu0
        %v3850 = vadd.f32 %v3761, %v3849
        %3851 = vmatmul.bf16.gmra.mxu0 %v1368
        %v3852 = vpop.f32.mrf.mxu0
        %v3853 = vadd.f32 %v3764, %v3852
        %v3854 = vpop.f32.mrf.mxu0
        %v3855 = vadd.f32 %v3766, %v3854
        %3856 = vmatmul.bf16.gmra.mxu0 %v1375
        %v3857 = vpop.f32.mrf.mxu0
        %v3858 = vadd.f32 %v3769, %v3857
        %v3859 = vpop.f32.mrf.mxu0
        %v3860 = vadd.f32 %v3771, %v3859
        %3861 = vmatmul.bf16.gmra.mxu0 %v1382
        %v3862 = vpop.f32.mrf.mxu0
        %v3863 = vadd.f32 %v3774, %v3862
        %v3864 = vpop.f32.mrf.mxu0
        %v3865 = vadd.f32 %v3776, %v3864
        %3866 = vmatmul.bf16.gmra.mxu0 %v1389
        %v3867 = vpop.f32.mrf.mxu0
        %v3868 = vadd.f32 %v3779, %v3867
        %v3869 = vpop.f32.mrf.mxu0
        %v3870 = vadd.f32 %v3781, %v3869
        %3871 = vmatmul.bf16.gmra.mxu0 %v1396
        %v3872 = vpop.f32.mrf.mxu0
        %v3873 = vadd.f32 %v3784, %v3872
        %v3874 = vpop.f32.mrf.mxu0
        %v3875 = vadd.f32 %v3786, %v3874
        %3876 = vmatmul.bf16.gmra.mxu0 %v1403
        %v3877 = vpop.f32.mrf.mxu0
        %v3878 = vadd.f32 %v3789, %v3877
        %v3879 = vpop.f32.mrf.mxu0
        %v3880 = vadd.f32 %v3791, %v3879
        %3881 = vdwg.mxu0
        %3882 = vmatpush.bf16.msra.mxu0 %v2218
        %3883 = vmatpush.bf16.msra.mxu0 %v2214
        %3884 = vmatpush.bf16.msra.mxu0 %v2210
        %3885 = vmatpush.bf16.msra.mxu0 %v2206
        %3886 = vmatpush.bf16.msra.mxu0 %v2202
        %3887 = vmatpush.bf16.msra.mxu0 %v2198
        %3888 = vmatpush.bf16.msra.mxu0 %v2194
        %3889 = vmatpush.bf16.msra.mxu0 %v2190
        %3890 = vmatmul.bf16.gmra.mxu0 %v1292
        %v3891 = vpop.f32.mrf.mxu0
        %v3892 = vadd.f32 %v934, %v3891
        %v3893 = vpop.f32.mrf.mxu0
        %v3894 = vadd.f32 %v934, %v3893
        %3895 = vmatmul.bf16.gmra.mxu0 %v1299
        %v3896 = vpop.f32.mrf.mxu0
        %v3897 = vadd.f32 %v934, %v3896
        %v3898 = vpop.f32.mrf.mxu0
        %v3899 = vadd.f32 %v934, %v3898
        %3900 = vmatmul.bf16.gmra.mxu0 %v1306
        %v3901 = vpop.f32.mrf.mxu0
        %v3902 = vadd.f32 %v934, %v3901
        %v3903 = vpop.f32.mrf.mxu0
        %v3904 = vadd.f32 %v934, %v3903
        %3905 = vmatmul.bf16.gmra.mxu0 %v1313
        %v3906 = vpop.f32.mrf.mxu0
        %v3907 = vadd.f32 %v934, %v3906
        %v3908 = vpop.f32.mrf.mxu0
        %v3909 = vadd.f32 %v934, %v3908
        %3910 = vmatmul.bf16.gmra.mxu0 %v1320
        %v3911 = vpop.f32.mrf.mxu0
        %v3912 = vadd.f32 %v934, %v3911
        %v3913 = vpop.f32.mrf.mxu0
        %v3914 = vadd.f32 %v934, %v3913
        %3915 = vmatmul.bf16.gmra.mxu0 %v1327
        %v3916 = vpop.f32.mrf.mxu0
        %v3917 = vadd.f32 %v934, %v3916
        %v3918 = vpop.f32.mrf.mxu0
        %v3919 = vadd.f32 %v934, %v3918
        %3920 = vmatmul.bf16.gmra.mxu0 %v1334
        %v3921 = vpop.f32.mrf.mxu0
        %v3922 = vadd.f32 %v934, %v3921
        %v3923 = vpop.f32.mrf.mxu0
        %v3924 = vadd.f32 %v934, %v3923
        %3925 = vmatmul.bf16.gmra.mxu0 %v1341
        %v3926 = vpop.f32.mrf.mxu0
        %v3927 = vadd.f32 %v934, %v3926
        %v3928 = vpop.f32.mrf.mxu0
        %v3929 = vadd.f32 %v934, %v3928
        %3930 = vmatmul.bf16.gmra.mxu0 %v1348
        %v3931 = vpop.f32.mrf.mxu0
        %v3932 = vadd.f32 %v934, %v3931
        %v3933 = vpop.f32.mrf.mxu0
        %v3934 = vadd.f32 %v934, %v3933
        %3935 = vmatmul.bf16.gmra.mxu0 %v1355
        %v3936 = vpop.f32.mrf.mxu0
        %v3937 = vadd.f32 %v934, %v3936
        %v3938 = vpop.f32.mrf.mxu0
        %v3939 = vadd.f32 %v934, %v3938
        %3940 = vmatmul.bf16.gmra.mxu0 %v1362
        %v3941 = vpop.f32.mrf.mxu0
        %v3942 = vadd.f32 %v934, %v3941
        %v3943 = vpop.f32.mrf.mxu0
        %v3944 = vadd.f32 %v934, %v3943
        %3945 = vmatmul.bf16.gmra.mxu0 %v1369
        %v3946 = vpop.f32.mrf.mxu0
        %v3947 = vadd.f32 %v934, %v3946
        %v3948 = vpop.f32.mrf.mxu0
        %v3949 = vadd.f32 %v934, %v3948
        %3950 = vmatmul.bf16.gmra.mxu0 %v1376
        %v3951 = vpop.f32.mrf.mxu0
        %v3952 = vadd.f32 %v934, %v3951
        %v3953 = vpop.f32.mrf.mxu0
        %v3954 = vadd.f32 %v934, %v3953
        %3955 = vmatmul.bf16.gmra.mxu0 %v1383
        %v3956 = vpop.f32.mrf.mxu0
        %v3957 = vadd.f32 %v934, %v3956
        %v3958 = vpop.f32.mrf.mxu0
        %v3959 = vadd.f32 %v934, %v3958
        %3960 = vmatmul.bf16.gmra.mxu0 %v1390
        %v3961 = vpop.f32.mrf.mxu0
        %v3962 = vadd.f32 %v934, %v3961
        %v3963 = vpop.f32.mrf.mxu0
        %v3964 = vadd.f32 %v934, %v3963
        %3965 = vmatmul.bf16.gmra.mxu0 %v1397
        %v3966 = vpop.f32.mrf.mxu0
        %v3967 = vadd.f32 %v934, %v3966
        %v3968 = vpop.f32.mrf.mxu0
        %v3969 = vadd.f32 %v934, %v3968
        %3970 = vdwg.mxu0
        %3971 = vmatpush.bf16.msra.mxu0 %v2250
        %3972 = vmatpush.bf16.msra.mxu0 %v2246
        %3973 = vmatpush.bf16.msra.mxu0 %v2242
        %3974 = vmatpush.bf16.msra.mxu0 %v2238
        %3975 = vmatpush.bf16.msra.mxu0 %v2234
        %3976 = vmatpush.bf16.msra.mxu0 %v2230
        %3977 = vmatpush.bf16.msra.mxu0 %v2226
        %3978 = vmatpush.bf16.msra.mxu0 %v2222
        %3979 = vmatmul.bf16.gmra.mxu0 %v1293
        %v3980 = vpop.f32.mrf.mxu0
        %v3981 = vadd.f32 %v3892, %v3980
        %v3982 = vpop.f32.mrf.mxu0
        %v3983 = vadd.f32 %v3894, %v3982
        %3984 = vmatmul.bf16.gmra.mxu0 %v1300
        %v3985 = vpop.f32.mrf.mxu0
        %v3986 = vadd.f32 %v3897, %v3985
        %v3987 = vpop.f32.mrf.mxu0
        %v3988 = vadd.f32 %v3899, %v3987
        %3989 = vmatmul.bf16.gmra.mxu0 %v1307
        %v3990 = vpop.f32.mrf.mxu0
        %v3991 = vadd.f32 %v3902, %v3990
        %v3992 = vpop.f32.mrf.mxu0
        %v3993 = vadd.f32 %v3904, %v3992
        %3994 = vmatmul.bf16.gmra.mxu0 %v1314
        %v3995 = vpop.f32.mrf.mxu0
        %v3996 = vadd.f32 %v3907, %v3995
        %v3997 = vpop.f32.mrf.mxu0
        %v3998 = vadd.f32 %v3909, %v3997
        %3999 = vmatmul.bf16.gmra.mxu0 %v1321
        %v4000 = vpop.f32.mrf.mxu0
        %v4001 = vadd.f32 %v3912, %v4000
        %v4002 = vpop.f32.mrf.mxu0
        %v4003 = vadd.f32 %v3914, %v4002
        %4004 = vmatmul.bf16.gmra.mxu0 %v1328
        %v4005 = vpop.f32.mrf.mxu0
        %v4006 = vadd.f32 %v3917, %v4005
        %v4007 = vpop.f32.mrf.mxu0
        %v4008 = vadd.f32 %v3919, %v4007
        %4009 = vmatmul.bf16.gmra.mxu0 %v1335
        %v4010 = vpop.f32.mrf.mxu0
        %v4011 = vadd.f32 %v3922, %v4010
        %v4012 = vpop.f32.mrf.mxu0
        %v4013 = vadd.f32 %v3924, %v4012
        %4014 = vmatmul.bf16.gmra.mxu0 %v1342
        %v4015 = vpop.f32.mrf.mxu0
        %v4016 = vadd.f32 %v3927, %v4015
        %v4017 = vpop.f32.mrf.mxu0
        %v4018 = vadd.f32 %v3929, %v4017
        %4019 = vmatmul.bf16.gmra.mxu0 %v1349
        %v4020 = vpop.f32.mrf.mxu0
        %v4021 = vadd.f32 %v3932, %v4020
        %v4022 = vpop.f32.mrf.mxu0
        %v4023 = vadd.f32 %v3934, %v4022
        %4024 = vmatmul.bf16.gmra.mxu0 %v1356
        %v4025 = vpop.f32.mrf.mxu0
        %v4026 = vadd.f32 %v3937, %v4025
        %v4027 = vpop.f32.mrf.mxu0
        %v4028 = vadd.f32 %v3939, %v4027
        %4029 = vmatmul.bf16.gmra.mxu0 %v1363
        %v4030 = vpop.f32.mrf.mxu0
        %v4031 = vadd.f32 %v3942, %v4030
        %v4032 = vpop.f32.mrf.mxu0
        %v4033 = vadd.f32 %v3944, %v4032
        %4034 = vmatmul.bf16.gmra.mxu0 %v1370
        %v4035 = vpop.f32.mrf.mxu0
        %v4036 = vadd.f32 %v3947, %v4035
        %v4037 = vpop.f32.mrf.mxu0
        %v4038 = vadd.f32 %v3949, %v4037
        %4039 = vmatmul.bf16.gmra.mxu0 %v1377
        %v4040 = vpop.f32.mrf.mxu0
        %v4041 = vadd.f32 %v3952, %v4040
        %v4042 = vpop.f32.mrf.mxu0
        %v4043 = vadd.f32 %v3954, %v4042
        %4044 = vmatmul.bf16.gmra.mxu0 %v1384
        %v4045 = vpop.f32.mrf.mxu0
        %v4046 = vadd.f32 %v3957, %v4045
        %v4047 = vpop.f32.mrf.mxu0
        %v4048 = vadd.f32 %v3959, %v4047
        %4049 = vmatmul.bf16.gmra.mxu0 %v1391
        %v4050 = vpop.f32.mrf.mxu0
        %v4051 = vadd.f32 %v3962, %v4050
        %v4052 = vpop.f32.mrf.mxu0
        %v4053 = vadd.f32 %v3964, %v4052
        %4054 = vmatmul.bf16.gmra.mxu0 %v1398
        %v4055 = vpop.f32.mrf.mxu0
        %v4056 = vadd.f32 %v3967, %v4055
        %v4057 = vpop.f32.mrf.mxu0
        %v4058 = vadd.f32 %v3969, %v4057
        %4059 = vdwg.mxu0
        %4060 = vmatpush.bf16.msra.mxu0 %v2282
        %4061 = vmatpush.bf16.msra.mxu0 %v2278
        %4062 = vmatpush.bf16.msra.mxu0 %v2274
        %4063 = vmatpush.bf16.msra.mxu0 %v2270
        %4064 = vmatpush.bf16.msra.mxu0 %v2266
        %4065 = vmatpush.bf16.msra.mxu0 %v2262
        %4066 = vmatpush.bf16.msra.mxu0 %v2258
        %4067 = vmatpush.bf16.msra.mxu0 %v2254
        %4068 = vmatmul.bf16.gmra.mxu0 %v1294
        %v4069 = vpop.f32.mrf.mxu0
        %v4070 = vadd.f32 %v3981, %v4069
        %v4071 = vpop.f32.mrf.mxu0
        %v4072 = vadd.f32 %v3983, %v4071
        %4073 = vmatmul.bf16.gmra.mxu0 %v1301
        %v4074 = vpop.f32.mrf.mxu0
        %v4075 = vadd.f32 %v3986, %v4074
        %v4076 = vpop.f32.mrf.mxu0
        %v4077 = vadd.f32 %v3988, %v4076
        %4078 = vmatmul.bf16.gmra.mxu0 %v1308
        %v4079 = vpop.f32.mrf.mxu0
        %v4080 = vadd.f32 %v3991, %v4079
        %v4081 = vpop.f32.mrf.mxu0
        %v4082 = vadd.f32 %v3993, %v4081
        %4083 = vmatmul.bf16.gmra.mxu0 %v1315
        %v4084 = vpop.f32.mrf.mxu0
        %v4085 = vadd.f32 %v3996, %v4084
        %v4086 = vpop.f32.mrf.mxu0
        %v4087 = vadd.f32 %v3998, %v4086
        %4088 = vmatmul.bf16.gmra.mxu0 %v1322
        %v4089 = vpop.f32.mrf.mxu0
        %v4090 = vadd.f32 %v4001, %v4089
        %v4091 = vpop.f32.mrf.mxu0
        %v4092 = vadd.f32 %v4003, %v4091
        %4093 = vmatmul.bf16.gmra.mxu0 %v1329
        %v4094 = vpop.f32.mrf.mxu0
        %v4095 = vadd.f32 %v4006, %v4094
        %v4096 = vpop.f32.mrf.mxu0
        %v4097 = vadd.f32 %v4008, %v4096
        %4098 = vmatmul.bf16.gmra.mxu0 %v1336
        %v4099 = vpop.f32.mrf.mxu0
        %v4100 = vadd.f32 %v4011, %v4099
        %v4101 = vpop.f32.mrf.mxu0
        %v4102 = vadd.f32 %v4013, %v4101
        %4103 = vmatmul.bf16.gmra.mxu0 %v1343
        %v4104 = vpop.f32.mrf.mxu0
        %v4105 = vadd.f32 %v4016, %v4104
        %v4106 = vpop.f32.mrf.mxu0
        %v4107 = vadd.f32 %v4018, %v4106
        %4108 = vmatmul.bf16.gmra.mxu0 %v1350
        %v4109 = vpop.f32.mrf.mxu0
        %v4110 = vadd.f32 %v4021, %v4109
        %v4111 = vpop.f32.mrf.mxu0
        %v4112 = vadd.f32 %v4023, %v4111
        %4113 = vmatmul.bf16.gmra.mxu0 %v1357
        %v4114 = vpop.f32.mrf.mxu0
        %v4115 = vadd.f32 %v4026, %v4114
        %v4116 = vpop.f32.mrf.mxu0
        %v4117 = vadd.f32 %v4028, %v4116
        %4118 = vmatmul.bf16.gmra.mxu0 %v1364
        %v4119 = vpop.f32.mrf.mxu0
        %v4120 = vadd.f32 %v4031, %v4119
        %v4121 = vpop.f32.mrf.mxu0
        %v4122 = vadd.f32 %v4033, %v4121
        %4123 = vmatmul.bf16.gmra.mxu0 %v1371
        %v4124 = vpop.f32.mrf.mxu0
        %v4125 = vadd.f32 %v4036, %v4124
        %v4126 = vpop.f32.mrf.mxu0
        %v4127 = vadd.f32 %v4038, %v4126
        %4128 = vmatmul.bf16.gmra.mxu0 %v1378
        %v4129 = vpop.f32.mrf.mxu0
        %v4130 = vadd.f32 %v4041, %v4129
        %v4131 = vpop.f32.mrf.mxu0
        %v4132 = vadd.f32 %v4043, %v4131
        %4133 = vmatmul.bf16.gmra.mxu0 %v1385
        %v4134 = vpop.f32.mrf.mxu0
        %v4135 = vadd.f32 %v4046, %v4134
        %v4136 = vpop.f32.mrf.mxu0
        %v4137 = vadd.f32 %v4048, %v4136
        %4138 = vmatmul.bf16.gmra.mxu0 %v1392
        %v4139 = vpop.f32.mrf.mxu0
        %v4140 = vadd.f32 %v4051, %v4139
        %v4141 = vpop.f32.mrf.mxu0
        %v4142 = vadd.f32 %v4053, %v4141
        %4143 = vmatmul.bf16.gmra.mxu0 %v1399
        %v4144 = vpop.f32.mrf.mxu0
        %v4145 = vadd.f32 %v4056, %v4144
        %v4146 = vpop.f32.mrf.mxu0
        %v4147 = vadd.f32 %v4058, %v4146
        %4148 = vdwg.mxu0
        %4149 = vmatpush.bf16.msra.mxu0 %v2314
        %4150 = vmatpush.bf16.msra.mxu0 %v2310
        %4151 = vmatpush.bf16.msra.mxu0 %v2306
        %4152 = vmatpush.bf16.msra.mxu0 %v2302
        %4153 = vmatpush.bf16.msra.mxu0 %v2298
        %4154 = vmatpush.bf16.msra.mxu0 %v2294
        %4155 = vmatpush.bf16.msra.mxu0 %v2290
        %4156 = vmatpush.bf16.msra.mxu0 %v2286
        %4157 = vmatmul.bf16.gmra.mxu0 %v1295
        %v4158 = vpop.f32.mrf.mxu0
        %v4159 = vadd.f32 %v4070, %v4158
        %v4160 = vpop.f32.mrf.mxu0
        %v4161 = vadd.f32 %v4072, %v4160
        %4162 = vmatmul.bf16.gmra.mxu0 %v1302
        %v4163 = vpop.f32.mrf.mxu0
        %v4164 = vadd.f32 %v4075, %v4163
        %v4165 = vpop.f32.mrf.mxu0
        %v4166 = vadd.f32 %v4077, %v4165
        %4167 = vmatmul.bf16.gmra.mxu0 %v1309
        %v4168 = vpop.f32.mrf.mxu0
        %v4169 = vadd.f32 %v4080, %v4168
        %v4170 = vpop.f32.mrf.mxu0
        %v4171 = vadd.f32 %v4082, %v4170
        %4172 = vmatmul.bf16.gmra.mxu0 %v1316
        %v4173 = vpop.f32.mrf.mxu0
        %v4174 = vadd.f32 %v4085, %v4173
        %v4175 = vpop.f32.mrf.mxu0
        %v4176 = vadd.f32 %v4087, %v4175
        %4177 = vmatmul.bf16.gmra.mxu0 %v1323
        %v4178 = vpop.f32.mrf.mxu0
        %v4179 = vadd.f32 %v4090, %v4178
        %v4180 = vpop.f32.mrf.mxu0
        %v4181 = vadd.f32 %v4092, %v4180
        %4182 = vmatmul.bf16.gmra.mxu0 %v1330
        %v4183 = vpop.f32.mrf.mxu0
        %v4184 = vadd.f32 %v4095, %v4183
        %v4185 = vpop.f32.mrf.mxu0
        %v4186 = vadd.f32 %v4097, %v4185
        %4187 = vmatmul.bf16.gmra.mxu0 %v1337
        %v4188 = vpop.f32.mrf.mxu0
        %v4189 = vadd.f32 %v4100, %v4188
        %v4190 = vpop.f32.mrf.mxu0
        %v4191 = vadd.f32 %v4102, %v4190
        %4192 = vmatmul.bf16.gmra.mxu0 %v1344
        %v4193 = vpop.f32.mrf.mxu0
        %v4194 = vadd.f32 %v4105, %v4193
        %v4195 = vpop.f32.mrf.mxu0
        %v4196 = vadd.f32 %v4107, %v4195
        %4197 = vmatmul.bf16.gmra.mxu0 %v1351
        %v4198 = vpop.f32.mrf.mxu0
        %v4199 = vadd.f32 %v4110, %v4198
        %v4200 = vpop.f32.mrf.mxu0
        %v4201 = vadd.f32 %v4112, %v4200
        %4202 = vmatmul.bf16.gmra.mxu0 %v1358
        %v4203 = vpop.f32.mrf.mxu0
        %v4204 = vadd.f32 %v4115, %v4203
        %v4205 = vpop.f32.mrf.mxu0
        %v4206 = vadd.f32 %v4117, %v4205
        %4207 = vmatmul.bf16.gmra.mxu0 %v1365
        %v4208 = vpop.f32.mrf.mxu0
        %v4209 = vadd.f32 %v4120, %v4208
        %v4210 = vpop.f32.mrf.mxu0
        %v4211 = vadd.f32 %v4122, %v4210
        %4212 = vmatmul.bf16.gmra.mxu0 %v1372
        %v4213 = vpop.f32.mrf.mxu0
        %v4214 = vadd.f32 %v4125, %v4213
        %v4215 = vpop.f32.mrf.mxu0
        %v4216 = vadd.f32 %v4127, %v4215
        %4217 = vmatmul.bf16.gmra.mxu0 %v1379
        %v4218 = vpop.f32.mrf.mxu0
        %v4219 = vadd.f32 %v4130, %v4218
        %v4220 = vpop.f32.mrf.mxu0
        %v4221 = vadd.f32 %v4132, %v4220
        %4222 = vmatmul.bf16.gmra.mxu0 %v1386
        %v4223 = vpop.f32.mrf.mxu0
        %v4224 = vadd.f32 %v4135, %v4223
        %v4225 = vpop.f32.mrf.mxu0
        %v4226 = vadd.f32 %v4137, %v4225
        %4227 = vmatmul.bf16.gmra.mxu0 %v1393
        %v4228 = vpop.f32.mrf.mxu0
        %v4229 = vadd.f32 %v4140, %v4228
        %v4230 = vpop.f32.mrf.mxu0
        %v4231 = vadd.f32 %v4142, %v4230
        %4232 = vmatmul.bf16.gmra.mxu0 %v1400
        %v4233 = vpop.f32.mrf.mxu0
        %v4234 = vadd.f32 %v4145, %v4233
        %v4235 = vpop.f32.mrf.mxu0
        %v4236 = vadd.f32 %v4147, %v4235
        %4237 = vdwg.mxu0
        %4238 = vmatpush.bf16.msra.mxu0 %v2346
        %4239 = vmatpush.bf16.msra.mxu0 %v2342
        %4240 = vmatpush.bf16.msra.mxu0 %v2338
        %4241 = vmatpush.bf16.msra.mxu0 %v2334
        %4242 = vmatpush.bf16.msra.mxu0 %v2330
        %4243 = vmatpush.bf16.msra.mxu0 %v2326
        %4244 = vmatpush.bf16.msra.mxu0 %v2322
        %4245 = vmatpush.bf16.msra.mxu0 %v2318
        %4246 = vmatmul.bf16.gmra.mxu0 %v1296
        %v4247 = vpop.f32.mrf.mxu0
        %v4248 = vadd.f32 %v4159, %v4247
        %v4249 = vpop.f32.mrf.mxu0
        %v4250 = vadd.f32 %v4161, %v4249
        %4251 = vmatmul.bf16.gmra.mxu0 %v1303
        %v4252 = vpop.f32.mrf.mxu0
        %v4253 = vadd.f32 %v4164, %v4252
        %v4254 = vpop.f32.mrf.mxu0
        %v4255 = vadd.f32 %v4166, %v4254
        %4256 = vmatmul.bf16.gmra.mxu0 %v1310
        %v4257 = vpop.f32.mrf.mxu0
        %v4258 = vadd.f32 %v4169, %v4257
        %v4259 = vpop.f32.mrf.mxu0
        %v4260 = vadd.f32 %v4171, %v4259
        %4261 = vmatmul.bf16.gmra.mxu0 %v1317
        %v4262 = vpop.f32.mrf.mxu0
        %v4263 = vadd.f32 %v4174, %v4262
        %v4264 = vpop.f32.mrf.mxu0
        %v4265 = vadd.f32 %v4176, %v4264
        %4266 = vmatmul.bf16.gmra.mxu0 %v1324
        %v4267 = vpop.f32.mrf.mxu0
        %v4268 = vadd.f32 %v4179, %v4267
        %v4269 = vpop.f32.mrf.mxu0
        %v4270 = vadd.f32 %v4181, %v4269
        %4271 = vmatmul.bf16.gmra.mxu0 %v1331
        %v4272 = vpop.f32.mrf.mxu0
        %v4273 = vadd.f32 %v4184, %v4272
        %v4274 = vpop.f32.mrf.mxu0
        %v4275 = vadd.f32 %v4186, %v4274
        %4276 = vmatmul.bf16.gmra.mxu0 %v1338
        %v4277 = vpop.f32.mrf.mxu0
        %v4278 = vadd.f32 %v4189, %v4277
        %v4279 = vpop.f32.mrf.mxu0
        %v4280 = vadd.f32 %v4191, %v4279
        %4281 = vmatmul.bf16.gmra.mxu0 %v1345
        %v4282 = vpop.f32.mrf.mxu0
        %v4283 = vadd.f32 %v4194, %v4282
        %v4284 = vpop.f32.mrf.mxu0
        %v4285 = vadd.f32 %v4196, %v4284
        %4286 = vmatmul.bf16.gmra.mxu0 %v1352
        %v4287 = vpop.f32.mrf.mxu0
        %v4288 = vadd.f32 %v4199, %v4287
        %v4289 = vpop.f32.mrf.mxu0
        %v4290 = vadd.f32 %v4201, %v4289
        %4291 = vmatmul.bf16.gmra.mxu0 %v1359
        %v4292 = vpop.f32.mrf.mxu0
        %v4293 = vadd.f32 %v4204, %v4292
        %v4294 = vpop.f32.mrf.mxu0
        %v4295 = vadd.f32 %v4206, %v4294
        %4296 = vmatmul.bf16.gmra.mxu0 %v1366
        %v4297 = vpop.f32.mrf.mxu0
        %v4298 = vadd.f32 %v4209, %v4297
        %v4299 = vpop.f32.mrf.mxu0
        %v4300 = vadd.f32 %v4211, %v4299
        %4301 = vmatmul.bf16.gmra.mxu0 %v1373
        %v4302 = vpop.f32.mrf.mxu0
        %v4303 = vadd.f32 %v4214, %v4302
        %v4304 = vpop.f32.mrf.mxu0
        %v4305 = vadd.f32 %v4216, %v4304
        %4306 = vmatmul.bf16.gmra.mxu0 %v1380
        %v4307 = vpop.f32.mrf.mxu0
        %v4308 = vadd.f32 %v4219, %v4307
        %v4309 = vpop.f32.mrf.mxu0
        %v4310 = vadd.f32 %v4221, %v4309
        %4311 = vmatmul.bf16.gmra.mxu0 %v1387
        %v4312 = vpop.f32.mrf.mxu0
        %v4313 = vadd.f32 %v4224, %v4312
        %v4314 = vpop.f32.mrf.mxu0
        %v4315 = vadd.f32 %v4226, %v4314
        %4316 = vmatmul.bf16.gmra.mxu0 %v1394
        %v4317 = vpop.f32.mrf.mxu0
        %v4318 = vadd.f32 %v4229, %v4317
        %v4319 = vpop.f32.mrf.mxu0
        %v4320 = vadd.f32 %v4231, %v4319
        %4321 = vmatmul.bf16.gmra.mxu0 %v1401
        %v4322 = vpop.f32.mrf.mxu0
        %v4323 = vadd.f32 %v4234, %v4322
        %v4324 = vpop.f32.mrf.mxu0
        %v4325 = vadd.f32 %v4236, %v4324
        %4326 = vdwg.mxu0
        %4327 = vmatpush.bf16.msra.mxu0 %v2378
        %4328 = vmatpush.bf16.msra.mxu0 %v2374
        %4329 = vmatpush.bf16.msra.mxu0 %v2370
        %4330 = vmatpush.bf16.msra.mxu0 %v2366
        %4331 = vmatpush.bf16.msra.mxu0 %v2362
        %4332 = vmatpush.bf16.msra.mxu0 %v2358
        %4333 = vmatpush.bf16.msra.mxu0 %v2354
        %4334 = vmatpush.bf16.msra.mxu0 %v2350
        %4335 = vmatmul.bf16.gmra.mxu0 %v1297
        %v4336 = vpop.f32.mrf.mxu0
        %v4337 = vadd.f32 %v4248, %v4336
        %v4338 = vpop.f32.mrf.mxu0
        %v4339 = vadd.f32 %v4250, %v4338
        %4340 = vmatmul.bf16.gmra.mxu0 %v1304
        %v4341 = vpop.f32.mrf.mxu0
        %v4342 = vadd.f32 %v4253, %v4341
        %v4343 = vpop.f32.mrf.mxu0
        %v4344 = vadd.f32 %v4255, %v4343
        %4345 = vmatmul.bf16.gmra.mxu0 %v1311
        %v4346 = vpop.f32.mrf.mxu0
        %v4347 = vadd.f32 %v4258, %v4346
        %v4348 = vpop.f32.mrf.mxu0
        %v4349 = vadd.f32 %v4260, %v4348
        %4350 = vmatmul.bf16.gmra.mxu0 %v1318
        %v4351 = vpop.f32.mrf.mxu0
        %v4352 = vadd.f32 %v4263, %v4351
        %v4353 = vpop.f32.mrf.mxu0
        %v4354 = vadd.f32 %v4265, %v4353
        %4355 = vmatmul.bf16.gmra.mxu0 %v1325
        %v4356 = vpop.f32.mrf.mxu0
        %v4357 = vadd.f32 %v4268, %v4356
        %v4358 = vpop.f32.mrf.mxu0
        %v4359 = vadd.f32 %v4270, %v4358
        %4360 = vmatmul.bf16.gmra.mxu0 %v1332
        %v4361 = vpop.f32.mrf.mxu0
        %v4362 = vadd.f32 %v4273, %v4361
        %v4363 = vpop.f32.mrf.mxu0
        %v4364 = vadd.f32 %v4275, %v4363
        %4365 = vmatmul.bf16.gmra.mxu0 %v1339
        %v4366 = vpop.f32.mrf.mxu0
        %v4367 = vadd.f32 %v4278, %v4366
        %v4368 = vpop.f32.mrf.mxu0
        %v4369 = vadd.f32 %v4280, %v4368
        %4370 = vmatmul.bf16.gmra.mxu0 %v1346
        %v4371 = vpop.f32.mrf.mxu0
        %v4372 = vadd.f32 %v4283, %v4371
        %v4373 = vpop.f32.mrf.mxu0
        %v4374 = vadd.f32 %v4285, %v4373
        %4375 = vmatmul.bf16.gmra.mxu0 %v1353
        %v4376 = vpop.f32.mrf.mxu0
        %v4377 = vadd.f32 %v4288, %v4376
        %v4378 = vpop.f32.mrf.mxu0
        %v4379 = vadd.f32 %v4290, %v4378
        %4380 = vmatmul.bf16.gmra.mxu0 %v1360
        %v4381 = vpop.f32.mrf.mxu0
        %v4382 = vadd.f32 %v4293, %v4381
        %v4383 = vpop.f32.mrf.mxu0
        %v4384 = vadd.f32 %v4295, %v4383
        %4385 = vmatmul.bf16.gmra.mxu0 %v1367
        %v4386 = vpop.f32.mrf.mxu0
        %v4387 = vadd.f32 %v4298, %v4386
        %v4388 = vpop.f32.mrf.mxu0
        %v4389 = vadd.f32 %v4300, %v4388
        %4390 = vmatmul.bf16.gmra.mxu0 %v1374
        %v4391 = vpop.f32.mrf.mxu0
        %v4392 = vadd.f32 %v4303, %v4391
        %v4393 = vpop.f32.mrf.mxu0
        %v4394 = vadd.f32 %v4305, %v4393
        %4395 = vmatmul.bf16.gmra.mxu0 %v1381
        %v4396 = vpop.f32.mrf.mxu0
        %v4397 = vadd.f32 %v4308, %v4396
        %v4398 = vpop.f32.mrf.mxu0
        %v4399 = vadd.f32 %v4310, %v4398
        %4400 = vmatmul.bf16.gmra.mxu0 %v1388
        %v4401 = vpop.f32.mrf.mxu0
        %v4402 = vadd.f32 %v4313, %v4401
        %v4403 = vpop.f32.mrf.mxu0
        %v4404 = vadd.f32 %v4315, %v4403
        %4405 = vmatmul.bf16.gmra.mxu0 %v1395
        %v4406 = vpop.f32.mrf.mxu0
        %v4407 = vadd.f32 %v4318, %v4406
        %v4408 = vpop.f32.mrf.mxu0
        %v4409 = vadd.f32 %v4320, %v4408
        %4410 = vmatmul.bf16.gmra.mxu0 %v1402
        %v4411 = vpop.f32.mrf.mxu0
        %v4412 = vadd.f32 %v4323, %v4411
        %v4413 = vpop.f32.mrf.mxu0
        %v4414 = vadd.f32 %v4325, %v4413
        %4415 = vdwg.mxu0
        %4416 = vmatpush.bf16.msra.mxu0 %v2410
        %4417 = vmatpush.bf16.msra.mxu0 %v2406
        %4418 = vmatpush.bf16.msra.mxu0 %v2402
        %4419 = vmatpush.bf16.msra.mxu0 %v2398
        %4420 = vmatpush.bf16.msra.mxu0 %v2394
        %4421 = vmatpush.bf16.msra.mxu0 %v2390
        %4422 = vmatpush.bf16.msra.mxu0 %v2386
        %4423 = vmatpush.bf16.msra.mxu0 %v2382
        %4424 = vmatmul.bf16.gmra.mxu0 %v1298
        %v4425 = vpop.f32.mrf.mxu0
        %v4426 = vadd.f32 %v4337, %v4425
        %v4427 = vpop.f32.mrf.mxu0
        %v4428 = vadd.f32 %v4339, %v4427
        %4429 = vmatmul.bf16.gmra.mxu0 %v1305
        %v4430 = vpop.f32.mrf.mxu0
        %v4431 = vadd.f32 %v4342, %v4430
        %v4432 = vpop.f32.mrf.mxu0
        %v4433 = vadd.f32 %v4344, %v4432
        %4434 = vmatmul.bf16.gmra.mxu0 %v1312
        %v4435 = vpop.f32.mrf.mxu0
        %v4436 = vadd.f32 %v4347, %v4435
        %v4437 = vpop.f32.mrf.mxu0
        %v4438 = vadd.f32 %v4349, %v4437
        %4439 = vmatmul.bf16.gmra.mxu0 %v1319
        %v4440 = vpop.f32.mrf.mxu0
        %v4441 = vadd.f32 %v4352, %v4440
        %v4442 = vpop.f32.mrf.mxu0
        %v4443 = vadd.f32 %v4354, %v4442
        %4444 = vmatmul.bf16.gmra.mxu0 %v1326
        %v4445 = vpop.f32.mrf.mxu0
        %v4446 = vadd.f32 %v4357, %v4445
        %v4447 = vpop.f32.mrf.mxu0
        %v4448 = vadd.f32 %v4359, %v4447
        %4449 = vmatmul.bf16.gmra.mxu0 %v1333
        %v4450 = vpop.f32.mrf.mxu0
        %v4451 = vadd.f32 %v4362, %v4450
        %v4452 = vpop.f32.mrf.mxu0
        %v4453 = vadd.f32 %v4364, %v4452
        %4454 = vmatmul.bf16.gmra.mxu0 %v1340
        %v4455 = vpop.f32.mrf.mxu0
        %v4456 = vadd.f32 %v4367, %v4455
        %v4457 = vpop.f32.mrf.mxu0
        %v4458 = vadd.f32 %v4369, %v4457
        %4459 = vmatmul.bf16.gmra.mxu0 %v1347
        %v4460 = vpop.f32.mrf.mxu0
        %v4461 = vadd.f32 %v4372, %v4460
        %v4462 = vpop.f32.mrf.mxu0
        %v4463 = vadd.f32 %v4374, %v4462
        %4464 = vmatmul.bf16.gmra.mxu0 %v1354
        %v4465 = vpop.f32.mrf.mxu0
        %v4466 = vadd.f32 %v4377, %v4465
        %v4467 = vpop.f32.mrf.mxu0
        %v4468 = vadd.f32 %v4379, %v4467
        %4469 = vmatmul.bf16.gmra.mxu0 %v1361
        %v4470 = vpop.f32.mrf.mxu0
        %v4471 = vadd.f32 %v4382, %v4470
        %v4472 = vpop.f32.mrf.mxu0
        %v4473 = vadd.f32 %v4384, %v4472
        %4474 = vmatmul.bf16.gmra.mxu0 %v1368
        %v4475 = vpop.f32.mrf.mxu0
        %v4476 = vadd.f32 %v4387, %v4475
        %v4477 = vpop.f32.mrf.mxu0
        %v4478 = vadd.f32 %v4389, %v4477
        %4479 = vmatmul.bf16.gmra.mxu0 %v1375
        %v4480 = vpop.f32.mrf.mxu0
        %v4481 = vadd.f32 %v4392, %v4480
        %v4482 = vpop.f32.mrf.mxu0
        %v4483 = vadd.f32 %v4394, %v4482
        %4484 = vmatmul.bf16.gmra.mxu0 %v1382
        %v4485 = vpop.f32.mrf.mxu0
        %v4486 = vadd.f32 %v4397, %v4485
        %v4487 = vpop.f32.mrf.mxu0
        %v4488 = vadd.f32 %v4399, %v4487
        %4489 = vmatmul.bf16.gmra.mxu0 %v1389
        %v4490 = vpop.f32.mrf.mxu0
        %v4491 = vadd.f32 %v4402, %v4490
        %v4492 = vpop.f32.mrf.mxu0
        %v4493 = vadd.f32 %v4404, %v4492
        %4494 = vmatmul.bf16.gmra.mxu0 %v1396
        %v4495 = vpop.f32.mrf.mxu0
        %v4496 = vadd.f32 %v4407, %v4495
        %v4497 = vpop.f32.mrf.mxu0
        %v4498 = vadd.f32 %v4409, %v4497
        %4499 = vmatmul.bf16.gmra.mxu0 %v1403
        %v4500 = vpop.f32.mrf.mxu0
        %v4501 = vadd.f32 %v4412, %v4500
        %v4502 = vpop.f32.mrf.mxu0
        %v4503 = vadd.f32 %v4414, %v4502
        %4504 = vdwg.mxu0
        %4505 = vmatpush.bf16.msra.mxu0 %v2219
        %4506 = vmatpush.bf16.msra.mxu0 %v2215
        %4507 = vmatpush.bf16.msra.mxu0 %v2211
        %4508 = vmatpush.bf16.msra.mxu0 %v2207
        %4509 = vmatpush.bf16.msra.mxu0 %v2203
        %4510 = vmatpush.bf16.msra.mxu0 %v2199
        %4511 = vmatpush.bf16.msra.mxu0 %v2195
        %4512 = vmatpush.bf16.msra.mxu0 %v2191
        %4513 = vmatmul.bf16.gmra.mxu0 %v1292
        %v4514 = vpop.f32.mrf.mxu0
        %v4515 = vadd.f32 %v935, %v4514
        %v4516 = vpop.f32.mrf.mxu0
        %v4517 = vadd.f32 %v935, %v4516
        %4518 = vmatmul.bf16.gmra.mxu0 %v1299
        %v4519 = vpop.f32.mrf.mxu0
        %v4520 = vadd.f32 %v935, %v4519
        %v4521 = vpop.f32.mrf.mxu0
        %v4522 = vadd.f32 %v935, %v4521
        %4523 = vmatmul.bf16.gmra.mxu0 %v1306
        %v4524 = vpop.f32.mrf.mxu0
        %v4525 = vadd.f32 %v935, %v4524
        %v4526 = vpop.f32.mrf.mxu0
        %v4527 = vadd.f32 %v935, %v4526
        %4528 = vmatmul.bf16.gmra.mxu0 %v1313
        %v4529 = vpop.f32.mrf.mxu0
        %v4530 = vadd.f32 %v935, %v4529
        %v4531 = vpop.f32.mrf.mxu0
        %v4532 = vadd.f32 %v935, %v4531
        %4533 = vmatmul.bf16.gmra.mxu0 %v1320
        %v4534 = vpop.f32.mrf.mxu0
        %v4535 = vadd.f32 %v935, %v4534
        %v4536 = vpop.f32.mrf.mxu0
        %v4537 = vadd.f32 %v935, %v4536
        %4538 = vmatmul.bf16.gmra.mxu0 %v1327
        %v4539 = vpop.f32.mrf.mxu0
        %v4540 = vadd.f32 %v935, %v4539
        %v4541 = vpop.f32.mrf.mxu0
        %v4542 = vadd.f32 %v935, %v4541
        %4543 = vmatmul.bf16.gmra.mxu0 %v1334
        %v4544 = vpop.f32.mrf.mxu0
        %v4545 = vadd.f32 %v935, %v4544
        %v4546 = vpop.f32.mrf.mxu0
        %v4547 = vadd.f32 %v935, %v4546
        %4548 = vmatmul.bf16.gmra.mxu0 %v1341
        %v4549 = vpop.f32.mrf.mxu0
        %v4550 = vadd.f32 %v935, %v4549
        %v4551 = vpop.f32.mrf.mxu0
        %v4552 = vadd.f32 %v935, %v4551
        %4553 = vmatmul.bf16.gmra.mxu0 %v1348
        %v4554 = vpop.f32.mrf.mxu0
        %v4555 = vadd.f32 %v935, %v4554
        %v4556 = vpop.f32.mrf.mxu0
        %v4557 = vadd.f32 %v935, %v4556
        %4558 = vmatmul.bf16.gmra.mxu0 %v1355
        %v4559 = vpop.f32.mrf.mxu0
        %v4560 = vadd.f32 %v935, %v4559
        %v4561 = vpop.f32.mrf.mxu0
        %v4562 = vadd.f32 %v935, %v4561
        %4563 = vmatmul.bf16.gmra.mxu0 %v1362
        %v4564 = vpop.f32.mrf.mxu0
        %v4565 = vadd.f32 %v935, %v4564
        %v4566 = vpop.f32.mrf.mxu0
        %v4567 = vadd.f32 %v935, %v4566
        %4568 = vmatmul.bf16.gmra.mxu0 %v1369
        %v4569 = vpop.f32.mrf.mxu0
        %v4570 = vadd.f32 %v935, %v4569
        %v4571 = vpop.f32.mrf.mxu0
        %v4572 = vadd.f32 %v935, %v4571
        %4573 = vmatmul.bf16.gmra.mxu0 %v1376
        %v4574 = vpop.f32.mrf.mxu0
        %v4575 = vadd.f32 %v935, %v4574
        %v4576 = vpop.f32.mrf.mxu0
        %v4577 = vadd.f32 %v935, %v4576
        %4578 = vmatmul.bf16.gmra.mxu0 %v1383
        %v4579 = vpop.f32.mrf.mxu0
        %v4580 = vadd.f32 %v935, %v4579
        %v4581 = vpop.f32.mrf.mxu0
        %v4582 = vadd.f32 %v935, %v4581
        %4583 = vmatmul.bf16.gmra.mxu0 %v1390
        %v4584 = vpop.f32.mrf.mxu0
        %v4585 = vadd.f32 %v935, %v4584
        %v4586 = vpop.f32.mrf.mxu0
        %v4587 = vadd.f32 %v935, %v4586
        %4588 = vmatmul.bf16.gmra.mxu0 %v1397
        %v4589 = vpop.f32.mrf.mxu0
        %v4590 = vadd.f32 %v935, %v4589
        %v4591 = vpop.f32.mrf.mxu0
        %v4592 = vadd.f32 %v935, %v4591
        %4593 = vdwg.mxu0
        %4594 = vmatpush.bf16.msra.mxu0 %v2251
        %4595 = vmatpush.bf16.msra.mxu0 %v2247
        %4596 = vmatpush.bf16.msra.mxu0 %v2243
        %4597 = vmatpush.bf16.msra.mxu0 %v2239
        %4598 = vmatpush.bf16.msra.mxu0 %v2235
        %4599 = vmatpush.bf16.msra.mxu0 %v2231
        %4600 = vmatpush.bf16.msra.mxu0 %v2227
        %4601 = vmatpush.bf16.msra.mxu0 %v2223
        %4602 = vmatmul.bf16.gmra.mxu0 %v1293
        %v4603 = vpop.f32.mrf.mxu0
        %v4604 = vadd.f32 %v4515, %v4603
        %v4605 = vpop.f32.mrf.mxu0
        %v4606 = vadd.f32 %v4517, %v4605
        %4607 = vmatmul.bf16.gmra.mxu0 %v1300
        %v4608 = vpop.f32.mrf.mxu0
        %v4609 = vadd.f32 %v4520, %v4608
        %v4610 = vpop.f32.mrf.mxu0
        %v4611 = vadd.f32 %v4522, %v4610
        %4612 = vmatmul.bf16.gmra.mxu0 %v1307
        %v4613 = vpop.f32.mrf.mxu0
        %v4614 = vadd.f32 %v4525, %v4613
        %v4615 = vpop.f32.mrf.mxu0
        %v4616 = vadd.f32 %v4527, %v4615
        %4617 = vmatmul.bf16.gmra.mxu0 %v1314
        %v4618 = vpop.f32.mrf.mxu0
        %v4619 = vadd.f32 %v4530, %v4618
        %v4620 = vpop.f32.mrf.mxu0
        %v4621 = vadd.f32 %v4532, %v4620
        %4622 = vmatmul.bf16.gmra.mxu0 %v1321
        %v4623 = vpop.f32.mrf.mxu0
        %v4624 = vadd.f32 %v4535, %v4623
        %v4625 = vpop.f32.mrf.mxu0
        %v4626 = vadd.f32 %v4537, %v4625
        %4627 = vmatmul.bf16.gmra.mxu0 %v1328
        %v4628 = vpop.f32.mrf.mxu0
        %v4629 = vadd.f32 %v4540, %v4628
        %v4630 = vpop.f32.mrf.mxu0
        %v4631 = vadd.f32 %v4542, %v4630
        %4632 = vmatmul.bf16.gmra.mxu0 %v1335
        %v4633 = vpop.f32.mrf.mxu0
        %v4634 = vadd.f32 %v4545, %v4633
        %v4635 = vpop.f32.mrf.mxu0
        %v4636 = vadd.f32 %v4547, %v4635
        %4637 = vmatmul.bf16.gmra.mxu0 %v1342
        %v4638 = vpop.f32.mrf.mxu0
        %v4639 = vadd.f32 %v4550, %v4638
        %v4640 = vpop.f32.mrf.mxu0
        %v4641 = vadd.f32 %v4552, %v4640
        %4642 = vmatmul.bf16.gmra.mxu0 %v1349
        %v4643 = vpop.f32.mrf.mxu0
        %v4644 = vadd.f32 %v4555, %v4643
        %v4645 = vpop.f32.mrf.mxu0
        %v4646 = vadd.f32 %v4557, %v4645
        %4647 = vmatmul.bf16.gmra.mxu0 %v1356
        %v4648 = vpop.f32.mrf.mxu0
        %v4649 = vadd.f32 %v4560, %v4648
        %v4650 = vpop.f32.mrf.mxu0
        %v4651 = vadd.f32 %v4562, %v4650
        %4652 = vmatmul.bf16.gmra.mxu0 %v1363
        %v4653 = vpop.f32.mrf.mxu0
        %v4654 = vadd.f32 %v4565, %v4653
        %v4655 = vpop.f32.mrf.mxu0
        %v4656 = vadd.f32 %v4567, %v4655
        %4657 = vmatmul.bf16.gmra.mxu0 %v1370
        %v4658 = vpop.f32.mrf.mxu0
        %v4659 = vadd.f32 %v4570, %v4658
        %v4660 = vpop.f32.mrf.mxu0
        %v4661 = vadd.f32 %v4572, %v4660
        %4662 = vmatmul.bf16.gmra.mxu0 %v1377
        %v4663 = vpop.f32.mrf.mxu0
        %v4664 = vadd.f32 %v4575, %v4663
        %v4665 = vpop.f32.mrf.mxu0
        %v4666 = vadd.f32 %v4577, %v4665
        %4667 = vmatmul.bf16.gmra.mxu0 %v1384
        %v4668 = vpop.f32.mrf.mxu0
        %v4669 = vadd.f32 %v4580, %v4668
        %v4670 = vpop.f32.mrf.mxu0
        %v4671 = vadd.f32 %v4582, %v4670
        %4672 = vmatmul.bf16.gmra.mxu0 %v1391
        %v4673 = vpop.f32.mrf.mxu0
        %v4674 = vadd.f32 %v4585, %v4673
        %v4675 = vpop.f32.mrf.mxu0
        %v4676 = vadd.f32 %v4587, %v4675
        %4677 = vmatmul.bf16.gmra.mxu0 %v1398
        %v4678 = vpop.f32.mrf.mxu0
        %v4679 = vadd.f32 %v4590, %v4678
        %v4680 = vpop.f32.mrf.mxu0
        %v4681 = vadd.f32 %v4592, %v4680
        %4682 = vdwg.mxu0
        %4683 = vmatpush.bf16.msra.mxu0 %v2283
        %4684 = vmatpush.bf16.msra.mxu0 %v2279
        %4685 = vmatpush.bf16.msra.mxu0 %v2275
        %4686 = vmatpush.bf16.msra.mxu0 %v2271
        %4687 = vmatpush.bf16.msra.mxu0 %v2267
        %4688 = vmatpush.bf16.msra.mxu0 %v2263
        %4689 = vmatpush.bf16.msra.mxu0 %v2259
        %4690 = vmatpush.bf16.msra.mxu0 %v2255
        %4691 = vmatmul.bf16.gmra.mxu0 %v1294
        %v4692 = vpop.f32.mrf.mxu0
        %v4693 = vadd.f32 %v4604, %v4692
        %v4694 = vpop.f32.mrf.mxu0
        %v4695 = vadd.f32 %v4606, %v4694
        %4696 = vmatmul.bf16.gmra.mxu0 %v1301
        %v4697 = vpop.f32.mrf.mxu0
        %v4698 = vadd.f32 %v4609, %v4697
        %v4699 = vpop.f32.mrf.mxu0
        %v4700 = vadd.f32 %v4611, %v4699
        %4701 = vmatmul.bf16.gmra.mxu0 %v1308
        %v4702 = vpop.f32.mrf.mxu0
        %v4703 = vadd.f32 %v4614, %v4702
        %v4704 = vpop.f32.mrf.mxu0
        %v4705 = vadd.f32 %v4616, %v4704
        %4706 = vmatmul.bf16.gmra.mxu0 %v1315
        %v4707 = vpop.f32.mrf.mxu0
        %v4708 = vadd.f32 %v4619, %v4707
        %v4709 = vpop.f32.mrf.mxu0
        %v4710 = vadd.f32 %v4621, %v4709
        %4711 = vmatmul.bf16.gmra.mxu0 %v1322
        %v4712 = vpop.f32.mrf.mxu0
        %v4713 = vadd.f32 %v4624, %v4712
        %v4714 = vpop.f32.mrf.mxu0
        %v4715 = vadd.f32 %v4626, %v4714
        %4716 = vmatmul.bf16.gmra.mxu0 %v1329
        %v4717 = vpop.f32.mrf.mxu0
        %v4718 = vadd.f32 %v4629, %v4717
        %v4719 = vpop.f32.mrf.mxu0
        %v4720 = vadd.f32 %v4631, %v4719
        %4721 = vmatmul.bf16.gmra.mxu0 %v1336
        %v4722 = vpop.f32.mrf.mxu0
        %v4723 = vadd.f32 %v4634, %v4722
        %v4724 = vpop.f32.mrf.mxu0
        %v4725 = vadd.f32 %v4636, %v4724
        %4726 = vmatmul.bf16.gmra.mxu0 %v1343
        %v4727 = vpop.f32.mrf.mxu0
        %v4728 = vadd.f32 %v4639, %v4727
        %v4729 = vpop.f32.mrf.mxu0
        %v4730 = vadd.f32 %v4641, %v4729
        %4731 = vmatmul.bf16.gmra.mxu0 %v1350
        %v4732 = vpop.f32.mrf.mxu0
        %v4733 = vadd.f32 %v4644, %v4732
        %v4734 = vpop.f32.mrf.mxu0
        %v4735 = vadd.f32 %v4646, %v4734
        %4736 = vmatmul.bf16.gmra.mxu0 %v1357
        %v4737 = vpop.f32.mrf.mxu0
        %v4738 = vadd.f32 %v4649, %v4737
        %v4739 = vpop.f32.mrf.mxu0
        %v4740 = vadd.f32 %v4651, %v4739
        %4741 = vmatmul.bf16.gmra.mxu0 %v1364
        %v4742 = vpop.f32.mrf.mxu0
        %v4743 = vadd.f32 %v4654, %v4742
        %v4744 = vpop.f32.mrf.mxu0
        %v4745 = vadd.f32 %v4656, %v4744
        %4746 = vmatmul.bf16.gmra.mxu0 %v1371
        %v4747 = vpop.f32.mrf.mxu0
        %v4748 = vadd.f32 %v4659, %v4747
        %v4749 = vpop.f32.mrf.mxu0
        %v4750 = vadd.f32 %v4661, %v4749
        %4751 = vmatmul.bf16.gmra.mxu0 %v1378
        %v4752 = vpop.f32.mrf.mxu0
        %v4753 = vadd.f32 %v4664, %v4752
        %v4754 = vpop.f32.mrf.mxu0
        %v4755 = vadd.f32 %v4666, %v4754
        %4756 = vmatmul.bf16.gmra.mxu0 %v1385
        %v4757 = vpop.f32.mrf.mxu0
        %v4758 = vadd.f32 %v4669, %v4757
        %v4759 = vpop.f32.mrf.mxu0
        %v4760 = vadd.f32 %v4671, %v4759
        %4761 = vmatmul.bf16.gmra.mxu0 %v1392
        %v4762 = vpop.f32.mrf.mxu0
        %v4763 = vadd.f32 %v4674, %v4762
        %v4764 = vpop.f32.mrf.mxu0
        %v4765 = vadd.f32 %v4676, %v4764
        %4766 = vmatmul.bf16.gmra.mxu0 %v1399
        %v4767 = vpop.f32.mrf.mxu0
        %v4768 = vadd.f32 %v4679, %v4767
        %v4769 = vpop.f32.mrf.mxu0
        %v4770 = vadd.f32 %v4681, %v4769
        %4771 = vdwg.mxu0
        %4772 = vmatpush.bf16.msra.mxu0 %v2315
        %4773 = vmatpush.bf16.msra.mxu0 %v2311
        %4774 = vmatpush.bf16.msra.mxu0 %v2307
        %4775 = vmatpush.bf16.msra.mxu0 %v2303
        %4776 = vmatpush.bf16.msra.mxu0 %v2299
        %4777 = vmatpush.bf16.msra.mxu0 %v2295
        %4778 = vmatpush.bf16.msra.mxu0 %v2291
        %4779 = vmatpush.bf16.msra.mxu0 %v2287
        %4780 = vmatmul.bf16.gmra.mxu0 %v1295
        %v4781 = vpop.f32.mrf.mxu0
        %v4782 = vadd.f32 %v4693, %v4781
        %v4783 = vpop.f32.mrf.mxu0
        %v4784 = vadd.f32 %v4695, %v4783
        %4785 = vmatmul.bf16.gmra.mxu0 %v1302
        %v4786 = vpop.f32.mrf.mxu0
        %v4787 = vadd.f32 %v4698, %v4786
        %v4788 = vpop.f32.mrf.mxu0
        %v4789 = vadd.f32 %v4700, %v4788
        %4790 = vmatmul.bf16.gmra.mxu0 %v1309
        %v4791 = vpop.f32.mrf.mxu0
        %v4792 = vadd.f32 %v4703, %v4791
        %v4793 = vpop.f32.mrf.mxu0
        %v4794 = vadd.f32 %v4705, %v4793
        %4795 = vmatmul.bf16.gmra.mxu0 %v1316
        %v4796 = vpop.f32.mrf.mxu0
        %v4797 = vadd.f32 %v4708, %v4796
        %v4798 = vpop.f32.mrf.mxu0
        %v4799 = vadd.f32 %v4710, %v4798
        %4800 = vmatmul.bf16.gmra.mxu0 %v1323
        %v4801 = vpop.f32.mrf.mxu0
        %v4802 = vadd.f32 %v4713, %v4801
        %v4803 = vpop.f32.mrf.mxu0
        %v4804 = vadd.f32 %v4715, %v4803
        %4805 = vmatmul.bf16.gmra.mxu0 %v1330
        %v4806 = vpop.f32.mrf.mxu0
        %v4807 = vadd.f32 %v4718, %v4806
        %v4808 = vpop.f32.mrf.mxu0
        %v4809 = vadd.f32 %v4720, %v4808
        %4810 = vmatmul.bf16.gmra.mxu0 %v1337
        %v4811 = vpop.f32.mrf.mxu0
        %v4812 = vadd.f32 %v4723, %v4811
        %v4813 = vpop.f32.mrf.mxu0
        %v4814 = vadd.f32 %v4725, %v4813
        %4815 = vmatmul.bf16.gmra.mxu0 %v1344
        %v4816 = vpop.f32.mrf.mxu0
        %v4817 = vadd.f32 %v4728, %v4816
        %v4818 = vpop.f32.mrf.mxu0
        %v4819 = vadd.f32 %v4730, %v4818
        %4820 = vmatmul.bf16.gmra.mxu0 %v1351
        %v4821 = vpop.f32.mrf.mxu0
        %v4822 = vadd.f32 %v4733, %v4821
        %v4823 = vpop.f32.mrf.mxu0
        %v4824 = vadd.f32 %v4735, %v4823
        %4825 = vmatmul.bf16.gmra.mxu0 %v1358
        %v4826 = vpop.f32.mrf.mxu0
        %v4827 = vadd.f32 %v4738, %v4826
        %v4828 = vpop.f32.mrf.mxu0
        %v4829 = vadd.f32 %v4740, %v4828
        %4830 = vmatmul.bf16.gmra.mxu0 %v1365
        %v4831 = vpop.f32.mrf.mxu0
        %v4832 = vadd.f32 %v4743, %v4831
        %v4833 = vpop.f32.mrf.mxu0
        %v4834 = vadd.f32 %v4745, %v4833
        %4835 = vmatmul.bf16.gmra.mxu0 %v1372
        %v4836 = vpop.f32.mrf.mxu0
        %v4837 = vadd.f32 %v4748, %v4836
        %v4838 = vpop.f32.mrf.mxu0
        %v4839 = vadd.f32 %v4750, %v4838
        %4840 = vmatmul.bf16.gmra.mxu0 %v1379
        %v4841 = vpop.f32.mrf.mxu0
        %v4842 = vadd.f32 %v4753, %v4841
        %v4843 = vpop.f32.mrf.mxu0
        %v4844 = vadd.f32 %v4755, %v4843
        %4845 = vmatmul.bf16.gmra.mxu0 %v1386
        %v4846 = vpop.f32.mrf.mxu0
        %v4847 = vadd.f32 %v4758, %v4846
        %v4848 = vpop.f32.mrf.mxu0
        %v4849 = vadd.f32 %v4760, %v4848
        %4850 = vmatmul.bf16.gmra.mxu0 %v1393
        %v4851 = vpop.f32.mrf.mxu0
        %v4852 = vadd.f32 %v4763, %v4851
        %v4853 = vpop.f32.mrf.mxu0
        %v4854 = vadd.f32 %v4765, %v4853
        %4855 = vmatmul.bf16.gmra.mxu0 %v1400
        %v4856 = vpop.f32.mrf.mxu0
        %v4857 = vadd.f32 %v4768, %v4856
        %v4858 = vpop.f32.mrf.mxu0
        %v4859 = vadd.f32 %v4770, %v4858
        %4860 = vdwg.mxu0
        %4861 = vmatpush.bf16.msra.mxu0 %v2347
        %4862 = vmatpush.bf16.msra.mxu0 %v2343
        %4863 = vmatpush.bf16.msra.mxu0 %v2339
        %4864 = vmatpush.bf16.msra.mxu0 %v2335
        %4865 = vmatpush.bf16.msra.mxu0 %v2331
        %4866 = vmatpush.bf16.msra.mxu0 %v2327
        %4867 = vmatpush.bf16.msra.mxu0 %v2323
        %4868 = vmatpush.bf16.msra.mxu0 %v2319
        %4869 = vmatmul.bf16.gmra.mxu0 %v1296
        %v4870 = vpop.f32.mrf.mxu0
        %v4871 = vadd.f32 %v4782, %v4870
        %v4872 = vpop.f32.mrf.mxu0
        %v4873 = vadd.f32 %v4784, %v4872
        %4874 = vmatmul.bf16.gmra.mxu0 %v1303
        %v4875 = vpop.f32.mrf.mxu0
        %v4876 = vadd.f32 %v4787, %v4875
        %v4877 = vpop.f32.mrf.mxu0
        %v4878 = vadd.f32 %v4789, %v4877
        %4879 = vmatmul.bf16.gmra.mxu0 %v1310
        %v4880 = vpop.f32.mrf.mxu0
        %v4881 = vadd.f32 %v4792, %v4880
        %v4882 = vpop.f32.mrf.mxu0
        %v4883 = vadd.f32 %v4794, %v4882
        %4884 = vmatmul.bf16.gmra.mxu0 %v1317
        %v4885 = vpop.f32.mrf.mxu0
        %v4886 = vadd.f32 %v4797, %v4885
        %v4887 = vpop.f32.mrf.mxu0
        %v4888 = vadd.f32 %v4799, %v4887
        %4889 = vmatmul.bf16.gmra.mxu0 %v1324
        %v4890 = vpop.f32.mrf.mxu0
        %v4891 = vadd.f32 %v4802, %v4890
        %v4892 = vpop.f32.mrf.mxu0
        %v4893 = vadd.f32 %v4804, %v4892
        %4894 = vmatmul.bf16.gmra.mxu0 %v1331
        %v4895 = vpop.f32.mrf.mxu0
        %v4896 = vadd.f32 %v4807, %v4895
        %v4897 = vpop.f32.mrf.mxu0
        %v4898 = vadd.f32 %v4809, %v4897
        %4899 = vmatmul.bf16.gmra.mxu0 %v1338
        %v4900 = vpop.f32.mrf.mxu0
        %v4901 = vadd.f32 %v4812, %v4900
        %v4902 = vpop.f32.mrf.mxu0
        %v4903 = vadd.f32 %v4814, %v4902
        %4904 = vmatmul.bf16.gmra.mxu0 %v1345
        %v4905 = vpop.f32.mrf.mxu0
        %v4906 = vadd.f32 %v4817, %v4905
        %v4907 = vpop.f32.mrf.mxu0
        %v4908 = vadd.f32 %v4819, %v4907
        %4909 = vmatmul.bf16.gmra.mxu0 %v1352
        %v4910 = vpop.f32.mrf.mxu0
        %v4911 = vadd.f32 %v4822, %v4910
        %v4912 = vpop.f32.mrf.mxu0
        %v4913 = vadd.f32 %v4824, %v4912
        %4914 = vmatmul.bf16.gmra.mxu0 %v1359
        %v4915 = vpop.f32.mrf.mxu0
        %v4916 = vadd.f32 %v4827, %v4915
        %v4917 = vpop.f32.mrf.mxu0
        %v4918 = vadd.f32 %v4829, %v4917
        %4919 = vmatmul.bf16.gmra.mxu0 %v1366
        %v4920 = vpop.f32.mrf.mxu0
        %v4921 = vadd.f32 %v4832, %v4920
        %v4922 = vpop.f32.mrf.mxu0
        %v4923 = vadd.f32 %v4834, %v4922
        %4924 = vmatmul.bf16.gmra.mxu0 %v1373
        %v4925 = vpop.f32.mrf.mxu0
        %v4926 = vadd.f32 %v4837, %v4925
        %v4927 = vpop.f32.mrf.mxu0
        %v4928 = vadd.f32 %v4839, %v4927
        %4929 = vmatmul.bf16.gmra.mxu0 %v1380
        %v4930 = vpop.f32.mrf.mxu0
        %v4931 = vadd.f32 %v4842, %v4930
        %v4932 = vpop.f32.mrf.mxu0
        %v4933 = vadd.f32 %v4844, %v4932
        %4934 = vmatmul.bf16.gmra.mxu0 %v1387
        %v4935 = vpop.f32.mrf.mxu0
        %v4936 = vadd.f32 %v4847, %v4935
        %v4937 = vpop.f32.mrf.mxu0
        %v4938 = vadd.f32 %v4849, %v4937
        %4939 = vmatmul.bf16.gmra.mxu0 %v1394
        %v4940 = vpop.f32.mrf.mxu0
        %v4941 = vadd.f32 %v4852, %v4940
        %v4942 = vpop.f32.mrf.mxu0
        %v4943 = vadd.f32 %v4854, %v4942
        %4944 = vmatmul.bf16.gmra.mxu0 %v1401
        %v4945 = vpop.f32.mrf.mxu0
        %v4946 = vadd.f32 %v4857, %v4945
        %v4947 = vpop.f32.mrf.mxu0
        %v4948 = vadd.f32 %v4859, %v4947
        %4949 = vdwg.mxu0
        %4950 = vmatpush.bf16.msra.mxu0 %v2379
        %4951 = vmatpush.bf16.msra.mxu0 %v2375
        %4952 = vmatpush.bf16.msra.mxu0 %v2371
        %4953 = vmatpush.bf16.msra.mxu0 %v2367
        %4954 = vmatpush.bf16.msra.mxu0 %v2363
        %4955 = vmatpush.bf16.msra.mxu0 %v2359
        %4956 = vmatpush.bf16.msra.mxu0 %v2355
        %4957 = vmatpush.bf16.msra.mxu0 %v2351
        %4958 = vmatmul.bf16.gmra.mxu0 %v1297
        %v4959 = vpop.f32.mrf.mxu0
        %v4960 = vadd.f32 %v4871, %v4959
        %v4961 = vpop.f32.mrf.mxu0
        %v4962 = vadd.f32 %v4873, %v4961
        %4963 = vmatmul.bf16.gmra.mxu0 %v1304
        %v4964 = vpop.f32.mrf.mxu0
        %v4965 = vadd.f32 %v4876, %v4964
        %v4966 = vpop.f32.mrf.mxu0
        %v4967 = vadd.f32 %v4878, %v4966
        %4968 = vmatmul.bf16.gmra.mxu0 %v1311
        %v4969 = vpop.f32.mrf.mxu0
        %v4970 = vadd.f32 %v4881, %v4969
        %v4971 = vpop.f32.mrf.mxu0
        %v4972 = vadd.f32 %v4883, %v4971
        %4973 = vmatmul.bf16.gmra.mxu0 %v1318
        %v4974 = vpop.f32.mrf.mxu0
        %v4975 = vadd.f32 %v4886, %v4974
        %v4976 = vpop.f32.mrf.mxu0
        %v4977 = vadd.f32 %v4888, %v4976
        %4978 = vmatmul.bf16.gmra.mxu0 %v1325
        %v4979 = vpop.f32.mrf.mxu0
        %v4980 = vadd.f32 %v4891, %v4979
        %v4981 = vpop.f32.mrf.mxu0
        %v4982 = vadd.f32 %v4893, %v4981
        %4983 = vmatmul.bf16.gmra.mxu0 %v1332
        %v4984 = vpop.f32.mrf.mxu0
        %v4985 = vadd.f32 %v4896, %v4984
        %v4986 = vpop.f32.mrf.mxu0
        %v4987 = vadd.f32 %v4898, %v4986
        %4988 = vmatmul.bf16.gmra.mxu0 %v1339
        %v4989 = vpop.f32.mrf.mxu0
        %v4990 = vadd.f32 %v4901, %v4989
        %v4991 = vpop.f32.mrf.mxu0
        %v4992 = vadd.f32 %v4903, %v4991
        %4993 = vmatmul.bf16.gmra.mxu0 %v1346
        %v4994 = vpop.f32.mrf.mxu0
        %v4995 = vadd.f32 %v4906, %v4994
        %v4996 = vpop.f32.mrf.mxu0
        %v4997 = vadd.f32 %v4908, %v4996
        %4998 = vmatmul.bf16.gmra.mxu0 %v1353
        %v4999 = vpop.f32.mrf.mxu0
        %v5000 = vadd.f32 %v4911, %v4999
        %v5001 = vpop.f32.mrf.mxu0
        %v5002 = vadd.f32 %v4913, %v5001
        %5003 = vmatmul.bf16.gmra.mxu0 %v1360
        %v5004 = vpop.f32.mrf.mxu0
        %v5005 = vadd.f32 %v4916, %v5004
        %v5006 = vpop.f32.mrf.mxu0
        %v5007 = vadd.f32 %v4918, %v5006
        %5008 = vmatmul.bf16.gmra.mxu0 %v1367
        %v5009 = vpop.f32.mrf.mxu0
        %v5010 = vadd.f32 %v4921, %v5009
        %v5011 = vpop.f32.mrf.mxu0
        %v5012 = vadd.f32 %v4923, %v5011
        %5013 = vmatmul.bf16.gmra.mxu0 %v1374
        %v5014 = vpop.f32.mrf.mxu0
        %v5015 = vadd.f32 %v4926, %v5014
        %v5016 = vpop.f32.mrf.mxu0
        %v5017 = vadd.f32 %v4928, %v5016
        %5018 = vmatmul.bf16.gmra.mxu0 %v1381
        %v5019 = vpop.f32.mrf.mxu0
        %v5020 = vadd.f32 %v4931, %v5019
        %v5021 = vpop.f32.mrf.mxu0
        %v5022 = vadd.f32 %v4933, %v5021
        %5023 = vmatmul.bf16.gmra.mxu0 %v1388
        %v5024 = vpop.f32.mrf.mxu0
        %v5025 = vadd.f32 %v4936, %v5024
        %v5026 = vpop.f32.mrf.mxu0
        %v5027 = vadd.f32 %v4938, %v5026
        %5028 = vmatmul.bf16.gmra.mxu0 %v1395
        %v5029 = vpop.f32.mrf.mxu0
        %v5030 = vadd.f32 %v4941, %v5029
        %v5031 = vpop.f32.mrf.mxu0
        %v5032 = vadd.f32 %v4943, %v5031
        %5033 = vmatmul.bf16.gmra.mxu0 %v1402
        %v5034 = vpop.f32.mrf.mxu0
        %v5035 = vadd.f32 %v4946, %v5034
        %v5036 = vpop.f32.mrf.mxu0
        %v5037 = vadd.f32 %v4948, %v5036
        %5038 = vdwg.mxu0
        %5039 = vmatpush.bf16.msra.mxu0 %v2411
        %5040 = vmatpush.bf16.msra.mxu0 %v2407
        %5041 = vmatpush.bf16.msra.mxu0 %v2403
        %5042 = vmatpush.bf16.msra.mxu0 %v2399
        %5043 = vmatpush.bf16.msra.mxu0 %v2395
        %5044 = vmatpush.bf16.msra.mxu0 %v2391
        %5045 = vmatpush.bf16.msra.mxu0 %v2387
        %5046 = vmatpush.bf16.msra.mxu0 %v2383
        %5047 = vmatmul.bf16.gmra.mxu0 %v1298
        %v5048 = vpop.f32.mrf.mxu0
        %v5049 = vadd.f32 %v4960, %v5048
        %v5050 = vpop.f32.mrf.mxu0
        %v5051 = vadd.f32 %v4962, %v5050
        %5052 = vmatmul.bf16.gmra.mxu0 %v1305
        %v5053 = vpop.f32.mrf.mxu0
        %v5054 = vadd.f32 %v4965, %v5053
        %v5055 = vpop.f32.mrf.mxu0
        %v5056 = vadd.f32 %v4967, %v5055
        %5057 = vmatmul.bf16.gmra.mxu0 %v1312
        %v5058 = vpop.f32.mrf.mxu0
        %v5059 = vadd.f32 %v4970, %v5058
        %v5060 = vpop.f32.mrf.mxu0
        %v5061 = vadd.f32 %v4972, %v5060
        %5062 = vmatmul.bf16.gmra.mxu0 %v1319
        %v5063 = vpop.f32.mrf.mxu0
        %v5064 = vadd.f32 %v4975, %v5063
        %v5065 = vpop.f32.mrf.mxu0
        %v5066 = vadd.f32 %v4977, %v5065
        %5067 = vmatmul.bf16.gmra.mxu0 %v1326
        %v5068 = vpop.f32.mrf.mxu0
        %v5069 = vadd.f32 %v4980, %v5068
        %v5070 = vpop.f32.mrf.mxu0
        %v5071 = vadd.f32 %v4982, %v5070
        %5072 = vmatmul.bf16.gmra.mxu0 %v1333
        %v5073 = vpop.f32.mrf.mxu0
        %v5074 = vadd.f32 %v4985, %v5073
        %v5075 = vpop.f32.mrf.mxu0
        %v5076 = vadd.f32 %v4987, %v5075
        %5077 = vmatmul.bf16.gmra.mxu0 %v1340
        %v5078 = vpop.f32.mrf.mxu0
        %v5079 = vadd.f32 %v4990, %v5078
        %v5080 = vpop.f32.mrf.mxu0
        %v5081 = vadd.f32 %v4992, %v5080
        %5082 = vmatmul.bf16.gmra.mxu0 %v1347
        %v5083 = vpop.f32.mrf.mxu0
        %v5084 = vadd.f32 %v4995, %v5083
        %v5085 = vpop.f32.mrf.mxu0
        %v5086 = vadd.f32 %v4997, %v5085
        %5087 = vmatmul.bf16.gmra.mxu0 %v1354
        %v5088 = vpop.f32.mrf.mxu0
        %v5089 = vadd.f32 %v5000, %v5088
        %v5090 = vpop.f32.mrf.mxu0
        %v5091 = vadd.f32 %v5002, %v5090
        %5092 = vmatmul.bf16.gmra.mxu0 %v1361
        %v5093 = vpop.f32.mrf.mxu0
        %v5094 = vadd.f32 %v5005, %v5093
        %v5095 = vpop.f32.mrf.mxu0
        %v5096 = vadd.f32 %v5007, %v5095
        %5097 = vmatmul.bf16.gmra.mxu0 %v1368
        %v5098 = vpop.f32.mrf.mxu0
        %v5099 = vadd.f32 %v5010, %v5098
        %v5100 = vpop.f32.mrf.mxu0
        %v5101 = vadd.f32 %v5012, %v5100
        %5102 = vmatmul.bf16.gmra.mxu0 %v1375
        %v5103 = vpop.f32.mrf.mxu0
        %v5104 = vadd.f32 %v5015, %v5103
        %v5105 = vpop.f32.mrf.mxu0
        %v5106 = vadd.f32 %v5017, %v5105
        %5107 = vmatmul.bf16.gmra.mxu0 %v1382
        %v5108 = vpop.f32.mrf.mxu0
        %v5109 = vadd.f32 %v5020, %v5108
        %v5110 = vpop.f32.mrf.mxu0
        %v5111 = vadd.f32 %v5022, %v5110
        %5112 = vmatmul.bf16.gmra.mxu0 %v1389
        %v5113 = vpop.f32.mrf.mxu0
        %v5114 = vadd.f32 %v5025, %v5113
        %v5115 = vpop.f32.mrf.mxu0
        %v5116 = vadd.f32 %v5027, %v5115
        %5117 = vmatmul.bf16.gmra.mxu0 %v1396
        %v5118 = vpop.f32.mrf.mxu0
        %v5119 = vadd.f32 %v5030, %v5118
        %v5120 = vpop.f32.mrf.mxu0
        %v5121 = vadd.f32 %v5032, %v5120
        %5122 = vmatmul.bf16.gmra.mxu0 %v1403
        %v5123 = vpop.f32.mrf.mxu0
        %v5124 = vadd.f32 %v5035, %v5123
        %v5125 = vpop.f32.mrf.mxu0
        %v5126 = vadd.f32 %v5037, %v5125
        %5127 = vdwg.mxu0
        %v5128 = vmax.f32 %v3180, 0.0
        %v5129 = vmax.f32 %v3803, 0.0
        %v5130 = vmax.f32 %v4426, 0.0
        %v5131 = vmax.f32 %v5049, 0.0
        %v5132 = vmax.f32 %v3182, 0.0
        %v5133 = vmax.f32 %v3805, 0.0
        %v5134 = vmax.f32 %v4428, 0.0
        %v5135 = vmax.f32 %v5051, 0.0
        %v5136 = vmax.f32 %v3185, 0.0
        %v5137 = vmax.f32 %v3808, 0.0
        %v5138 = vmax.f32 %v4431, 0.0
        %v5139 = vmax.f32 %v5054, 0.0
        %v5140 = vmax.f32 %v3187, 0.0
        %v5141 = vmax.f32 %v3810, 0.0
        %v5142 = vmax.f32 %v4433, 0.0
        %v5143 = vmax.f32 %v5056, 0.0
        %v5144 = vmax.f32 %v3190, 0.0
        %v5145 = vmax.f32 %v3813, 0.0
        %v5146 = vmax.f32 %v4436, 0.0
        %v5147 = vmax.f32 %v5059, 0.0
        %v5148 = vmax.f32 %v3192, 0.0
        %v5149 = vmax.f32 %v3815, 0.0
        %v5150 = vmax.f32 %v4438, 0.0
        %v5151 = vmax.f32 %v5061, 0.0
        %v5152 = vmax.f32 %v3195, 0.0
        %v5153 = vmax.f32 %v3818, 0.0
        %v5154 = vmax.f32 %v4441, 0.0
        %v5155 = vmax.f32 %v5064, 0.0
        %v5156 = vmax.f32 %v3197, 0.0
        %v5157 = vmax.f32 %v3820, 0.0
        %v5158 = vmax.f32 %v4443, 0.0
        %v5159 = vmax.f32 %v5066, 0.0
        %v5160 = vmax.f32 %v3200, 0.0
        %v5161 = vmax.f32 %v3823, 0.0
        %v5162 = vmax.f32 %v4446, 0.0
        %v5163 = vmax.f32 %v5069, 0.0
        %v5164 = vmax.f32 %v3202, 0.0
        %v5165 = vmax.f32 %v3825, 0.0
        %v5166 = vmax.f32 %v4448, 0.0
        %v5167 = vmax.f32 %v5071, 0.0
        %v5168 = vmax.f32 %v3205, 0.0
        %v5169 = vmax.f32 %v3828, 0.0
        %v5170 = vmax.f32 %v4451, 0.0
        %v5171 = vmax.f32 %v5074, 0.0
        %v5172 = vmax.f32 %v3207, 0.0
        %v5173 = vmax.f32 %v3830, 0.0
        %v5174 = vmax.f32 %v4453, 0.0
        %v5175 = vmax.f32 %v5076, 0.0
        %v5176 = vmax.f32 %v3210, 0.0
        %v5177 = vmax.f32 %v3833, 0.0
        %v5178 = vmax.f32 %v4456, 0.0
        %v5179 = vmax.f32 %v5079, 0.0
        %v5180 = vmax.f32 %v3212, 0.0
        %v5181 = vmax.f32 %v3835, 0.0
        %v5182 = vmax.f32 %v4458, 0.0
        %v5183 = vmax.f32 %v5081, 0.0
        %v5184 = vmax.f32 %v3215, 0.0
        %v5185 = vmax.f32 %v3838, 0.0
        %v5186 = vmax.f32 %v4461, 0.0
        %v5187 = vmax.f32 %v5084, 0.0
        %v5188 = vmax.f32 %v3217, 0.0
        %v5189 = vmax.f32 %v3840, 0.0
        %v5190 = vmax.f32 %v4463, 0.0
        %v5191 = vmax.f32 %v5086, 0.0
        %v5192 = vmax.f32 %v3220, 0.0
        %v5193 = vmax.f32 %v3843, 0.0
        %v5194 = vmax.f32 %v4466, 0.0
        %v5195 = vmax.f32 %v5089, 0.0
        %v5196 = vmax.f32 %v3222, 0.0
        %v5197 = vmax.f32 %v3845, 0.0
        %v5198 = vmax.f32 %v4468, 0.0
        %v5199 = vmax.f32 %v5091, 0.0
        %v5200 = vmax.f32 %v3225, 0.0
        %v5201 = vmax.f32 %v3848, 0.0
        %v5202 = vmax.f32 %v4471, 0.0
        %v5203 = vmax.f32 %v5094, 0.0
        %v5204 = vmax.f32 %v3227, 0.0
        %v5205 = vmax.f32 %v3850, 0.0
        %v5206 = vmax.f32 %v4473, 0.0
        %v5207 = vmax.f32 %v5096, 0.0
        %v5208 = vmax.f32 %v3230, 0.0
        %v5209 = vmax.f32 %v3853, 0.0
        %v5210 = vmax.f32 %v4476, 0.0
        %v5211 = vmax.f32 %v5099, 0.0
        %v5212 = vmax.f32 %v3232, 0.0
        %v5213 = vmax.f32 %v3855, 0.0
        %v5214 = vmax.f32 %v4478, 0.0
        %v5215 = vmax.f32 %v5101, 0.0
        %v5216 = vmax.f32 %v3235, 0.0
        %v5217 = vmax.f32 %v3858, 0.0
        %v5218 = vmax.f32 %v4481, 0.0
        %v5219 = vmax.f32 %v5104, 0.0
        %v5220 = vmax.f32 %v3237, 0.0
        %v5221 = vmax.f32 %v3860, 0.0
        %v5222 = vmax.f32 %v4483, 0.0
        %v5223 = vmax.f32 %v5106, 0.0
        %v5224 = vmax.f32 %v3240, 0.0
        %v5225 = vmax.f32 %v3863, 0.0
        %v5226 = vmax.f32 %v4486, 0.0
        %v5227 = vmax.f32 %v5109, 0.0
        %v5228 = vmax.f32 %v3242, 0.0
        %v5229 = vmax.f32 %v3865, 0.0
        %v5230 = vmax.f32 %v4488, 0.0
        %v5231 = vmax.f32 %v5111, 0.0
        %v5232 = vmax.f32 %v3245, 0.0
        %v5233 = vmax.f32 %v3868, 0.0
        %v5234 = vmax.f32 %v4491, 0.0
        %v5235 = vmax.f32 %v5114, 0.0
        %v5236 = vmax.f32 %v3247, 0.0
        %v5237 = vmax.f32 %v3870, 0.0
        %v5238 = vmax.f32 %v4493, 0.0
        %v5239 = vmax.f32 %v5116, 0.0
        %v5240 = vmax.f32 %v3250, 0.0
        %v5241 = vmax.f32 %v3873, 0.0
        %v5242 = vmax.f32 %v4496, 0.0
        %v5243 = vmax.f32 %v5119, 0.0
        %v5244 = vmax.f32 %v3252, 0.0
        %v5245 = vmax.f32 %v3875, 0.0
        %v5246 = vmax.f32 %v4498, 0.0
        %v5247 = vmax.f32 %v5121, 0.0
        %v5248 = vmax.f32 %v3255, 0.0
        %v5249 = vmax.f32 %v3878, 0.0
        %v5250 = vmax.f32 %v4501, 0.0
        %v5251 = vmax.f32 %v5124, 0.0
        %v5252 = vmax.f32 %v3257, 0.0
        %v5253 = vmax.f32 %v3880, 0.0
        %v5254 = vmax.f32 %v4503, 0.0
        %v5255 = vmax.f32 %v5126, 0.0
        %v5256 = vpack.c.bf16 %v5132, %v5128
        %v5257 = vpack.c.bf16 %v5133, %v5129
        %v5258 = vpack.c.bf16 %v5134, %v5130
        %v5259 = vpack.c.bf16 %v5135, %v5131
        %v5260 = vpack.c.bf16 %v5140, %v5136
        %v5261 = vpack.c.bf16 %v5141, %v5137
        %v5262 = vpack.c.bf16 %v5142, %v5138
        %v5263 = vpack.c.bf16 %v5143, %v5139
        %v5264 = vpack.c.bf16 %v5148, %v5144
        %v5265 = vpack.c.bf16 %v5149, %v5145
        %v5266 = vpack.c.bf16 %v5150, %v5146
        %v5267 = vpack.c.bf16 %v5151, %v5147
        %v5268 = vpack.c.bf16 %v5156, %v5152
        %v5269 = vpack.c.bf16 %v5157, %v5153
        %v5270 = vpack.c.bf16 %v5158, %v5154
        %v5271 = vpack.c.bf16 %v5159, %v5155
        %v5272 = vpack.c.bf16 %v5164, %v5160
        %v5273 = vpack.c.bf16 %v5165, %v5161
        %v5274 = vpack.c.bf16 %v5166, %v5162
        %v5275 = vpack.c.bf16 %v5167, %v5163
        %v5276 = vpack.c.bf16 %v5172, %v5168
        %v5277 = vpack.c.bf16 %v5173, %v5169
        %v5278 = vpack.c.bf16 %v5174, %v5170
        %v5279 = vpack.c.bf16 %v5175, %v5171
        %v5280 = vpack.c.bf16 %v5180, %v5176
        %v5281 = vpack.c.bf16 %v5181, %v5177
        %v5282 = vpack.c.bf16 %v5182, %v5178
        %v5283 = vpack.c.bf16 %v5183, %v5179
        %v5284 = vpack.c.bf16 %v5188, %v5184
        %v5285 = vpack.c.bf16 %v5189, %v5185
        %v5286 = vpack.c.bf16 %v5190, %v5186
        %v5287 = vpack.c.bf16 %v5191, %v5187
        %v5288 = vpack.c.bf16 %v5196, %v5192
        %v5289 = vpack.c.bf16 %v5197, %v5193
        %v5290 = vpack.c.bf16 %v5198, %v5194
        %v5291 = vpack.c.bf16 %v5199, %v5195
        %v5292 = vpack.c.bf16 %v5204, %v5200
        %v5293 = vpack.c.bf16 %v5205, %v5201
        %v5294 = vpack.c.bf16 %v5206, %v5202
        %v5295 = vpack.c.bf16 %v5207, %v5203
        %v5296 = vpack.c.bf16 %v5212, %v5208
        %v5297 = vpack.c.bf16 %v5213, %v5209
        %v5298 = vpack.c.bf16 %v5214, %v5210
        %v5299 = vpack.c.bf16 %v5215, %v5211
        %v5300 = vpack.c.bf16 %v5220, %v5216
        %v5301 = vpack.c.bf16 %v5221, %v5217
        %v5302 = vpack.c.bf16 %v5222, %v5218
        %v5303 = vpack.c.bf16 %v5223, %v5219
        %v5304 = vpack.c.bf16 %v5228, %v5224
        %v5305 = vpack.c.bf16 %v5229, %v5225
        %v5306 = vpack.c.bf16 %v5230, %v5226
        %v5307 = vpack.c.bf16 %v5231, %v5227
        %v5308 = vpack.c.bf16 %v5236, %v5232
        %v5309 = vpack.c.bf16 %v5237, %v5233
        %v5310 = vpack.c.bf16 %v5238, %v5234
        %v5311 = vpack.c.bf16 %v5239, %v5235
        %v5312 = vpack.c.bf16 %v5244, %v5240
        %v5313 = vpack.c.bf16 %v5245, %v5241
        %v5314 = vpack.c.bf16 %v5246, %v5242
        %v5315 = vpack.c.bf16 %v5247, %v5243
        %v5316 = vpack.c.bf16 %v5252, %v5248
        %v5317 = vpack.c.bf16 %v5253, %v5249
        %v5318 = vpack.c.bf16 %v5254, %v5250
        %v5319 = vpack.c.bf16 %v5255, %v5251
        %v5320 = vld [vmem:[#allocation8] sm:$0xf]
        %v5321 = vld [vmem:[#allocation8 + $0x4] sm:$0xf]
        %v5322 = vld [vmem:[#allocation8 + $0x8] sm:$0xf]
        %v5323 = vld [vmem:[#allocation8 + $0xc] sm:$0xf]
        %v5324 = vld [vmem:[#allocation8 + $0x10] sm:$0xf]
        %v5325 = vld [vmem:[#allocation8 + $0x14] sm:$0xf]
        %v5326 = vld [vmem:[#allocation8 + $0x18] sm:$0xf]
        %v5327 = vld [vmem:[#allocation8 + $0x1c] sm:$0xf]
        %v5328 = vld [vmem:[#allocation8 + $0x20] sm:$0xf]
        %v5329 = vld [vmem:[#allocation8 + $0x24] sm:$0xf]
        %v5330 = vld [vmem:[#allocation8 + $0x28] sm:$0xf]
        %v5331 = vld [vmem:[#allocation8 + $0x2c] sm:$0xf]
        %v5332 = vld [vmem:[#allocation8 + $0x30] sm:$0xf]
        %v5333 = vld [vmem:[#allocation8 + $0x34] sm:$0xf]
        %v5334 = vld [vmem:[#allocation8 + $0x38] sm:$0xf]
        %v5335 = vld [vmem:[#allocation8 + $0x3c] sm:$0xf]
        %v5336 = vld [vmem:[#allocation8 + $0x40] sm:$0xf]
        %v5337 = vld [vmem:[#allocation8 + $0x44] sm:$0xf]
        %v5338 = vld [vmem:[#allocation8 + $0x48] sm:$0xf]
        %v5339 = vld [vmem:[#allocation8 + $0x4c] sm:$0xf]
        %v5340 = vld [vmem:[#allocation8 + $0x50] sm:$0xf]
        %v5341 = vld [vmem:[#allocation8 + $0x54] sm:$0xf]
        %v5342 = vld [vmem:[#allocation8 + $0x58] sm:$0xf]
        %v5343 = vld [vmem:[#allocation8 + $0x5c] sm:$0xf]
        %v5344 = vld [vmem:[#allocation8 + $0x60] sm:$0xf]
        %v5345 = vld [vmem:[#allocation8 + $0x64] sm:$0xf]
        %v5346 = vld [vmem:[#allocation8 + $0x68] sm:$0xf]
        %v5347 = vld [vmem:[#allocation8 + $0x6c] sm:$0xf]
        %v5348 = vld [vmem:[#allocation8 + $0x70] sm:$0xf]
        %v5349 = vld [vmem:[#allocation8 + $0x74] sm:$0xf]
        %v5350 = vld [vmem:[#allocation8 + $0x78] sm:$0xf]
        %v5351 = vld [vmem:[#allocation8 + $0x7c] sm:$0xf]
        %v5352 = vld [vmem:[#allocation8 + $0x80] sm:$0xf]
        %v5353 = vld [vmem:[#allocation8 + $0x84] sm:$0xf]
        %v5354 = vld [vmem:[#allocation8 + $0x88] sm:$0xf]
        %v5355 = vld [vmem:[#allocation8 + $0x8c] sm:$0xf]
        %v5356 = vld [vmem:[#allocation8 + $0x90] sm:$0xf]
        %v5357 = vld [vmem:[#allocation8 + $0x94] sm:$0xf]
        %v5358 = vld [vmem:[#allocation8 + $0x98] sm:$0xf]
        %v5359 = vld [vmem:[#allocation8 + $0x9c] sm:$0xf]
        %v5360 = vld [vmem:[#allocation8 + $0xa0] sm:$0xf]
        %v5361 = vld [vmem:[#allocation8 + $0xa4] sm:$0xf]
        %v5362 = vld [vmem:[#allocation8 + $0xa8] sm:$0xf]
        %v5363 = vld [vmem:[#allocation8 + $0xac] sm:$0xf]
        %v5364 = vld [vmem:[#allocation8 + $0xb0] sm:$0xf]
        %v5365 = vld [vmem:[#allocation8 + $0xb4] sm:$0xf]
        %v5366 = vld [vmem:[#allocation8 + $0xb8] sm:$0xf]
        %v5367 = vld [vmem:[#allocation8 + $0xbc] sm:$0xf]
        %v5368 = vld [vmem:[#allocation8 + $0xc0] sm:$0xf]
        %v5369 = vld [vmem:[#allocation8 + $0xc4] sm:$0xf]
        %v5370 = vld [vmem:[#allocation8 + $0xc8] sm:$0xf]
        %v5371 = vld [vmem:[#allocation8 + $0xcc] sm:$0xf]
        %v5372 = vld [vmem:[#allocation8 + $0xd0] sm:$0xf]
        %v5373 = vld [vmem:[#allocation8 + $0xd4] sm:$0xf]
        %v5374 = vld [vmem:[#allocation8 + $0xd8] sm:$0xf]
        %v5375 = vld [vmem:[#allocation8 + $0xdc] sm:$0xf]
        %v5376 = vld [vmem:[#allocation8 + $0xe0] sm:$0xf]
        %v5377 = vld [vmem:[#allocation8 + $0xe4] sm:$0xf]
        %v5378 = vld [vmem:[#allocation8 + $0xe8] sm:$0xf]
        %v5379 = vld [vmem:[#allocation8 + $0xec] sm:$0xf]
        %v5380 = vld [vmem:[#allocation8 + $0xf0] sm:$0xf]
        %v5381 = vld [vmem:[#allocation8 + $0xf4] sm:$0xf]
        %v5382 = vld [vmem:[#allocation8 + $0xf8] sm:$0xf]
        %v5383 = vld [vmem:[#allocation8 + $0xfc] sm:$0xf]
        %v5384 = vld [vmem:[%s4] sm:$0x1]
        %v5386 = vperm.slane %v5384, 0
        %v5452 = vunpack.c.l.b16 %v5320
        %v5453 = vunpack.c.l.b16 %v5321
        %v5454 = vunpack.c.l.b16 %v5322
        %v5455 = vunpack.c.l.b16 %v5323
        %v5456 = vunpack.c.l.b16 %v5324
        %v5457 = vunpack.c.l.b16 %v5325
        %v5458 = vunpack.c.l.b16 %v5326
        %v5459 = vunpack.c.l.b16 %v5327
        %v5460 = vunpack.c.l.b16 %v5328
        %v5461 = vunpack.c.l.b16 %v5329
        %v5462 = vunpack.c.l.b16 %v5330
        %v5463 = vunpack.c.l.b16 %v5331
        %v5464 = vunpack.c.l.b16 %v5332
        %v5465 = vunpack.c.l.b16 %v5333
        %v5466 = vunpack.c.l.b16 %v5334
        %v5467 = vunpack.c.l.b16 %v5335
        %v5468 = vunpack.c.l.b16 %v5336
        %v5469 = vunpack.c.l.b16 %v5337
        %v5470 = vunpack.c.l.b16 %v5338
        %v5471 = vunpack.c.l.b16 %v5339
        %v5472 = vunpack.c.l.b16 %v5340
        %v5473 = vunpack.c.l.b16 %v5341
        %v5474 = vunpack.c.l.b16 %v5342
        %v5475 = vunpack.c.l.b16 %v5343
        %v5476 = vunpack.c.l.b16 %v5344
        %v5477 = vunpack.c.l.b16 %v5345
        %v5478 = vunpack.c.l.b16 %v5346
        %v5479 = vunpack.c.l.b16 %v5347
        %v5480 = vunpack.c.l.b16 %v5348
        %v5481 = vunpack.c.l.b16 %v5349
        %v5482 = vunpack.c.l.b16 %v5350
        %v5483 = vunpack.c.l.b16 %v5351
        %v5484 = vunpack.c.l.b16 %v5352
        %v5485 = vunpack.c.l.b16 %v5353
        %v5486 = vunpack.c.l.b16 %v5354
        %v5487 = vunpack.c.l.b16 %v5355
        %v5488 = vunpack.c.l.b16 %v5356
        %v5489 = vunpack.c.l.b16 %v5357
        %v5490 = vunpack.c.l.b16 %v5358
        %v5491 = vunpack.c.l.b16 %v5359
        %v5492 = vunpack.c.l.b16 %v5360
        %v5493 = vunpack.c.l.b16 %v5361
        %v5494 = vunpack.c.l.b16 %v5362
        %v5495 = vunpack.c.l.b16 %v5363
        %v5496 = vunpack.c.l.b16 %v5364
        %v5497 = vunpack.c.l.b16 %v5365
        %v5498 = vunpack.c.l.b16 %v5366
        %v5499 = vunpack.c.l.b16 %v5367
        %v5500 = vunpack.c.l.b16 %v5368
        %v5501 = vunpack.c.l.b16 %v5369
        %v5502 = vunpack.c.l.b16 %v5370
        %v5503 = vunpack.c.l.b16 %v5371
        %v5504 = vunpack.c.l.b16 %v5372
        %v5505 = vunpack.c.l.b16 %v5373
        %v5506 = vunpack.c.l.b16 %v5374
        %v5507 = vunpack.c.l.b16 %v5375
        %v5508 = vunpack.c.l.b16 %v5376
        %v5509 = vunpack.c.l.b16 %v5377
        %v5510 = vunpack.c.l.b16 %v5378
        %v5511 = vunpack.c.l.b16 %v5379
        %v5512 = vunpack.c.l.b16 %v5380
        %v5513 = vunpack.c.l.b16 %v5381
        %v5514 = vunpack.c.l.b16 %v5382
        %v5515 = vunpack.c.l.b16 %v5383
        %v5516 = vpack.c.b16 %v5453, %v5452
        %v5517 = vpack.c.b16 %v5455, %v5454
        %v5518 = vpack.c.b16 %v5457, %v5456
        %v5519 = vpack.c.b16 %v5459, %v5458
        %v5520 = vpack.c.b16 %v5461, %v5460
        %v5521 = vpack.c.b16 %v5463, %v5462
        %v5522 = vpack.c.b16 %v5465, %v5464
        %v5523 = vpack.c.b16 %v5467, %v5466
        %v5524 = vpack.c.b16 %v5469, %v5468
        %v5525 = vpack.c.b16 %v5471, %v5470
        %v5526 = vpack.c.b16 %v5473, %v5472
        %v5527 = vpack.c.b16 %v5475, %v5474
        %v5528 = vpack.c.b16 %v5477, %v5476
        %v5529 = vpack.c.b16 %v5479, %v5478
        %v5530 = vpack.c.b16 %v5481, %v5480
        %v5531 = vpack.c.b16 %v5483, %v5482
        %v5532 = vpack.c.b16 %v5485, %v5484
        %v5533 = vpack.c.b16 %v5487, %v5486
        %v5534 = vpack.c.b16 %v5489, %v5488
        %v5535 = vpack.c.b16 %v5491, %v5490
        %v5536 = vpack.c.b16 %v5493, %v5492
        %v5537 = vpack.c.b16 %v5495, %v5494
        %v5538 = vpack.c.b16 %v5497, %v5496
        %v5539 = vpack.c.b16 %v5499, %v5498
        %v5540 = vpack.c.b16 %v5501, %v5500
        %v5541 = vpack.c.b16 %v5503, %v5502
        %v5542 = vpack.c.b16 %v5505, %v5504
        %v5543 = vpack.c.b16 %v5507, %v5506
        %v5544 = vpack.c.b16 %v5509, %v5508
        %v5545 = vpack.c.b16 %v5511, %v5510
        %v5546 = vpack.c.b16 %v5513, %v5512
        %v5547 = vpack.c.b16 %v5515, %v5514
        %5580 = vmatpush.bf16.msra.mxu0 %v5523
        %5581 = vmatpush.bf16.msra.mxu0 %v5522
        %5582 = vmatpush.bf16.msra.mxu0 %v5521
        %5583 = vmatpush.bf16.msra.mxu0 %v5520
        %5584 = vmatpush.bf16.msra.mxu0 %v5519
        %5585 = vmatpush.bf16.msra.mxu0 %v5518
        %5586 = vmatpush.bf16.msra.mxu0 %v5517
        %5587 = vmatpush.bf16.msra.mxu0 %v5516
        %5588 = vmatmul.bf16.gmra.mxu0 %v5256
        %v5589 = vpop.f32.mrf.mxu0
        %v5590 = vadd.f32 %v5386, %v5589
        %v5591 = vpop.f32.mrf.mxu0
        %v5592 = vadd.f32 %v5386, %v5591
        %5593 = vmatmul.bf16.gmra.mxu0 %v5260
        %v5594 = vpop.f32.mrf.mxu0
        %v5595 = vadd.f32 %v5386, %v5594
        %v5596 = vpop.f32.mrf.mxu0
        %v5597 = vadd.f32 %v5386, %v5596
        %5598 = vmatmul.bf16.gmra.mxu0 %v5264
        %v5599 = vpop.f32.mrf.mxu0
        %v5600 = vadd.f32 %v5386, %v5599
        %v5601 = vpop.f32.mrf.mxu0
        %v5602 = vadd.f32 %v5386, %v5601
        %5603 = vmatmul.bf16.gmra.mxu0 %v5268
        %v5604 = vpop.f32.mrf.mxu0
        %v5605 = vadd.f32 %v5386, %v5604
        %v5606 = vpop.f32.mrf.mxu0
        %v5607 = vadd.f32 %v5386, %v5606
        %5608 = vmatmul.bf16.gmra.mxu0 %v5272
        %v5609 = vpop.f32.mrf.mxu0
        %v5610 = vadd.f32 %v5386, %v5609
        %v5611 = vpop.f32.mrf.mxu0
        %v5612 = vadd.f32 %v5386, %v5611
        %5613 = vmatmul.bf16.gmra.mxu0 %v5276
        %v5614 = vpop.f32.mrf.mxu0
        %v5615 = vadd.f32 %v5386, %v5614
        %v5616 = vpop.f32.mrf.mxu0
        %v5617 = vadd.f32 %v5386, %v5616
        %5618 = vmatmul.bf16.gmra.mxu0 %v5280
        %v5619 = vpop.f32.mrf.mxu0
        %v5620 = vadd.f32 %v5386, %v5619
        %v5621 = vpop.f32.mrf.mxu0
        %v5622 = vadd.f32 %v5386, %v5621
        %5623 = vmatmul.bf16.gmra.mxu0 %v5284
        %v5624 = vpop.f32.mrf.mxu0
        %v5625 = vadd.f32 %v5386, %v5624
        %v5626 = vpop.f32.mrf.mxu0
        %v5627 = vadd.f32 %v5386, %v5626
        %5628 = vmatmul.bf16.gmra.mxu0 %v5288
        %v5629 = vpop.f32.mrf.mxu0
        %v5630 = vadd.f32 %v5386, %v5629
        %v5631 = vpop.f32.mrf.mxu0
        %v5632 = vadd.f32 %v5386, %v5631
        %5633 = vmatmul.bf16.gmra.mxu0 %v5292
        %v5634 = vpop.f32.mrf.mxu0
        %v5635 = vadd.f32 %v5386, %v5634
        %v5636 = vpop.f32.mrf.mxu0
        %v5637 = vadd.f32 %v5386, %v5636
        %5638 = vmatmul.bf16.gmra.mxu0 %v5296
        %v5639 = vpop.f32.mrf.mxu0
        %v5640 = vadd.f32 %v5386, %v5639
        %v5641 = vpop.f32.mrf.mxu0
        %v5642 = vadd.f32 %v5386, %v5641
        %5643 = vmatmul.bf16.gmra.mxu0 %v5300
        %v5644 = vpop.f32.mrf.mxu0
        %v5645 = vadd.f32 %v5386, %v5644
        %v5646 = vpop.f32.mrf.mxu0
        %v5647 = vadd.f32 %v5386, %v5646
        %5648 = vmatmul.bf16.gmra.mxu0 %v5304
        %v5649 = vpop.f32.mrf.mxu0
        %v5650 = vadd.f32 %v5386, %v5649
        %v5651 = vpop.f32.mrf.mxu0
        %v5652 = vadd.f32 %v5386, %v5651
        %5653 = vmatmul.bf16.gmra.mxu0 %v5308
        %v5654 = vpop.f32.mrf.mxu0
        %v5655 = vadd.f32 %v5386, %v5654
        %v5656 = vpop.f32.mrf.mxu0
        %v5657 = vadd.f32 %v5386, %v5656
        %5658 = vmatmul.bf16.gmra.mxu0 %v5312
        %v5659 = vpop.f32.mrf.mxu0
        %v5660 = vadd.f32 %v5386, %v5659
        %v5661 = vpop.f32.mrf.mxu0
        %v5662 = vadd.f32 %v5386, %v5661
        %5663 = vmatmul.bf16.gmra.mxu0 %v5316
        %v5664 = vpop.f32.mrf.mxu0
        %v5665 = vadd.f32 %v5386, %v5664
        %v5666 = vpop.f32.mrf.mxu0
        %v5667 = vadd.f32 %v5386, %v5666
        %5668 = vdwg.mxu0
        %5669 = vmatpush.bf16.msra.mxu0 %v5531
        %5670 = vmatpush.bf16.msra.mxu0 %v5530
        %5671 = vmatpush.bf16.msra.mxu0 %v5529
        %5672 = vmatpush.bf16.msra.mxu0 %v5528
        %5673 = vmatpush.bf16.msra.mxu0 %v5527
        %5674 = vmatpush.bf16.msra.mxu0 %v5526
        %5675 = vmatpush.bf16.msra.mxu0 %v5525
        %5676 = vmatpush.bf16.msra.mxu0 %v5524
        %5677 = vmatmul.bf16.gmra.mxu0 %v5257
        %v5678 = vpop.f32.mrf.mxu0
        %v5679 = vadd.f32 %v5590, %v5678
        %v5680 = vpop.f32.mrf.mxu0
        %v5681 = vadd.f32 %v5592, %v5680
        %5682 = vmatmul.bf16.gmra.mxu0 %v5261
        %v5683 = vpop.f32.mrf.mxu0
        %v5684 = vadd.f32 %v5595, %v5683
        %v5685 = vpop.f32.mrf.mxu0
        %v5686 = vadd.f32 %v5597, %v5685
        %5687 = vmatmul.bf16.gmra.mxu0 %v5265
        %v5688 = vpop.f32.mrf.mxu0
        %v5689 = vadd.f32 %v5600, %v5688
        %v5690 = vpop.f32.mrf.mxu0
        %v5691 = vadd.f32 %v5602, %v5690
        %5692 = vmatmul.bf16.gmra.mxu0 %v5269
        %v5693 = vpop.f32.mrf.mxu0
        %v5694 = vadd.f32 %v5605, %v5693
        %v5695 = vpop.f32.mrf.mxu0
        %v5696 = vadd.f32 %v5607, %v5695
        %5697 = vmatmul.bf16.gmra.mxu0 %v5273
        %v5698 = vpop.f32.mrf.mxu0
        %v5699 = vadd.f32 %v5610, %v5698
        %v5700 = vpop.f32.mrf.mxu0
        %v5701 = vadd.f32 %v5612, %v5700
        %5702 = vmatmul.bf16.gmra.mxu0 %v5277
        %v5703 = vpop.f32.mrf.mxu0
        %v5704 = vadd.f32 %v5615, %v5703
        %v5705 = vpop.f32.mrf.mxu0
        %v5706 = vadd.f32 %v5617, %v5705
        %5707 = vmatmul.bf16.gmra.mxu0 %v5281
        %v5708 = vpop.f32.mrf.mxu0
        %v5709 = vadd.f32 %v5620, %v5708
        %v5710 = vpop.f32.mrf.mxu0
        %v5711 = vadd.f32 %v5622, %v5710
        %5712 = vmatmul.bf16.gmra.mxu0 %v5285
        %v5713 = vpop.f32.mrf.mxu0
        %v5714 = vadd.f32 %v5625, %v5713
        %v5715 = vpop.f32.mrf.mxu0
        %v5716 = vadd.f32 %v5627, %v5715
        %5717 = vmatmul.bf16.gmra.mxu0 %v5289
        %v5718 = vpop.f32.mrf.mxu0
        %v5719 = vadd.f32 %v5630, %v5718
        %v5720 = vpop.f32.mrf.mxu0
        %v5721 = vadd.f32 %v5632, %v5720
        %5722 = vmatmul.bf16.gmra.mxu0 %v5293
        %v5723 = vpop.f32.mrf.mxu0
        %v5724 = vadd.f32 %v5635, %v5723
        %v5725 = vpop.f32.mrf.mxu0
        %v5726 = vadd.f32 %v5637, %v5725
        %5727 = vmatmul.bf16.gmra.mxu0 %v5297
        %v5728 = vpop.f32.mrf.mxu0
        %v5729 = vadd.f32 %v5640, %v5728
        %v5730 = vpop.f32.mrf.mxu0
        %v5731 = vadd.f32 %v5642, %v5730
        %5732 = vmatmul.bf16.gmra.mxu0 %v5301
        %v5733 = vpop.f32.mrf.mxu0
        %v5734 = vadd.f32 %v5645, %v5733
        %v5735 = vpop.f32.mrf.mxu0
        %v5736 = vadd.f32 %v5647, %v5735
        %5737 = vmatmul.bf16.gmra.mxu0 %v5305
        %v5738 = vpop.f32.mrf.mxu0
        %v5739 = vadd.f32 %v5650, %v5738
        %v5740 = vpop.f32.mrf.mxu0
        %v5741 = vadd.f32 %v5652, %v5740
        %5742 = vmatmul.bf16.gmra.mxu0 %v5309
        %v5743 = vpop.f32.mrf.mxu0
        %v5744 = vadd.f32 %v5655, %v5743
        %v5745 = vpop.f32.mrf.mxu0
        %v5746 = vadd.f32 %v5657, %v5745
        %5747 = vmatmul.bf16.gmra.mxu0 %v5313
        %v5748 = vpop.f32.mrf.mxu0
        %v5749 = vadd.f32 %v5660, %v5748
        %v5750 = vpop.f32.mrf.mxu0
        %v5751 = vadd.f32 %v5662, %v5750
        %5752 = vmatmul.bf16.gmra.mxu0 %v5317
        %v5753 = vpop.f32.mrf.mxu0
        %v5754 = vadd.f32 %v5665, %v5753
        %v5755 = vpop.f32.mrf.mxu0
        %v5756 = vadd.f32 %v5667, %v5755
        %5757 = vdwg.mxu0
        %5758 = vmatpush.bf16.msra.mxu0 %v5539
        %5759 = vmatpush.bf16.msra.mxu0 %v5538
        %5760 = vmatpush.bf16.msra.mxu0 %v5537
        %5761 = vmatpush.bf16.msra.mxu0 %v5536
        %5762 = vmatpush.bf16.msra.mxu0 %v5535
        %5763 = vmatpush.bf16.msra.mxu0 %v5534
        %5764 = vmatpush.bf16.msra.mxu0 %v5533
        %5765 = vmatpush.bf16.msra.mxu0 %v5532
        %5766 = vmatmul.bf16.gmra.mxu0 %v5258
        %v5767 = vpop.f32.mrf.mxu0
        %v5768 = vadd.f32 %v5679, %v5767
        %v5769 = vpop.f32.mrf.mxu0
        %v5770 = vadd.f32 %v5681, %v5769
        %5771 = vmatmul.bf16.gmra.mxu0 %v5262
        %v5772 = vpop.f32.mrf.mxu0
        %v5773 = vadd.f32 %v5684, %v5772
        %v5774 = vpop.f32.mrf.mxu0
        %v5775 = vadd.f32 %v5686, %v5774
        %5776 = vmatmul.bf16.gmra.mxu0 %v5266
        %v5777 = vpop.f32.mrf.mxu0
        %v5778 = vadd.f32 %v5689, %v5777
        %v5779 = vpop.f32.mrf.mxu0
        %v5780 = vadd.f32 %v5691, %v5779
        %5781 = vmatmul.bf16.gmra.mxu0 %v5270
        %v5782 = vpop.f32.mrf.mxu0
        %v5783 = vadd.f32 %v5694, %v5782
        %v5784 = vpop.f32.mrf.mxu0
        %v5785 = vadd.f32 %v5696, %v5784
        %5786 = vmatmul.bf16.gmra.mxu0 %v5274
        %v5787 = vpop.f32.mrf.mxu0
        %v5788 = vadd.f32 %v5699, %v5787
        %v5789 = vpop.f32.mrf.mxu0
        %v5790 = vadd.f32 %v5701, %v5789
        %5791 = vmatmul.bf16.gmra.mxu0 %v5278
        %v5792 = vpop.f32.mrf.mxu0
        %v5793 = vadd.f32 %v5704, %v5792
        %v5794 = vpop.f32.mrf.mxu0
        %v5795 = vadd.f32 %v5706, %v5794
        %5796 = vmatmul.bf16.gmra.mxu0 %v5282
        %v5797 = vpop.f32.mrf.mxu0
        %v5798 = vadd.f32 %v5709, %v5797
        %v5799 = vpop.f32.mrf.mxu0
        %v5800 = vadd.f32 %v5711, %v5799
        %5801 = vmatmul.bf16.gmra.mxu0 %v5286
        %v5802 = vpop.f32.mrf.mxu0
        %v5803 = vadd.f32 %v5714, %v5802
        %v5804 = vpop.f32.mrf.mxu0
        %v5805 = vadd.f32 %v5716, %v5804
        %5806 = vmatmul.bf16.gmra.mxu0 %v5290
        %v5807 = vpop.f32.mrf.mxu0
        %v5808 = vadd.f32 %v5719, %v5807
        %v5809 = vpop.f32.mrf.mxu0
        %v5810 = vadd.f32 %v5721, %v5809
        %5811 = vmatmul.bf16.gmra.mxu0 %v5294
        %v5812 = vpop.f32.mrf.mxu0
        %v5813 = vadd.f32 %v5724, %v5812
        %v5814 = vpop.f32.mrf.mxu0
        %v5815 = vadd.f32 %v5726, %v5814
        %5816 = vmatmul.bf16.gmra.mxu0 %v5298
        %v5817 = vpop.f32.mrf.mxu0
        %v5818 = vadd.f32 %v5729, %v5817
        %v5819 = vpop.f32.mrf.mxu0
        %v5820 = vadd.f32 %v5731, %v5819
        %5821 = vmatmul.bf16.gmra.mxu0 %v5302
        %v5822 = vpop.f32.mrf.mxu0
        %v5823 = vadd.f32 %v5734, %v5822
        %v5824 = vpop.f32.mrf.mxu0
        %v5825 = vadd.f32 %v5736, %v5824
        %5826 = vmatmul.bf16.gmra.mxu0 %v5306
        %v5827 = vpop.f32.mrf.mxu0
        %v5828 = vadd.f32 %v5739, %v5827
        %v5829 = vpop.f32.mrf.mxu0
        %v5830 = vadd.f32 %v5741, %v5829
        %5831 = vmatmul.bf16.gmra.mxu0 %v5310
        %v5832 = vpop.f32.mrf.mxu0
        %v5833 = vadd.f32 %v5744, %v5832
        %v5834 = vpop.f32.mrf.mxu0
        %v5835 = vadd.f32 %v5746, %v5834
        %5836 = vmatmul.bf16.gmra.mxu0 %v5314
        %v5837 = vpop.f32.mrf.mxu0
        %v5838 = vadd.f32 %v5749, %v5837
        %v5839 = vpop.f32.mrf.mxu0
        %v5840 = vadd.f32 %v5751, %v5839
        %5841 = vmatmul.bf16.gmra.mxu0 %v5318
        %v5842 = vpop.f32.mrf.mxu0
        %v5843 = vadd.f32 %v5754, %v5842
        %v5844 = vpop.f32.mrf.mxu0
        %v5845 = vadd.f32 %v5756, %v5844
        %5846 = vdwg.mxu0
        %5847 = vmatpush.bf16.msra.mxu0 %v5547
        %5848 = vmatpush.bf16.msra.mxu0 %v5546
        %5849 = vmatpush.bf16.msra.mxu0 %v5545
        %5850 = vmatpush.bf16.msra.mxu0 %v5544
        %5851 = vmatpush.bf16.msra.mxu0 %v5543
        %5852 = vmatpush.bf16.msra.mxu0 %v5542
        %5853 = vmatpush.bf16.msra.mxu0 %v5541
        %5854 = vmatpush.bf16.msra.mxu0 %v5540
        %5855 = vmatmul.bf16.gmra.mxu0 %v5259
        %v5856 = vpop.f32.mrf.mxu0
        %v5857 = vadd.f32 %v5768, %v5856
        %v5858 = vpop.f32.mrf.mxu0
        %v5859 = vadd.f32 %v5770, %v5858
        %5860 = vmatmul.bf16.gmra.mxu0 %v5263
        %v5861 = vpop.f32.mrf.mxu0
        %v5862 = vadd.f32 %v5773, %v5861
        %v5863 = vpop.f32.mrf.mxu0
        %v5864 = vadd.f32 %v5775, %v5863
        %5865 = vmatmul.bf16.gmra.mxu0 %v5267
        %v5866 = vpop.f32.mrf.mxu0
        %v5867 = vadd.f32 %v5778, %v5866
        %v5868 = vpop.f32.mrf.mxu0
        %v5869 = vadd.f32 %v5780, %v5868
        %5870 = vmatmul.bf16.gmra.mxu0 %v5271
        %v5871 = vpop.f32.mrf.mxu0
        %v5872 = vadd.f32 %v5783, %v5871
        %v5873 = vpop.f32.mrf.mxu0
        %v5874 = vadd.f32 %v5785, %v5873
        %5875 = vmatmul.bf16.gmra.mxu0 %v5275
        %v5876 = vpop.f32.mrf.mxu0
        %v5877 = vadd.f32 %v5788, %v5876
        %v5878 = vpop.f32.mrf.mxu0
        %v5879 = vadd.f32 %v5790, %v5878
        %5880 = vmatmul.bf16.gmra.mxu0 %v5279
        %v5881 = vpop.f32.mrf.mxu0
        %v5882 = vadd.f32 %v5793, %v5881
        %v5883 = vpop.f32.mrf.mxu0
        %v5884 = vadd.f32 %v5795, %v5883
        %5885 = vmatmul.bf16.gmra.mxu0 %v5283
        %v5886 = vpop.f32.mrf.mxu0
        %v5887 = vadd.f32 %v5798, %v5886
        %v5888 = vpop.f32.mrf.mxu0
        %v5889 = vadd.f32 %v5800, %v5888
        %5890 = vmatmul.bf16.gmra.mxu0 %v5287
        %v5891 = vpop.f32.mrf.mxu0
        %v5892 = vadd.f32 %v5803, %v5891
        %v5893 = vpop.f32.mrf.mxu0
        %v5894 = vadd.f32 %v5805, %v5893
        %5895 = vmatmul.bf16.gmra.mxu0 %v5291
        %v5896 = vpop.f32.mrf.mxu0
        %v5897 = vadd.f32 %v5808, %v5896
        %v5898 = vpop.f32.mrf.mxu0
        %v5899 = vadd.f32 %v5810, %v5898
        %5900 = vmatmul.bf16.gmra.mxu0 %v5295
        %v5901 = vpop.f32.mrf.mxu0
        %v5902 = vadd.f32 %v5813, %v5901
        %v5903 = vpop.f32.mrf.mxu0
        %v5904 = vadd.f32 %v5815, %v5903
        %5905 = vmatmul.bf16.gmra.mxu0 %v5299
        %v5906 = vpop.f32.mrf.mxu0
        %v5907 = vadd.f32 %v5818, %v5906
        %v5908 = vpop.f32.mrf.mxu0
        %v5909 = vadd.f32 %v5820, %v5908
        %5910 = vmatmul.bf16.gmra.mxu0 %v5303
        %v5911 = vpop.f32.mrf.mxu0
        %v5912 = vadd.f32 %v5823, %v5911
        %v5913 = vpop.f32.mrf.mxu0
        %v5914 = vadd.f32 %v5825, %v5913
        %5915 = vmatmul.bf16.gmra.mxu0 %v5307
        %v5916 = vpop.f32.mrf.mxu0
        %v5917 = vadd.f32 %v5828, %v5916
        %v5918 = vpop.f32.mrf.mxu0
        %v5919 = vadd.f32 %v5830, %v5918
        %5920 = vmatmul.bf16.gmra.mxu0 %v5311
        %v5921 = vpop.f32.mrf.mxu0
        %v5922 = vadd.f32 %v5833, %v5921
        %v5923 = vpop.f32.mrf.mxu0
        %v5924 = vadd.f32 %v5835, %v5923
        %5925 = vmatmul.bf16.gmra.mxu0 %v5315
        %v5926 = vpop.f32.mrf.mxu0
        %v5927 = vadd.f32 %v5838, %v5926
        %v5928 = vpop.f32.mrf.mxu0
        %v5929 = vadd.f32 %v5840, %v5928
        %5930 = vmatmul.bf16.gmra.mxu0 %v5319
        %v5931 = vpop.f32.mrf.mxu0
        %v5932 = vadd.f32 %v5843, %v5931
        %v5933 = vpop.f32.mrf.mxu0
        %v5934 = vadd.f32 %v5845, %v5933
        %5935 = vdwg.mxu0
        %v5936 = vpack.c.bf16 %v5859, %v5857
        %v5937 = vpack.c.bf16 %v5864, %v5862
        %v5938 = vpack.c.bf16 %v5869, %v5867
        %v5939 = vpack.c.bf16 %v5874, %v5872
        %v5940 = vpack.c.bf16 %v5879, %v5877
        %v5941 = vpack.c.bf16 %v5884, %v5882
        %v5942 = vpack.c.bf16 %v5889, %v5887
        %v5943 = vpack.c.bf16 %v5894, %v5892
        %v5944 = vpack.c.bf16 %v5899, %v5897
        %v5945 = vpack.c.bf16 %v5904, %v5902
        %v5946 = vpack.c.bf16 %v5909, %v5907
        %v5947 = vpack.c.bf16 %v5914, %v5912
        %v5948 = vpack.c.bf16 %v5919, %v5917
        %v5949 = vpack.c.bf16 %v5924, %v5922
        %v5950 = vpack.c.bf16 %v5929, %v5927
        %v5951 = vpack.c.bf16 %v5934, %v5932
        %v5952 = vld [vmem:[#allocation10] sm:$0xf]
        %v5953 = vld [vmem:[#allocation10 + $0x4] sm:$0xf]
        %v5954 = vld [vmem:[#allocation10 + $0x8] sm:$0xf]
        %v5955 = vld [vmem:[#allocation10 + $0xc] sm:$0xf]
        %v5956 = vld [vmem:[#allocation10 + $0x10] sm:$0xf]
        %v5957 = vld [vmem:[#allocation10 + $0x14] sm:$0xf]
        %v5958 = vld [vmem:[#allocation10 + $0x18] sm:$0xf]
        %v5959 = vld [vmem:[#allocation10 + $0x1c] sm:$0xf]
        %v5960 = vld [vmem:[#allocation10 + $0x20] sm:$0xf]
        %v5961 = vld [vmem:[#allocation10 + $0x24] sm:$0xf]
        %v5962 = vld [vmem:[#allocation10 + $0x28] sm:$0xf]
        %v5963 = vld [vmem:[#allocation10 + $0x2c] sm:$0xf]
        %v5964 = vld [vmem:[#allocation10 + $0x30] sm:$0xf]
        %v5965 = vld [vmem:[#allocation10 + $0x34] sm:$0xf]
        %v5966 = vld [vmem:[#allocation10 + $0x38] sm:$0xf]
        %v5967 = vld [vmem:[#allocation10 + $0x3c] sm:$0xf]
        %v5968 = vld [vmem:[%s6] sm:$0x1]
        %v5970 = vperm.slane %v5968, 0
        %v5988 = vunpack.c.l.b16 %v5952
        %v5989 = vunpack.c.l.b16 %v5953
        %v5990 = vunpack.c.l.b16 %v5954
        %v5991 = vunpack.c.l.b16 %v5955
        %v5992 = vunpack.c.l.b16 %v5956
        %v5993 = vunpack.c.l.b16 %v5957
        %v5994 = vunpack.c.l.b16 %v5958
        %v5995 = vunpack.c.l.b16 %v5959
        %v5996 = vunpack.c.l.b16 %v5960
        %v5997 = vunpack.c.l.b16 %v5961
        %v5998 = vunpack.c.l.b16 %v5962
        %v5999 = vunpack.c.l.b16 %v5963
        %v6000 = vunpack.c.l.b16 %v5964
        %v6001 = vunpack.c.l.b16 %v5965
        %v6002 = vunpack.c.l.b16 %v5966
        %v6003 = vunpack.c.l.b16 %v5967
        %v6004 = vpack.c.b16 %v5989, %v5988
        %v6005 = vpack.c.b16 %v5991, %v5990
        %v6006 = vpack.c.b16 %v5993, %v5992
        %v6007 = vpack.c.b16 %v5995, %v5994
        %v6008 = vpack.c.b16 %v5997, %v5996
        %v6009 = vpack.c.b16 %v5999, %v5998
        %v6010 = vpack.c.b16 %v6001, %v6000
        %v6011 = vpack.c.b16 %v6003, %v6002
        %6020 = vmatpush.bf16.msra.mxu0 %v6011
        %6021 = vmatpush.bf16.msra.mxu0 %v6010
        %6022 = vmatpush.bf16.msra.mxu0 %v6009
        %6023 = vmatpush.bf16.msra.mxu0 %v6008
        %6024 = vmatpush.bf16.msra.mxu0 %v6007
        %6025 = vmatpush.bf16.msra.mxu0 %v6006
        %6026 = vmatpush.bf16.msra.mxu0 %v6005
        %6027 = vmatpush.bf16.msra.mxu0 %v6004
        %6028 = vmatmul.bf16.gmra.mxu0 %v5936
        %v6029 = vpop.f32.mrf.mxu0
        %v6030 = vadd.f32 %v5970, %v6029
        %v6031 = vpop.f32.mrf.mxu0
        %v6032 = vadd.f32 %v5970, %v6031
        %6033 = vmatmul.bf16.gmra.mxu0 %v5937
        %v6034 = vpop.f32.mrf.mxu0
        %v6035 = vadd.f32 %v5970, %v6034
        %v6036 = vpop.f32.mrf.mxu0
        %v6037 = vadd.f32 %v5970, %v6036
        %6038 = vmatmul.bf16.gmra.mxu0 %v5938
        %v6039 = vpop.f32.mrf.mxu0
        %v6040 = vadd.f32 %v5970, %v6039
        %v6041 = vpop.f32.mrf.mxu0
        %v6042 = vadd.f32 %v5970, %v6041
        %6043 = vmatmul.bf16.gmra.mxu0 %v5939
        %v6044 = vpop.f32.mrf.mxu0
        %v6045 = vadd.f32 %v5970, %v6044
        %v6046 = vpop.f32.mrf.mxu0
        %v6047 = vadd.f32 %v5970, %v6046
        %6048 = vmatmul.bf16.gmra.mxu0 %v5940
        %v6049 = vpop.f32.mrf.mxu0
        %v6050 = vadd.f32 %v5970, %v6049
        %v6051 = vpop.f32.mrf.mxu0
        %v6052 = vadd.f32 %v5970, %v6051
        %6053 = vmatmul.bf16.gmra.mxu0 %v5941
        %v6054 = vpop.f32.mrf.mxu0
        %v6055 = vadd.f32 %v5970, %v6054
        %v6056 = vpop.f32.mrf.mxu0
        %v6057 = vadd.f32 %v5970, %v6056
        %6058 = vmatmul.bf16.gmra.mxu0 %v5942
        %v6059 = vpop.f32.mrf.mxu0
        %v6060 = vadd.f32 %v5970, %v6059
        %v6061 = vpop.f32.mrf.mxu0
        %v6062 = vadd.f32 %v5970, %v6061
        %6063 = vmatmul.bf16.gmra.mxu0 %v5943
        %v6064 = vpop.f32.mrf.mxu0
        %v6065 = vadd.f32 %v5970, %v6064
        %v6066 = vpop.f32.mrf.mxu0
        %v6067 = vadd.f32 %v5970, %v6066
        %6068 = vmatmul.bf16.gmra.mxu0 %v5944
        %v6069 = vpop.f32.mrf.mxu0
        %v6070 = vadd.f32 %v5970, %v6069
        %v6071 = vpop.f32.mrf.mxu0
        %v6072 = vadd.f32 %v5970, %v6071
        %6073 = vmatmul.bf16.gmra.mxu0 %v5945
        %v6074 = vpop.f32.mrf.mxu0
        %v6075 = vadd.f32 %v5970, %v6074
        %v6076 = vpop.f32.mrf.mxu0
        %v6077 = vadd.f32 %v5970, %v6076
        %6078 = vmatmul.bf16.gmra.mxu0 %v5946
        %v6079 = vpop.f32.mrf.mxu0
        %v6080 = vadd.f32 %v5970, %v6079
        %v6081 = vpop.f32.mrf.mxu0
        %v6082 = vadd.f32 %v5970, %v6081
        %6083 = vmatmul.bf16.gmra.mxu0 %v5947
        %v6084 = vpop.f32.mrf.mxu0
        %v6085 = vadd.f32 %v5970, %v6084
        %v6086 = vpop.f32.mrf.mxu0
        %v6087 = vadd.f32 %v5970, %v6086
        %6088 = vmatmul.bf16.gmra.mxu0 %v5948
        %v6089 = vpop.f32.mrf.mxu0
        %v6090 = vadd.f32 %v5970, %v6089
        %v6091 = vpop.f32.mrf.mxu0
        %v6092 = vadd.f32 %v5970, %v6091
        %6093 = vmatmul.bf16.gmra.mxu0 %v5949
        %v6094 = vpop.f32.mrf.mxu0
        %v6095 = vadd.f32 %v5970, %v6094
        %v6096 = vpop.f32.mrf.mxu0
        %v6097 = vadd.f32 %v5970, %v6096
        %6098 = vmatmul.bf16.gmra.mxu0 %v5950
        %v6099 = vpop.f32.mrf.mxu0
        %v6100 = vadd.f32 %v5970, %v6099
        %v6101 = vpop.f32.mrf.mxu0
        %v6102 = vadd.f32 %v5970, %v6101
        %6103 = vmatmul.bf16.gmra.mxu0 %v5951
        %v6104 = vpop.f32.mrf.mxu0
        %v6105 = vadd.f32 %v5970, %v6104
        %v6106 = vpop.f32.mrf.mxu0
        %v6107 = vadd.f32 %v5970, %v6106
        %6108 = vdwg.mxu0
        %v6109 = vld [vmem:[#allocation11] sm:$0xf]
        %v6110 = vld [vmem:[#allocation11 + $0x4] sm:$0xf]
        %v6111 = vld [vmem:[#allocation11 + $0x8] sm:$0xf]
        %v6112 = vld [vmem:[#allocation11 + $0xc] sm:$0xf]
        %v6113 = vld [vmem:[#allocation11 + $0x10] sm:$0xf]
        %v6114 = vld [vmem:[#allocation11 + $0x14] sm:$0xf]
        %v6115 = vld [vmem:[#allocation11 + $0x18] sm:$0xf]
        %v6116 = vld [vmem:[#allocation11 + $0x1c] sm:$0xf]
        %v6117 = vld [vmem:[#allocation11 + $0x20] sm:$0xf]
        %v6118 = vld [vmem:[#allocation11 + $0x24] sm:$0xf]
        %v6119 = vld [vmem:[#allocation11 + $0x28] sm:$0xf]
        %v6120 = vld [vmem:[#allocation11 + $0x2c] sm:$0xf]
        %v6121 = vld [vmem:[#allocation11 + $0x30] sm:$0xf]
        %v6122 = vld [vmem:[#allocation11 + $0x34] sm:$0xf]
        %v6123 = vld [vmem:[#allocation11 + $0x38] sm:$0xf]
        %v6124 = vld [vmem:[#allocation11 + $0x3c] sm:$0xf]
        %v6125 = vld [vmem:[%s8] sm:$0x1]
        %v6127 = vperm.slane %v6125, 0
        %v6145 = vunpack.c.l.b16 %v6109
        %v6146 = vunpack.c.l.b16 %v6110
        %v6147 = vunpack.c.l.b16 %v6111
        %v6148 = vunpack.c.l.b16 %v6112
        %v6149 = vunpack.c.l.b16 %v6113
        %v6150 = vunpack.c.l.b16 %v6114
        %v6151 = vunpack.c.l.b16 %v6115
        %v6152 = vunpack.c.l.b16 %v6116
        %v6153 = vunpack.c.l.b16 %v6117
        %v6154 = vunpack.c.l.b16 %v6118
        %v6155 = vunpack.c.l.b16 %v6119
        %v6156 = vunpack.c.l.b16 %v6120
        %v6157 = vunpack.c.l.b16 %v6121
        %v6158 = vunpack.c.l.b16 %v6122
        %v6159 = vunpack.c.l.b16 %v6123
        %v6160 = vunpack.c.l.b16 %v6124
        %v6161 = vpack.c.b16 %v6146, %v6145
        %v6162 = vpack.c.b16 %v6148, %v6147
        %v6163 = vpack.c.b16 %v6150, %v6149
        %v6164 = vpack.c.b16 %v6152, %v6151
        %v6165 = vpack.c.b16 %v6154, %v6153
        %v6166 = vpack.c.b16 %v6156, %v6155
        %v6167 = vpack.c.b16 %v6158, %v6157
        %v6168 = vpack.c.b16 %v6160, %v6159
        %6177 = vmatpush.bf16.msra.mxu0 %v6168
        %6178 = vmatpush.bf16.msra.mxu0 %v6167
        %6179 = vmatpush.bf16.msra.mxu0 %v6166
        %6180 = vmatpush.bf16.msra.mxu0 %v6165
        %6181 = vmatpush.bf16.msra.mxu0 %v6164
        %6182 = vmatpush.bf16.msra.mxu0 %v6163
        %6183 = vmatpush.bf16.msra.mxu0 %v6162
        %6184 = vmatpush.bf16.msra.mxu0 %v6161
        %6185 = vmatmul.bf16.gmra.mxu0 %v5936
        %v6186 = vpop.f32.mrf.mxu0
        %v6187 = vadd.f32 %v6127, %v6186
        %v6188 = vpop.f32.mrf.mxu0
        %v6189 = vadd.f32 %v6127, %v6188
        %6190 = vmatmul.bf16.gmra.mxu0 %v5937
        %v6191 = vpop.f32.mrf.mxu0
        %v6192 = vadd.f32 %v6127, %v6191
        %v6193 = vpop.f32.mrf.mxu0
        %v6194 = vadd.f32 %v6127, %v6193
        %6195 = vmatmul.bf16.gmra.mxu0 %v5938
        %v6196 = vpop.f32.mrf.mxu0
        %v6197 = vadd.f32 %v6127, %v6196
        %v6198 = vpop.f32.mrf.mxu0
        %v6199 = vadd.f32 %v6127, %v6198
        %6200 = vmatmul.bf16.gmra.mxu0 %v5939
        %v6201 = vpop.f32.mrf.mxu0
        %v6202 = vadd.f32 %v6127, %v6201
        %v6203 = vpop.f32.mrf.mxu0
        %v6204 = vadd.f32 %v6127, %v6203
        %6205 = vmatmul.bf16.gmra.mxu0 %v5940
        %v6206 = vpop.f32.mrf.mxu0
        %v6207 = vadd.f32 %v6127, %v6206
        %v6208 = vpop.f32.mrf.mxu0
        %v6209 = vadd.f32 %v6127, %v6208
        %6210 = vmatmul.bf16.gmra.mxu0 %v5941
        %v6211 = vpop.f32.mrf.mxu0
        %v6212 = vadd.f32 %v6127, %v6211
        %v6213 = vpop.f32.mrf.mxu0
        %v6214 = vadd.f32 %v6127, %v6213
        %6215 = vmatmul.bf16.gmra.mxu0 %v5942
        %v6216 = vpop.f32.mrf.mxu0
        %v6217 = vadd.f32 %v6127, %v6216
        %v6218 = vpop.f32.mrf.mxu0
        %v6219 = vadd.f32 %v6127, %v6218
        %6220 = vmatmul.bf16.gmra.mxu0 %v5943
        %v6221 = vpop.f32.mrf.mxu0
        %v6222 = vadd.f32 %v6127, %v6221
        %v6223 = vpop.f32.mrf.mxu0
        %v6224 = vadd.f32 %v6127, %v6223
        %6225 = vmatmul.bf16.gmra.mxu0 %v5944
        %v6226 = vpop.f32.mrf.mxu0
        %v6227 = vadd.f32 %v6127, %v6226
        %v6228 = vpop.f32.mrf.mxu0
        %v6229 = vadd.f32 %v6127, %v6228
        %6230 = vmatmul.bf16.gmra.mxu0 %v5945
        %v6231 = vpop.f32.mrf.mxu0
        %v6232 = vadd.f32 %v6127, %v6231
        %v6233 = vpop.f32.mrf.mxu0
        %v6234 = vadd.f32 %v6127, %v6233
        %6235 = vmatmul.bf16.gmra.mxu0 %v5946
        %v6236 = vpop.f32.mrf.mxu0
        %v6237 = vadd.f32 %v6127, %v6236
        %v6238 = vpop.f32.mrf.mxu0
        %v6239 = vadd.f32 %v6127, %v6238
        %6240 = vmatmul.bf16.gmra.mxu0 %v5947
        %v6241 = vpop.f32.mrf.mxu0
        %v6242 = vadd.f32 %v6127, %v6241
        %v6243 = vpop.f32.mrf.mxu0
        %v6244 = vadd.f32 %v6127, %v6243
        %6245 = vmatmul.bf16.gmra.mxu0 %v5948
        %v6246 = vpop.f32.mrf.mxu0
        %v6247 = vadd.f32 %v6127, %v6246
        %v6248 = vpop.f32.mrf.mxu0
        %v6249 = vadd.f32 %v6127, %v6248
        %6250 = vmatmul.bf16.gmra.mxu0 %v5949
        %v6251 = vpop.f32.mrf.mxu0
        %v6252 = vadd.f32 %v6127, %v6251
        %v6253 = vpop.f32.mrf.mxu0
        %v6254 = vadd.f32 %v6127, %v6253
        %6255 = vmatmul.bf16.gmra.mxu0 %v5950
        %v6256 = vpop.f32.mrf.mxu0
        %v6257 = vadd.f32 %v6127, %v6256
        %v6258 = vpop.f32.mrf.mxu0
        %v6259 = vadd.f32 %v6127, %v6258
        %6260 = vmatmul.bf16.gmra.mxu0 %v5951
        %v6261 = vpop.f32.mrf.mxu0
        %v6262 = vadd.f32 %v6127, %v6261
        %v6263 = vpop.f32.mrf.mxu0
        %v6264 = vadd.f32 %v6127, %v6263
        %6265 = vdwg.mxu0
        %v6266 = vmul.f32 %v6187, 0.5
        %v6267 = vmul.f32 %v6189, 0.5
        %v6268 = vmul.f32 %v6192, 0.5
        %v6269 = vmul.f32 %v6194, 0.5
        %v6270 = vmul.f32 %v6197, 0.5
        %v6271 = vmul.f32 %v6199, 0.5
        %v6272 = vmul.f32 %v6202, 0.5
        %v6273 = vmul.f32 %v6204, 0.5
        %v6274 = vmul.f32 %v6207, 0.5
        %v6275 = vmul.f32 %v6209, 0.5
        %v6276 = vmul.f32 %v6212, 0.5
        %v6277 = vmul.f32 %v6214, 0.5
        %v6278 = vmul.f32 %v6217, 0.5
        %v6279 = vmul.f32 %v6219, 0.5
        %v6280 = vmul.f32 %v6222, 0.5
        %v6281 = vmul.f32 %v6224, 0.5
        %v6282 = vmul.f32 %v6227, 0.5
        %v6283 = vmul.f32 %v6229, 0.5
        %v6284 = vmul.f32 %v6232, 0.5
        %v6285 = vmul.f32 %v6234, 0.5
        %v6286 = vmul.f32 %v6237, 0.5
        %v6287 = vmul.f32 %v6239, 0.5
        %v6288 = vmul.f32 %v6242, 0.5
        %v6289 = vmul.f32 %v6244, 0.5
        %v6290 = vmul.f32 %v6247, 0.5
        %v6291 = vmul.f32 %v6249, 0.5
        %v6292 = vmul.f32 %v6252, 0.5
        %v6293 = vmul.f32 %v6254, 0.5
        %v6294 = vmul.f32 %v6257, 0.5
        %v6295 = vmul.f32 %v6259, 0.5
        %v6296 = vmul.f32 %v6262, 0.5
        %v6297 = vmul.f32 %v6264, 0.5
        %v6298 = vmul.f32 %v6266, 1.442695
        %v6299 = vpow.pop %v6298
        %v6300 = vmul.f32 %v6267, 1.442695
        %v6301 = vpow.pop %v6300
        %v6302 = vmul.f32 %v6268, 1.442695
        %v6303 = vpow.pop %v6302
        %v6304 = vmul.f32 %v6269, 1.442695
        %v6305 = vpow.pop %v6304
        %v6306 = vmul.f32 %v6270, 1.442695
        %v6307 = vpow.pop %v6306
        %v6308 = vmul.f32 %v6271, 1.442695
        %v6309 = vpow.pop %v6308
        %v6310 = vmul.f32 %v6272, 1.442695
        %v6311 = vpow.pop %v6310
        %v6312 = vmul.f32 %v6273, 1.442695
        %v6313 = vpow.pop %v6312
        %v6314 = vmul.f32 %v6274, 1.442695
        %v6315 = vpow.pop %v6314
        %v6316 = vmul.f32 %v6275, 1.442695
        %v6317 = vpow.pop %v6316
        %v6318 = vmul.f32 %v6276, 1.442695
        %v6319 = vpow.pop %v6318
        %v6320 = vmul.f32 %v6277, 1.442695
        %v6321 = vpow.pop %v6320
        %v6322 = vmul.f32 %v6278, 1.442695
        %v6323 = vpow.pop %v6322
        %v6324 = vmul.f32 %v6279, 1.442695
        %v6325 = vpow.pop %v6324
        %v6326 = vmul.f32 %v6280, 1.442695
        %v6327 = vpow.pop %v6326
        %v6328 = vmul.f32 %v6281, 1.442695
        %v6329 = vpow.pop %v6328
        %v6330 = vmul.f32 %v6282, 1.442695
        %v6331 = vpow.pop %v6330
        %v6332 = vmul.f32 %v6283, 1.442695
        %v6333 = vpow.pop %v6332
        %v6334 = vmul.f32 %v6284, 1.442695
        %v6335 = vpow.pop %v6334
        %v6336 = vmul.f32 %v6285, 1.442695
        %v6337 = vpow.pop %v6336
        %v6338 = vmul.f32 %v6286, 1.442695
        %v6339 = vpow.pop %v6338
        %v6340 = vmul.f32 %v6287, 1.442695
        %v6341 = vpow.pop %v6340
        %v6342 = vmul.f32 %v6288, 1.442695
        %v6343 = vpow.pop %v6342
        %v6344 = vmul.f32 %v6289, 1.442695
        %v6345 = vpow.pop %v6344
        %v6346 = vmul.f32 %v6290, 1.442695
        %v6347 = vpow.pop %v6346
        %v6348 = vmul.f32 %v6291, 1.442695
        %v6349 = vpow.pop %v6348
        %v6350 = vmul.f32 %v6292, 1.442695
        %v6351 = vpow.pop %v6350
        %v6352 = vmul.f32 %v6293, 1.442695
        %v6353 = vpow.pop %v6352
        %v6354 = vmul.f32 %v6294, 1.442695
        %v6355 = vpow.pop %v6354
        %v6356 = vmul.f32 %v6295, 1.442695
        %v6357 = vpow.pop %v6356
        %v6358 = vmul.f32 %v6296, 1.442695
        %v6359 = vpow.pop %v6358
        %v6360 = vmul.f32 %v6297, 1.442695
        %v6361 = vpow.pop %v6360
        %v6362 = vld [vmem:[%s516] sm:$0xff]
        %v6363 = vld [vmem:[%s516 + $0x8] sm:$0xff]
        %v6364 = vld [vmem:[%s516 + $0x10] sm:$0xff]
        %v6365 = vld [vmem:[%s516 + $0x18] sm:$0xff]
        %v6366 = vld [vmem:[%s516 + $0x20] sm:$0xff]
        %v6367 = vld [vmem:[%s516 + $0x28] sm:$0xff]
        %v6368 = vld [vmem:[%s516 + $0x30] sm:$0xff]
        %v6369 = vld [vmem:[%s516 + $0x38] sm:$0xff]
        %v6370 = vld [vmem:[%s516 + $0x40] sm:$0xff]
        %v6371 = vld [vmem:[%s516 + $0x48] sm:$0xff]
        %v6372 = vld [vmem:[%s516 + $0x50] sm:$0xff]
        %v6373 = vld [vmem:[%s516 + $0x58] sm:$0xff]
        %v6374 = vld [vmem:[%s516 + $0x60] sm:$0xff]
        %v6375 = vld [vmem:[%s516 + $0x68] sm:$0xff]
        %v6376 = vld [vmem:[%s516 + $0x70] sm:$0xff]
        %v6377 = vld [vmem:[%s516 + $0x78] sm:$0xff]
        %v6378 = vld [vmem:[%s516 + $0x80] sm:$0xff]
        %v6379 = vld [vmem:[%s516 + $0x88] sm:$0xff]
        %v6380 = vld [vmem:[%s516 + $0x90] sm:$0xff]
        %v6381 = vld [vmem:[%s516 + $0x98] sm:$0xff]
        %v6382 = vld [vmem:[%s516 + $0xa0] sm:$0xff]
        %v6383 = vld [vmem:[%s516 + $0xa8] sm:$0xff]
        %v6384 = vld [vmem:[%s516 + $0xb0] sm:$0xff]
        %v6385 = vld [vmem:[%s516 + $0xb8] sm:$0xff]
        %v6386 = vld [vmem:[%s516 + $0xc0] sm:$0xff]
        %v6387 = vld [vmem:[%s516 + $0xc8] sm:$0xff]
        %v6388 = vld [vmem:[%s516 + $0xd0] sm:$0xff]
        %v6389 = vld [vmem:[%s516 + $0xd8] sm:$0xff]
        %v6390 = vld [vmem:[%s516 + $0xe0] sm:$0xff]
        %v6391 = vld [vmem:[%s516 + $0xe8] sm:$0xff]
        %v6392 = vld [vmem:[%s516 + $0xf0] sm:$0xff]
        %v6393 = vld [vmem:[%s516 + $0xf8] sm:$0xff]
        %v6394 = vmul.f32 %v6299, %v6362
        %v6395 = vmul.f32 %v6301, %v6363
        %v6396 = vmul.f32 %v6303, %v6364
        %v6397 = vmul.f32 %v6305, %v6365
        %v6398 = vmul.f32 %v6307, %v6366
        %v6399 = vmul.f32 %v6309, %v6367
        %v6400 = vmul.f32 %v6311, %v6368
        %v6401 = vmul.f32 %v6313, %v6369
        %v6402 = vmul.f32 %v6315, %v6370
        %v6403 = vmul.f32 %v6317, %v6371
        %v6404 = vmul.f32 %v6319, %v6372
        %v6405 = vmul.f32 %v6321, %v6373
        %v6406 = vmul.f32 %v6323, %v6374
        %v6407 = vmul.f32 %v6325, %v6375
        %v6408 = vmul.f32 %v6327, %v6376
        %v6409 = vmul.f32 %v6329, %v6377
        %v6410 = vmul.f32 %v6331, %v6378
        %v6411 = vmul.f32 %v6333, %v6379
        %v6412 = vmul.f32 %v6335, %v6380
        %v6413 = vmul.f32 %v6337, %v6381
        %v6414 = vmul.f32 %v6339, %v6382
        %v6415 = vmul.f32 %v6341, %v6383
        %v6416 = vmul.f32 %v6343, %v6384
        %v6417 = vmul.f32 %v6345, %v6385
        %v6418 = vmul.f32 %v6347, %v6386
        %v6419 = vmul.f32 %v6349, %v6387
        %v6420 = vmul.f32 %v6351, %v6388
        %v6421 = vmul.f32 %v6353, %v6389
        %v6422 = vmul.f32 %v6355, %v6390
        %v6423 = vmul.f32 %v6357, %v6391
        %v6424 = vmul.f32 %v6359, %v6392
        %v6425 = vmul.f32 %v6361, %v6393
        %v6426 = vadd.f32 %v6030, %v6394
        %v6427 = vadd.f32 %v6032, %v6395
        %v6428 = vadd.f32 %v6035, %v6396
        %v6429 = vadd.f32 %v6037, %v6397
        %v6430 = vadd.f32 %v6040, %v6398
        %v6431 = vadd.f32 %v6042, %v6399
        %v6432 = vadd.f32 %v6045, %v6400
        %v6433 = vadd.f32 %v6047, %v6401
        %v6434 = vadd.f32 %v6050, %v6402
        %v6435 = vadd.f32 %v6052, %v6403
        %v6436 = vadd.f32 %v6055, %v6404
        %v6437 = vadd.f32 %v6057, %v6405
        %v6438 = vadd.f32 %v6060, %v6406
        %v6439 = vadd.f32 %v6062, %v6407
        %v6440 = vadd.f32 %v6065, %v6408
        %v6441 = vadd.f32 %v6067, %v6409
        %v6442 = vadd.f32 %v6070, %v6410
        %v6443 = vadd.f32 %v6072, %v6411
        %v6444 = vadd.f32 %v6075, %v6412
        %v6445 = vadd.f32 %v6077, %v6413
        %v6446 = vadd.f32 %v6080, %v6414
        %v6447 = vadd.f32 %v6082, %v6415
        %v6448 = vadd.f32 %v6085, %v6416
        %v6449 = vadd.f32 %v6087, %v6417
        %v6450 = vadd.f32 %v6090, %v6418
        %v6451 = vadd.f32 %v6092, %v6419
        %v6452 = vadd.f32 %v6095, %v6420
        %v6453 = vadd.f32 %v6097, %v6421
        %v6454 = vadd.f32 %v6100, %v6422
        %v6455 = vadd.f32 %v6102, %v6423
        %v6456 = vadd.f32 %v6105, %v6424
        %v6457 = vadd.f32 %v6107, %v6425
        %6458 = vst [vmem:[%s558] sm:$0xff] %v6426
        %6459 = vst [vmem:[%s558 + $0x8] sm:$0xff] %v6427
        %6460 = vst [vmem:[%s558 + $0x10] sm:$0xff] %v6428
        %6461 = vst [vmem:[%s558 + $0x18] sm:$0xff] %v6429
        %6462 = vst [vmem:[%s558 + $0x20] sm:$0xff] %v6430
        %6463 = vst [vmem:[%s558 + $0x28] sm:$0xff] %v6431
        %6464 = vst [vmem:[%s558 + $0x30] sm:$0xff] %v6432
        %6465 = vst [vmem:[%s558 + $0x38] sm:$0xff] %v6433
        %6466 = vst [vmem:[%s558 + $0x40] sm:$0xff] %v6434
        %6467 = vst [vmem:[%s558 + $0x48] sm:$0xff] %v6435
        %6468 = vst [vmem:[%s558 + $0x50] sm:$0xff] %v6436
        %6469 = vst [vmem:[%s558 + $0x58] sm:$0xff] %v6437
        %6470 = vst [vmem:[%s558 + $0x60] sm:$0xff] %v6438
        %6471 = vst [vmem:[%s558 + $0x68] sm:$0xff] %v6439
        %6472 = vst [vmem:[%s558 + $0x70] sm:$0xff] %v6440
        %6473 = vst [vmem:[%s558 + $0x78] sm:$0xff] %v6441
        %6474 = vst [vmem:[%s558 + $0x80] sm:$0xff] %v6442
        %6475 = vst [vmem:[%s558 + $0x88] sm:$0xff] %v6443
        %6476 = vst [vmem:[%s558 + $0x90] sm:$0xff] %v6444
        %6477 = vst [vmem:[%s558 + $0x98] sm:$0xff] %v6445
        %6478 = vst [vmem:[%s558 + $0xa0] sm:$0xff] %v6446
        %6479 = vst [vmem:[%s558 + $0xa8] sm:$0xff] %v6447
        %6480 = vst [vmem:[%s558 + $0xb0] sm:$0xff] %v6448
        %6481 = vst [vmem:[%s558 + $0xb8] sm:$0xff] %v6449
        %6482 = vst [vmem:[%s558 + $0xc0] sm:$0xff] %v6450
        %6483 = vst [vmem:[%s558 + $0xc8] sm:$0xff] %v6451
        %6484 = vst [vmem:[%s558 + $0xd0] sm:$0xff] %v6452
        %6485 = vst [vmem:[%s558 + $0xd8] sm:$0xff] %v6453
        %6486 = vst [vmem:[%s558 + $0xe0] sm:$0xff] %v6454
        %6487 = vst [vmem:[%s558 + $0xe8] sm:$0xff] %v6455
        %6488 = vst [vmem:[%s558 + $0xf0] sm:$0xff] %v6456
        %6489 = vst [vmem:[%s558 + $0xf8] sm:$0xff] %v6457
        %6490 = vst [vmem:[%s565] sm:$0xff] %v6030
        %6491 = vst [vmem:[%s565 + $0x8] sm:$0xff] %v6032
        %6492 = vst [vmem:[%s565 + $0x10] sm:$0xff] %v6035
        %6493 = vst [vmem:[%s565 + $0x18] sm:$0xff] %v6037
        %6494 = vst [vmem:[%s565 + $0x20] sm:$0xff] %v6040
        %6495 = vst [vmem:[%s565 + $0x28] sm:$0xff] %v6042
        %6496 = vst [vmem:[%s565 + $0x30] sm:$0xff] %v6045
        %6497 = vst [vmem:[%s565 + $0x38] sm:$0xff] %v6047
        %6498 = vst [vmem:[%s565 + $0x40] sm:$0xff] %v6050
        %6499 = vst [vmem:[%s565 + $0x48] sm:$0xff] %v6052
        %6500 = vst [vmem:[%s565 + $0x50] sm:$0xff] %v6055
        %6501 = vst [vmem:[%s565 + $0x58] sm:$0xff] %v6057
        %6502 = vst [vmem:[%s565 + $0x60] sm:$0xff] %v6060
        %6503 = vst [vmem:[%s565 + $0x68] sm:$0xff] %v6062
        %6504 = vst [vmem:[%s565 + $0x70] sm:$0xff] %v6065
        %6505 = vst [vmem:[%s565 + $0x78] sm:$0xff] %v6067
        %6506 = vst [vmem:[%s565 + $0x80] sm:$0xff] %v6070
        %6507 = vst [vmem:[%s565 + $0x88] sm:$0xff] %v6072
        %6508 = vst [vmem:[%s565 + $0x90] sm:$0xff] %v6075
        %6509 = vst [vmem:[%s565 + $0x98] sm:$0xff] %v6077
        %6510 = vst [vmem:[%s565 + $0xa0] sm:$0xff] %v6080
        %6511 = vst [vmem:[%s565 + $0xa8] sm:$0xff] %v6082
        %6512 = vst [vmem:[%s565 + $0xb0] sm:$0xff] %v6085
        %6513 = vst [vmem:[%s565 + $0xb8] sm:$0xff] %v6087
        %6514 = vst [vmem:[%s565 + $0xc0] sm:$0xff] %v6090
        %6515 = vst [vmem:[%s565 + $0xc8] sm:$0xff] %v6092
        %6516 = vst [vmem:[%s565 + $0xd0] sm:$0xff] %v6095
        %6517 = vst [vmem:[%s565 + $0xd8] sm:$0xff] %v6097
        %6518 = vst [vmem:[%s565 + $0xe0] sm:$0xff] %v6100
        %6519 = vst [vmem:[%s565 + $0xe8] sm:$0xff] %v6102
        %6520 = vst [vmem:[%s565 + $0xf0] sm:$0xff] %v6105
        %6521 = vst [vmem:[%s565 + $0xf8] sm:$0xff] %v6107
        %6522 = vst [vmem:[%s572] sm:$0xff] %v6187
        %6523 = vst [vmem:[%s572 + $0x8] sm:$0xff] %v6189
        %6524 = vst [vmem:[%s572 + $0x10] sm:$0xff] %v6192
        %6525 = vst [vmem:[%s572 + $0x18] sm:$0xff] %v6194
        %6526 = vst [vmem:[%s572 + $0x20] sm:$0xff] %v6197
        %6527 = vst [vmem:[%s572 + $0x28] sm:$0xff] %v6199
        %6528 = vst [vmem:[%s572 + $0x30] sm:$0xff] %v6202
        %6529 = vst [vmem:[%s572 + $0x38] sm:$0xff] %v6204
        %6530 = vst [vmem:[%s572 + $0x40] sm:$0xff] %v6207
        %6531 = vst [vmem:[%s572 + $0x48] sm:$0xff] %v6209
        %6532 = vst [vmem:[%s572 + $0x50] sm:$0xff] %v6212
        %6533 = vst [vmem:[%s572 + $0x58] sm:$0xff] %v6214
        %6534 = vst [vmem:[%s572 + $0x60] sm:$0xff] %v6217
        %6535 = vst [vmem:[%s572 + $0x68] sm:$0xff] %v6219
        %6536 = vst [vmem:[%s572 + $0x70] sm:$0xff] %v6222
        %6537 = vst [vmem:[%s572 + $0x78] sm:$0xff] %v6224
        %6538 = vst [vmem:[%s572 + $0x80] sm:$0xff] %v6227
        %6539 = vst [vmem:[%s572 + $0x88] sm:$0xff] %v6229
        %6540 = vst [vmem:[%s572 + $0x90] sm:$0xff] %v6232
        %6541 = vst [vmem:[%s572 + $0x98] sm:$0xff] %v6234
        %6542 = vst [vmem:[%s572 + $0xa0] sm:$0xff] %v6237
        %6543 = vst [vmem:[%s572 + $0xa8] sm:$0xff] %v6239
        %6544 = vst [vmem:[%s572 + $0xb0] sm:$0xff] %v6242
        %6545 = vst [vmem:[%s572 + $0xb8] sm:$0xff] %v6244
        %6546 = vst [vmem:[%s572 + $0xc0] sm:$0xff] %v6247
        %6547 = vst [vmem:[%s572 + $0xc8] sm:$0xff] %v6249
        %6548 = vst [vmem:[%s572 + $0xd0] sm:$0xff] %v6252
        %6549 = vst [vmem:[%s572 + $0xd8] sm:$0xff] %v6254
        %6550 = vst [vmem:[%s572 + $0xe0] sm:$0xff] %v6257
        %6551 = vst [vmem:[%s572 + $0xe8] sm:$0xff] %v6259
        %6552 = vst [vmem:[%s572 + $0xf0] sm:$0xff] %v6262
        %6553 = vst [vmem:[%s572 + $0xf8] sm:$0xff] %v6264
        %s6554 = sand.u32 %s264, 1
        %s6555 = scalar_lea.sflag [#allocation4], %s6554
        %s6556 = sand.u32 %s264, 1
        %s6557 = smul.addr %s6556, 256
        %s6558 = scalar_lea.vmem [#allocation14], %s6557
        %s6559 = sand.u32 %s36, 1
        %s6560 = scalar_lea.sflag [#allocation16], %s6559
        %s6561 = sand.u32 %s290, 1
        %s6562 = smul.addr %s6561, 256
        %s6563 = scalar_lea.vmem [#allocation15], %s6562
        %s6564 = sand.u32 %s36, 1
        %s6565 = scalar_lea.sflag [#allocation16], %s6564
        %s6566 = sand.u32 %s316, 1
        %s6567 = smul.addr %s6566, 256
        %s6568 = scalar_lea.vmem [#allocation17], %s6567
        // Predicated region
        $region89: #{tpu_custom_call.1} parent=59 // pred_check
          %p6569 = pneg %p274
        $region90: #{tpu_custom_call.1} parent=59 // pred_check_branch
          %6571 = sbr.rel (%p6569) target = $region92
        $region91: #{tpu_custom_call.1} parent=59 // pred_region
          %s6572 = smul.u32 32, %s36
          %6574 = vsyncadd %s6555, 0
          %s6575 = smul.addr %s6572, 8
          %s6576 = scalar_lea.hbm %s10, %s6575
          %s6577 = sshll.u32 %s6558, 4
          %s6578 = int_to_ptr.vmem [resolvable:$true] %s6577
          %s6579 = sshll.u32 %s6576, 4
          %s6580 = int_to_ptr.hbm [resolvable:$true] %s6579
          %6585 = dma.vmem_to_hbm [thread:$0]  %s6578, 4096, %s6580, %s6555, 128, 128, 8
        $region92: #{tpu_custom_call.1} parent=59 // pred_fallthru
          _
        // Predicated region
        $region93: #{tpu_custom_call.1} parent=59 // pred_check
          %p6586 = pneg %p300
        $region94: #{tpu_custom_call.1} parent=59 // pred_check_branch
          %6588 = sbr.rel (%p6586) target = $region96
        $region95: #{tpu_custom_call.1} parent=59 // pred_region
          %s6589 = smul.u32 32, %s36
          %6591 = vsyncadd %s6560, 0
          %s6592 = smul.addr %s6589, 8
          %s6593 = scalar_lea.hbm %s11, %s6592
          %s6594 = sshll.u32 %s6563, 4
          %s6595 = int_to_ptr.vmem [resolvable:$true] %s6594
          %s6596 = sshll.u32 %s6593, 4
          %s6597 = int_to_ptr.hbm [resolvable:$true] %s6596
          %6602 = dma.vmem_to_hbm [thread:$0]  %s6595, 4096, %s6597, %s6560, 128, 128, 8
        $region96: #{tpu_custom_call.1} parent=59 // pred_fallthru
          _
        // Predicated region
        $region97: #{tpu_custom_call.1} parent=59 // pred_check
          %p6603 = pneg %p326
        $region98: #{tpu_custom_call.1} parent=59 // pred_check_branch
          %6605 = sbr.rel (%p6603) target = $region100
        $region99: #{tpu_custom_call.1} parent=59 // pred_region
          %s6606 = smul.u32 32, %s36
          %6608 = vsyncadd %s6565, 0
          %s6609 = smul.addr %s6606, 8
          %s6610 = scalar_lea.hbm %s12, %s6609
          %s6611 = sshll.u32 %s6568, 4
          %s6612 = int_to_ptr.vmem [resolvable:$true] %s6611
          %s6613 = sshll.u32 %s6610, 4
          %s6614 = int_to_ptr.hbm [resolvable:$true] %s6613
          %6619 = dma.vmem_to_hbm [thread:$0]  %s6612, 4096, %s6614, %s6565, 128, 128, 8
        $region100: #{tpu_custom_call.1} parent=59 // pred_fallthru
          _
      $region60: #{tpu_custom_call.1} parent=5 // pred_fallthru
        _
      %p6620 = scmp.le.s32.totalorder 2, %s31
      // Predicated region
      $region101: #{tpu_custom_call.1} parent=5 // pred_check
        %p6621 = pneg %p6620
      $region102: #{tpu_custom_call.1} parent=5 // pred_check_branch
        %6623 = sbr.rel (%p6621) target = $region104
      $region103: #{tpu_custom_call.1} parent=5 // pred_region
        %s6624 = ssub.s32 %s31, 2
        // Predicated region
        $region105: #{tpu_custom_call.1} parent=103 // pred_check
          %p6625 = pneg %p280
        $region106: #{tpu_custom_call.1} parent=103 // pred_check_branch
          %6627 = sbr.rel (%p6625) target = $region108
        $region107: #{tpu_custom_call.1} parent=103 // pred_region
          %s6628 = sand.u32 %s265, 1
          %s6629 = scalar_lea.sflag [#allocation4], %s6628
          %s6630 = sand.u32 %s265, 1
          %s6631 = smul.addr %s6630, 256
          %s6632 = scalar_lea.vmem [#allocation14], %s6631
          %6634 = dma.done %s6629, 4096
        $region108: #{tpu_custom_call.1} parent=103 // pred_fallthru
          _
        // Predicated region
        $region109: #{tpu_custom_call.1} parent=103 // pred_check
          %p6635 = pneg %p306
        $region110: #{tpu_custom_call.1} parent=103 // pred_check_branch
          %6637 = sbr.rel (%p6635) target = $region112
        $region111: #{tpu_custom_call.1} parent=103 // pred_region
          %s6638 = sand.u32 %s37, 1
          %s6639 = scalar_lea.sflag [#allocation16], %s6638
          %s6640 = sand.u32 %s291, 1
          %s6641 = smul.addr %s6640, 256
          %s6642 = scalar_lea.vmem [#allocation15], %s6641
          %6644 = dma.done %s6639, 4096
        $region112: #{tpu_custom_call.1} parent=103 // pred_fallthru
          _
        // Predicated region
        $region113: #{tpu_custom_call.1} parent=103 // pred_check
          %p6645 = pneg %p332
        $region114: #{tpu_custom_call.1} parent=103 // pred_check_branch
          %6647 = sbr.rel (%p6645) target = $region116
        $region115: #{tpu_custom_call.1} parent=103 // pred_region
          %s6648 = sand.u32 %s37, 1
          %s6649 = scalar_lea.sflag [#allocation16], %s6648
          %s6650 = sand.u32 %s317, 1
          %s6651 = smul.addr %s6650, 256
          %s6652 = scalar_lea.vmem [#allocation17], %s6651
          %6654 = dma.done %s6649, 4096
        $region116: #{tpu_custom_call.1} parent=103 // pred_fallthru
          _
      $region104: #{tpu_custom_call.1} parent=5 // pred_fallthru
        _
    $region6: #{tpu_custom_call.1} parent=1 // loop_footer
      %s35 = sadd.s32 1, %s31
    $region7: #{tpu_custom_call.1} parent=1 // loop_footer_branch
      %30 = sbr.rel target = $region3
    $region8: #{tpu_custom_call.1} parent=1 // loop_exit
      _
    %6655 = vsyncpa [#allocation3], 1
    %s6656 = scalar_lea.sflag [#allocation3], 1
    %6657 = vsyncpa %s6656, 1
    %6658 = vsyncpa [#allocation6], 1
    %6659 = vsyncpa [#allocation9], 1
    %6660 = vsyncpa [#allocation12], 1
    %6661 = vsyncpa [#allocation4], 1
    %s6662 = scalar_lea.sflag [#allocation4], 1
    %6663 = vsyncpa %s6662, 1
    %6664 = vsyncpa [#allocation16], 1
    %s6665 = scalar_lea.sflag [#allocation16], 1
    %6666 = vsyncpa %s6665, 1

</llo_original>
